<compile_context>
chip_gen: v6e
topology: v6e:2x2x1
jax: 0.10.0
libtpu: 0.0.40
codegen_flags: <defaults>
</compile_context>

<pallas_src>
import jax
import jax.numpy as jnp
from jax.experimental import pallas as pl
from jax.experimental.pallas import tpu as pltpu


CHUNK = 128  # lane width of the in-kernel channel sub-chunks


def dwconv3x3_kernel(x_ref, w_ref, o_ref, xp_ref):
    # x_ref : [N, H, W, Cb]   unpadded spatial block, one channel super-block
    # w_ref : [3, 3, Cb]      per-channel taps for this super-block
    # o_ref : [N, H, W, Cb]
    # xp_ref: VMEM scratch [N, H+2, W+2, Cb] zero-halo buffer
    N, H, W, Cb = o_ref.shape

    # Build the zero-padded window in VMEM (no HBM pad round trip).  Runs only
    # twice per call now, so the ~200 vreg stores here are negligible.
    xp_ref[...] = jnp.zeros(xp_ref.shape, xp_ref.dtype)
    xp_ref[:, 1:H + 1, 1:W + 1, :] = x_ref[...].astype(xp_ref.dtype)

    n_chunks = Cb // CHUNK
    for c in range(n_chunks):            # 128-lane chunks keep acc at ~7 vregs
        c0 = c * CHUNK
        # Hoist the 9 weight taps for this chunk: one [3,3,128] load.
        wc = w_ref[:, :, c0:c0 + CHUNK].astype(jnp.float32)
        acc = jnp.zeros((N, H, W, CHUNK), jnp.float32)
        # kw outer: only 3 sublane-shifted loads per chunk; kh slicing of the
        # loaded value is a free vreg offset.
        for kw in range(3):
            xw = xp_ref[:, :, kw:kw + W, c0:c0 + CHUNK]        # [N, H+2, W, 128]
            for kh in range(3):
                tap = wc[kh, kw].reshape(1, 1, 1, CHUNK)
                acc = acc + xw[:, kh:kh + H, :, :] * tap
        o_ref[:, :, :, c0:c0 + CHUNK] = acc.astype(o_ref.dtype)


def depthwise_conv3x3(x_nchw, weight, *, grid_c=2):
    """Depthwise 3x3, stride 1, pad 1.

    x_nchw: [N, C, H, W]; weight: [C, 1, 3, 3] (PyTorch depthwise layout).
    """
    N, C, H, W = x_nchw.shape
    # Two channel super-blocks: one per TensorCore on v7x, minimal sequential
    # grid overhead on v5e/v6e.  Each block is a multiple of the 128-lane chunk.
    block_c = pl.cdiv(pl.cdiv(C, grid_c), CHUNK) * CHUNK
    cp = grid_c * block_c

    # Layout glue: channels -> lanes (NHWC); pad channels so every super-block
    # is lane-dense.  See TODO(synk) above about dropping these relayouts.
    x_nhwc = jnp.transpose(x_nchw, (0, 2, 3, 1))                 # [N, H, W, C]
    w = jnp.transpose(weight[:, 0, :, :], (1, 2, 0))             # [3, 3, C]
    if cp != C:
        x_nhwc = jnp.pad(x_nhwc, ((0, 0), (0, 0), (0, 0), (0, cp - C)))
        w = jnp.pad(w, ((0, 0), (0, 0), (0, cp - C)))

    out_nhwc = pl.pallas_call(
        dwconv3x3_kernel,
        out_shape=jax.ShapeDtypeStruct((N, H, W, cp), x_nchw.dtype),
        grid=(grid_c,),
        in_specs=[
            pl.BlockSpec((N, H, W, block_c), lambda c: (0, 0, 0, c)),
            pl.BlockSpec((3, 3, block_c), lambda c: (0, 0, c)),
        ],
        out_specs=pl.BlockSpec((N, H, W, block_c), lambda c: (0, 0, 0, c)),
        scratch_shapes=[pltpu.VMEM((N, H + 2, W + 2, block_c), jnp.float32)],
        compiler_params=pltpu.CompilerParams(
            dimension_semantics=("parallel",),
        ),
    )(x_nhwc, w)

    return jnp.transpose(out_nhwc[..., :C], (0, 3, 1, 2))        # back to NCHW


if __name__ == "__main__":
    key = jax.random.PRNGKey(0)
    k_x, k_w = jax.random.split(key)

    N, C, H, W = 1, 1824, 7, 7
    x = jax.random.normal(k_x, (N, C, H, W), dtype=jnp.float32)
    # Deterministic synthetic weights, PyTorch depthwise layout [C, 1, 3, 3].
    weight = jax.random.normal(k_w, (C, 1, 3, 3), dtype=jnp.float32) * 0.1

    out = jax.block_until_ready(depthwise_conv3x3(x, weight))
    assert out.shape == (N, C, H, W), out.shape

    # Reference check with XLA's grouped conv (groups = C).
    ref = jax.lax.conv_general_dilated(
        x, weight,
        window_strides=(1, 1),
        padding=((1, 1), (1, 1)),
        dimension_numbers=("NCHW", "OIHW", "NCHW"),
        feature_group_count=C,
    )
    assert jnp.allclose(out, ref, atol=1e-4, rtol=1e-4)

    print("KERNEL_OK")
</pallas_src>

<mosaic_0001>
module attributes {stable_mosaic.version = 11 : i64} {
  func.func @dwconv3x3_kernel(%arg0: i32, %arg1: memref<1x7x7x1024xf32, #tpu.memory_space<vmem>>, %arg2: memref<3x3x1024xf32, #tpu.memory_space<vmem>>, %arg3: memref<1x7x7x1024xf32, #tpu.memory_space<vmem>>, %arg4: memref<1x9x9x1024xf32, #tpu.memory_space<vmem>>) attributes {dimension_semantics = [#tpu.dimension_semantics<parallel>], iteration_bounds = array<i64: 2>, scalar_prefetch = 0 : i64, scratch_operands = 1 : i64, tpu.core_type = #tpu.core_type<tc>, window_params = [{transform_indices = @transform_0, window_bounds = array<i64: 1, 7, 7, 1024>}, {transform_indices = @transform_1, window_bounds = array<i64: 3, 3, 1024>}, {transform_indices = @transform_2, window_bounds = array<i64: 1, 7, 7, 1024>}]} {
    %cst = arith.constant 0.000000e+00 : f32
    %0 = vector.broadcast %cst : f32 to vector<1x9x9x1024xf32>
    %c0 = arith.constant 0 : index
    %c0_0 = arith.constant 0 : index
    %c0_1 = arith.constant 0 : index
    %c0_2 = arith.constant 0 : index
    %1 = vector.load %arg4[%c0, %c0_0, %c0_1, %c0_2] : memref<1x9x9x1024xf32, #tpu.memory_space<vmem>>, vector<1x9x9x1024xf32>
    tpu.vector_store %arg4[%c0, %c0_0, %c0_1, %c0_2], %0 {strides = array<i32>} : memref<1x9x9x1024xf32, #tpu.memory_space<vmem>>, vector<1x9x9x1024xf32>,
    %c0_3 = arith.constant 0 : index
    %c0_4 = arith.constant 0 : index
    %c0_5 = arith.constant 0 : index
    %c0_6 = arith.constant 0 : index
    %2 = vector.load %arg1[%c0_3, %c0_4, %c0_5, %c0_6] : memref<1x7x7x1024xf32, #tpu.memory_space<vmem>>, vector<1x7x7x1024xf32>
    %c0_7 = arith.constant 0 : index
    %c1 = arith.constant 1 : index
    %c1_8 = arith.constant 1 : index
    %c0_9 = arith.constant 0 : index
    %3 = vector.load %arg4[%c0_7, %c1, %c1_8, %c0_9] : memref<1x9x9x1024xf32, #tpu.memory_space<vmem>>, vector<1x7x7x1024xf32>
    tpu.vector_store %arg4[%c0_7, %c1, %c1_8, %c0_9], %2 {strides = array<i32>} : memref<1x9x9x1024xf32, #tpu.memory_space<vmem>>, vector<1x7x7x1024xf32>,
    %c0_10 = arith.constant 0 : index
    %c0_11 = arith.constant 0 : index
    %c0_12 = arith.constant 0 : index
    %4 = vector.load %arg2[%c0_10, %c0_11, %c0_12] : memref<3x3x1024xf32, #tpu.memory_space<vmem>>, vector<3x3x128xf32>
    %cst_13 = arith.constant 0.000000e+00 : f32
    %5 = vector.broadcast %cst_13 : f32 to vector<1x7x7x128xf32>
    %c0_14 = arith.constant 0 : index
    %c0_15 = arith.constant 0 : index
    %c0_16 = arith.constant 0 : index
    %c0_17 = arith.constant 0 : index
    %6 = vector.load %arg4[%c0_14, %c0_15, %c0_16, %c0_17] : memref<1x9x9x1024xf32, #tpu.memory_space<vmem>>, vector<1x9x7x128xf32>
    %7 = vector.extract_strided_slice %4 {offsets = [0, 0, 0], sizes = [1, 1, 128], strides = [1, 1, 1]} : vector<3x3x128xf32> to vector<1x1x128xf32>
    %8 = vector.shape_cast %7 : vector<1x1x128xf32> to vector<128xf32>
    %9 = vector.shape_cast %8 : vector<128xf32> to vector<1x1x1x128xf32>
    %10 = vector.extract_strided_slice %6 {offsets = [0, 0, 0, 0], sizes = [1, 7, 7, 128], strides = [1, 1, 1, 1]} : vector<1x9x7x128xf32> to vector<1x7x7x128xf32>
    %11 = vector.broadcast %9 : vector<1x1x1x128xf32> to vector<1x7x7x128xf32>
    %12 = arith.mulf %10, %11 : vector<1x7x7x128xf32>
    %13 = arith.addf %5, %12 : vector<1x7x7x128xf32>
    %14 = vector.extract_strided_slice %4 {offsets = [1, 0, 0], sizes = [1, 1, 128], strides = [1, 1, 1]} : vector<3x3x128xf32> to vector<1x1x128xf32>
    %15 = vector.shape_cast %14 : vector<1x1x128xf32> to vector<128xf32>
    %16 = vector.shape_cast %15 : vector<128xf32> to vector<1x1x1x128xf32>
    %17 = vector.extract_strided_slice %6 {offsets = [0, 1, 0, 0], sizes = [1, 7, 7, 128], strides = [1, 1, 1, 1]} : vector<1x9x7x128xf32> to vector<1x7x7x128xf32>
    %18 = vector.broadcast %16 : vector<1x1x1x128xf32> to vector<1x7x7x128xf32>
    %19 = arith.mulf %17, %18 : vector<1x7x7x128xf32>
    %20 = arith.addf %13, %19 : vector<1x7x7x128xf32>
    %21 = vector.extract_strided_slice %4 {offsets = [2, 0, 0], sizes = [1, 1, 128], strides = [1, 1, 1]} : vector<3x3x128xf32> to vector<1x1x128xf32>
    %22 = vector.shape_cast %21 : vector<1x1x128xf32> to vector<128xf32>
    %23 = vector.shape_cast %22 : vector<128xf32> to vector<1x1x1x128xf32>
    %24 = vector.extract_strided_slice %6 {offsets = [0, 2, 0, 0], sizes = [1, 7, 7, 128], strides = [1, 1, 1, 1]} : vector<1x9x7x128xf32> to vector<1x7x7x128xf32>
    %25 = vector.broadcast %23 : vector<1x1x1x128xf32> to vector<1x7x7x128xf32>
    %26 = arith.mulf %24, %25 : vector<1x7x7x128xf32>
    %27 = arith.addf %20, %26 : vector<1x7x7x128xf32>
    %c0_18 = arith.constant 0 : index
    %c0_19 = arith.constant 0 : index
    %c1_20 = arith.constant 1 : index
    %c0_21 = arith.constant 0 : index
    %28 = vector.load %arg4[%c0_18, %c0_19, %c1_20, %c0_21] : memref<1x9x9x1024xf32, #tpu.memory_space<vmem>>, vector<1x9x7x128xf32>
    %29 = vector.extract_strided_slice %4 {offsets = [0, 1, 0], sizes = [1, 1, 128], strides = [1, 1, 1]} : vector<3x3x128xf32> to vector<1x1x128xf32>
    %30 = vector.shape_cast %29 : vector<1x1x128xf32> to vector<128xf32>
    %31 = vector.shape_cast %30 : vector<128xf32> to vector<1x1x1x128xf32>
    %32 = vector.extract_strided_slice %28 {offsets = [0, 0, 0, 0], sizes = [1, 7, 7, 128], strides = [1, 1, 1, 1]} : vector<1x9x7x128xf32> to vector<1x7x7x128xf32>
    %33 = vector.broadcast %31 : vector<1x1x1x128xf32> to vector<1x7x7x128xf32>
    %34 = arith.mulf %32, %33 : vector<1x7x7x128xf32>
    %35 = arith.addf %27, %34 : vector<1x7x7x128xf32>
    %36 = vector.extract_strided_slice %4 {offsets = [1, 1, 0], sizes = [1, 1, 128], strides = [1, 1, 1]} : vector<3x3x128xf32> to vector<1x1x128xf32>
    %37 = vector.shape_cast %36 : vector<1x1x128xf32> to vector<128xf32>
    %38 = vector.shape_cast %37 : vector<128xf32> to vector<1x1x1x128xf32>
    %39 = vector.extract_strided_slice %28 {offsets = [0, 1, 0, 0], sizes = [1, 7, 7, 128], strides = [1, 1, 1, 1]} : vector<1x9x7x128xf32> to vector<1x7x7x128xf32>
    %40 = vector.broadcast %38 : vector<1x1x1x128xf32> to vector<1x7x7x128xf32>
    %41 = arith.mulf %39, %40 : vector<1x7x7x128xf32>
    %42 = arith.addf %35, %41 : vector<1x7x7x128xf32>
    %43 = vector.extract_strided_slice %4 {offsets = [2, 1, 0], sizes = [1, 1, 128], strides = [1, 1, 1]} : vector<3x3x128xf32> to vector<1x1x128xf32>
    %44 = vector.shape_cast %43 : vector<1x1x128xf32> to vector<128xf32>
    %45 = vector.shape_cast %44 : vector<128xf32> to vector<1x1x1x128xf32>
    %46 = vector.extract_strided_slice %28 {offsets = [0, 2, 0, 0], sizes = [1, 7, 7, 128], strides = [1, 1, 1, 1]} : vector<1x9x7x128xf32> to vector<1x7x7x128xf32>
    %47 = vector.broadcast %45 : vector<1x1x1x128xf32> to vector<1x7x7x128xf32>
    %48 = arith.mulf %46, %47 : vector<1x7x7x128xf32>
    %49 = arith.addf %42, %48 : vector<1x7x7x128xf32>
    %c0_22 = arith.constant 0 : index
    %c0_23 = arith.constant 0 : index
    %c2 = arith.constant 2 : index
    %c0_24 = arith.constant 0 : index
    %50 = vector.load %arg4[%c0_22, %c0_23, %c2, %c0_24] : memref<1x9x9x1024xf32, #tpu.memory_space<vmem>>, vector<1x9x7x128xf32>
    %51 = vector.extract_strided_slice %4 {offsets = [0, 2, 0], sizes = [1, 1, 128], strides = [1, 1, 1]} : vector<3x3x128xf32> to vector<1x1x128xf32>
    %52 = vector.shape_cast %51 : vector<1x1x128xf32> to vector<128xf32>
    %53 = vector.shape_cast %52 : vector<128xf32> to vector<1x1x1x128xf32>
    %54 = vector.extract_strided_slice %50 {offsets = [0, 0, 0, 0], sizes = [1, 7, 7, 128], strides = [1, 1, 1, 1]} : vector<1x9x7x128xf32> to vector<1x7x7x128xf32>
    %55 = vector.broadcast %53 : vector<1x1x1x128xf32> to vector<1x7x7x128xf32>
    %56 = arith.mulf %54, %55 : vector<1x7x7x128xf32>
    %57 = arith.addf %49, %56 : vector<1x7x7x128xf32>
    %58 = vector.extract_strided_slice %4 {offsets = [1, 2, 0], sizes = [1, 1, 128], strides = [1, 1, 1]} : vector<3x3x128xf32> to vector<1x1x128xf32>
    %59 = vector.shape_cast %58 : vector<1x1x128xf32> to vector<128xf32>
    %60 = vector.shape_cast %59 : vector<128xf32> to vector<1x1x1x128xf32>
    %61 = vector.extract_strided_slice %50 {offsets = [0, 1, 0, 0], sizes = [1, 7, 7, 128], strides = [1, 1, 1, 1]} : vector<1x9x7x128xf32> to vector<1x7x7x128xf32>
    %62 = vector.broadcast %60 : vector<1x1x1x128xf32> to vector<1x7x7x128xf32>
    %63 = arith.mulf %61, %62 : vector<1x7x7x128xf32>
    %64 = arith.addf %57, %63 : vector<1x7x7x128xf32>
    %65 = vector.extract_strided_slice %4 {offsets = [2, 2, 0], sizes = [1, 1, 128], strides = [1, 1, 1]} : vector<3x3x128xf32> to vector<1x1x128xf32>
    %66 = vector.shape_cast %65 : vector<1x1x128xf32> to vector<128xf32>
    %67 = vector.shape_cast %66 : vector<128xf32> to vector<1x1x1x128xf32>
    %68 = vector.extract_strided_slice %50 {offsets = [0, 2, 0, 0], sizes = [1, 7, 7, 128], strides = [1, 1, 1, 1]} : vector<1x9x7x128xf32> to vector<1x7x7x128xf32>
    %69 = vector.broadcast %67 : vector<1x1x1x128xf32> to vector<1x7x7x128xf32>
    %70 = arith.mulf %68, %69 : vector<1x7x7x128xf32>
    %71 = arith.addf %64, %70 : vector<1x7x7x128xf32>
    %c0_25 = arith.constant 0 : index
    %c0_26 = arith.constant 0 : index
    %c0_27 = arith.constant 0 : index
    %c0_28 = arith.constant 0 : index
    %72 = vector.load %arg3[%c0_25, %c0_26, %c0_27, %c0_28] : memref<1x7x7x1024xf32, #tpu.memory_space<vmem>>, vector<1x7x7x128xf32>
    tpu.vector_store %arg3[%c0_25, %c0_26, %c0_27, %c0_28], %71 {strides = array<i32>} : memref<1x7x7x1024xf32, #tpu.memory_space<vmem>>, vector<1x7x7x128xf32>,
    %c0_29 = arith.constant 0 : index
    %c0_30 = arith.constant 0 : index
    %c128 = arith.constant 128 : index
    %73 = vector.load %arg2[%c0_29, %c0_30, %c128] : memref<3x3x1024xf32, #tpu.memory_space<vmem>>, vector<3x3x128xf32>
    %cst_31 = arith.constant 0.000000e+00 : f32
    %74 = vector.broadcast %cst_31 : f32 to vector<1x7x7x128xf32>
    %c0_32 = arith.constant 0 : index
    %c0_33 = arith.constant 0 : index
    %c0_34 = arith.constant 0 : index
    %c128_35 = arith.constant 128 : index
    %75 = vector.load %arg4[%c0_32, %c0_33, %c0_34, %c128_35] : memref<1x9x9x1024xf32, #tpu.memory_space<vmem>>, vector<1x9x7x128xf32>
    %76 = vector.extract_strided_slice %73 {offsets = [0, 0, 0], sizes = [1, 1, 128], strides = [1, 1, 1]} : vector<3x3x128xf32> to vector<1x1x128xf32>
    %77 = vector.shape_cast %76 : vector<1x1x128xf32> to vector<128xf32>
    %78 = vector.shape_cast %77 : vector<128xf32> to vector<1x1x1x128xf32>
    %79 = vector.extract_strided_slice %75 {offsets = [0, 0, 0, 0], sizes = [1, 7, 7, 128], strides = [1, 1, 1, 1]} : vector<1x9x7x128xf32> to vector<1x7x7x128xf32>
    %80 = vector.broadcast %78 : vector<1x1x1x128xf32> to vector<1x7x7x128xf32>
    %81 = arith.mulf %79, %80 : vector<1x7x7x128xf32>
    %82 = arith.addf %74, %81 : vector<1x7x7x128xf32>
    %83 = vector.extract_strided_slice %73 {offsets = [1, 0, 0], sizes = [1, 1, 128], strides = [1, 1, 1]} : vector<3x3x128xf32> to vector<1x1x128xf32>
    %84 = vector.shape_cast %83 : vector<1x1x128xf32> to vector<128xf32>
    %85 = vector.shape_cast %84 : vector<128xf32> to vector<1x1x1x128xf32>
    %86 = vector.extract_strided_slice %75 {offsets = [0, 1, 0, 0], sizes = [1, 7, 7, 128], strides = [1, 1, 1, 1]} : vector<1x9x7x128xf32> to vector<1x7x7x128xf32>
    %87 = vector.broadcast %85 : vector<1x1x1x128xf32> to vector<1x7x7x128xf32>
    %88 = arith.mulf %86, %87 : vector<1x7x7x128xf32>
    %89 = arith.addf %82, %88 : vector<1x7x7x128xf32>
    %90 = vector.extract_strided_slice %73 {offsets = [2, 0, 0], sizes = [1, 1, 128], strides = [1, 1, 1]} : vector<3x3x128xf32> to vector<1x1x128xf32>
    %91 = vector.shape_cast %90 : vector<1x1x128xf32> to vector<128xf32>
    %92 = vector.shape_cast %91 : vector<128xf32> to vector<1x1x1x128xf32>
    %93 = vector.extract_strided_slice %75 {offsets = [0, 2, 0, 0], sizes = [1, 7, 7, 128], strides = [1, 1, 1, 1]} : vector<1x9x7x128xf32> to vector<1x7x7x128xf32>
    %94 = vector.broadcast %92 : vector<1x1x1x128xf32> to vector<1x7x7x128xf32>
    %95 = arith.mulf %93, %94 : vector<1x7x7x128xf32>
    %96 = arith.addf %89, %95 : vector<1x7x7x128xf32>
    %c0_36 = arith.constant 0 : index
    %c0_37 = arith.constant 0 : index
    %c1_38 = arith.constant 1 : index
    %c128_39 = arith.constant 128 : index
    %97 = vector.load %arg4[%c0_36, %c0_37, %c1_38, %c128_39] : memref<1x9x9x1024xf32, #tpu.memory_space<vmem>>, vector<1x9x7x128xf32>
    %98 = vector.extract_strided_slice %73 {offsets = [0, 1, 0], sizes = [1, 1, 128], strides = [1, 1, 1]} : vector<3x3x128xf32> to vector<1x1x128xf32>
    %99 = vector.shape_cast %98 : vector<1x1x128xf32> to vector<128xf32>
    %100 = vector.shape_cast %99 : vector<128xf32> to vector<1x1x1x128xf32>
    %101 = vector.extract_strided_slice %97 {offsets = [0, 0, 0, 0], sizes = [1, 7, 7, 128], strides = [1, 1, 1, 1]} : vector<1x9x7x128xf32> to vector<1x7x7x128xf32>
    %102 = vector.broadcast %100 : vector<1x1x1x128xf32> to vector<1x7x7x128xf32>
    %103 = arith.mulf %101, %102 : vector<1x7x7x128xf32>
    %104 = arith.addf %96, %103 : vector<1x7x7x128xf32>
    %105 = vector.extract_strided_slice %73 {offsets = [1, 1, 0], sizes = [1, 1, 128], strides = [1, 1, 1]} : vector<3x3x128xf32> to vector<1x1x128xf32>
    %106 = vector.shape_cast %105 : vector<1x1x128xf32> to vector<128xf32>
    %107 = vector.shape_cast %106 : vector<128xf32> to vector<1x1x1x128xf32>
    %108 = vector.extract_strided_slice %97 {offsets = [0, 1, 0, 0], sizes = [1, 7, 7, 128], strides = [1, 1, 1, 1]} : vector<1x9x7x128xf32> to vector<1x7x7x128xf32>
    %109 = vector.broadcast %107 : vector<1x1x1x128xf32> to vector<1x7x7x128xf32>
    %110 = arith.mulf %108, %109 : vector<1x7x7x128xf32>
    %111 = arith.addf %104, %110 : vector<1x7x7x128xf32>
    %112 = vector.extract_strided_slice %73 {offsets = [2, 1, 0], sizes = [1, 1, 128], strides = [1, 1, 1]} : vector<3x3x128xf32> to vector<1x1x128xf32>
    %113 = vector.shape_cast %112 : vector<1x1x128xf32> to vector<128xf32>
    %114 = vector.shape_cast %113 : vector<128xf32> to vector<1x1x1x128xf32>
    %115 = vector.extract_strided_slice %97 {offsets = [0, 2, 0, 0], sizes = [1, 7, 7, 128], strides = [1, 1, 1, 1]} : vector<1x9x7x128xf32> to vector<1x7x7x128xf32>
    %116 = vector.broadcast %114 : vector<1x1x1x128xf32> to vector<1x7x7x128xf32>
    %117 = arith.mulf %115, %116 : vector<1x7x7x128xf32>
    %118 = arith.addf %111, %117 : vector<1x7x7x128xf32>
    %c0_40 = arith.constant 0 : index
    %c0_41 = arith.constant 0 : index
    %c2_42 = arith.constant 2 : index
    %c128_43 = arith.constant 128 : index
    %119 = vector.load %arg4[%c0_40, %c0_41, %c2_42, %c128_43] : memref<1x9x9x1024xf32, #tpu.memory_space<vmem>>, vector<1x9x7x128xf32>
    %120 = vector.extract_strided_slice %73 {offsets = [0, 2, 0], sizes = [1, 1, 128], strides = [1, 1, 1]} : vector<3x3x128xf32> to vector<1x1x128xf32>
    %121 = vector.shape_cast %120 : vector<1x1x128xf32> to vector<128xf32>
    %122 = vector.shape_cast %121 : vector<128xf32> to vector<1x1x1x128xf32>
    %123 = vector.extract_strided_slice %119 {offsets = [0, 0, 0, 0], sizes = [1, 7, 7, 128], strides = [1, 1, 1, 1]} : vector<1x9x7x128xf32> to vector<1x7x7x128xf32>
    %124 = vector.broadcast %122 : vector<1x1x1x128xf32> to vector<1x7x7x128xf32>
    %125 = arith.mulf %123, %124 : vector<1x7x7x128xf32>
    %126 = arith.addf %118, %125 : vector<1x7x7x128xf32>
    %127 = vector.extract_strided_slice %73 {offsets = [1, 2, 0], sizes = [1, 1, 128], strides = [1, 1, 1]} : vector<3x3x128xf32> to vector<1x1x128xf32>
    %128 = vector.shape_cast %127 : vector<1x1x128xf32> to vector<128xf32>
    %129 = vector.shape_cast %128 : vector<128xf32> to vector<1x1x1x128xf32>
    %130 = vector.extract_strided_slice %119 {offsets = [0, 1, 0, 0], sizes = [1, 7, 7, 128], strides = [1, 1, 1, 1]} : vector<1x9x7x128xf32> to vector<1x7x7x128xf32>
    %131 = vector.broadcast %129 : vector<1x1x1x128xf32> to vector<1x7x7x128xf32>
    %132 = arith.mulf %130, %131 : vector<1x7x7x128xf32>
    %133 = arith.addf %126, %132 : vector<1x7x7x128xf32>
    %134 = vector.extract_strided_slice %73 {offsets = [2, 2, 0], sizes = [1, 1, 128], strides = [1, 1, 1]} : vector<3x3x128xf32> to vector<1x1x128xf32>
    %135 = vector.shape_cast %134 : vector<1x1x128xf32> to vector<128xf32>
    %136 = vector.shape_cast %135 : vector<128xf32> to vector<1x1x1x128xf32>
    %137 = vector.extract_strided_slice %119 {offsets = [0, 2, 0, 0], sizes = [1, 7, 7, 128], strides = [1, 1, 1, 1]} : vector<1x9x7x128xf32> to vector<1x7x7x128xf32>
    %138 = vector.broadcast %136 : vector<1x1x1x128xf32> to vector<1x7x7x128xf32>
    %139 = arith.mulf %137, %138 : vector<1x7x7x128xf32>
    %140 = arith.addf %133, %139 : vector<1x7x7x128xf32>
    %c0_44 = arith.constant 0 : index
    %c0_45 = arith.constant 0 : index
    %c0_46 = arith.constant 0 : index
    %c128_47 = arith.constant 128 : index
    %141 = vector.load %arg3[%c0_44, %c0_45, %c0_46, %c128_47] : memref<1x7x7x1024xf32, #tpu.memory_space<vmem>>, vector<1x7x7x128xf32>
    tpu.vector_store %arg3[%c0_44, %c0_45, %c0_46, %c128_47], %140 {strides = array<i32>} : memref<1x7x7x1024xf32, #tpu.memory_space<vmem>>, vector<1x7x7x128xf32>,
    %c0_48 = arith.constant 0 : index
    %c0_49 = arith.constant 0 : index
    %c256 = arith.constant 256 : index
    %142 = vector.load %arg2[%c0_48, %c0_49, %c256] : memref<3x3x1024xf32, #tpu.memory_space<vmem>>, vector<3x3x128xf32>
    %cst_50 = arith.constant 0.000000e+00 : f32
    %143 = vector.broadcast %cst_50 : f32 to vector<1x7x7x128xf32>
    %c0_51 = arith.constant 0 : index
    %c0_52 = arith.constant 0 : index
    %c0_53 = arith.constant 0 : index
    %c256_54 = arith.constant 256 : index
    %144 = vector.load %arg4[%c0_51, %c0_52, %c0_53, %c256_54] : memref<1x9x9x1024xf32, #tpu.memory_space<vmem>>, vector<1x9x7x128xf32>
    %145 = vector.extract_strided_slice %142 {offsets = [0, 0, 0], sizes = [1, 1, 128], strides = [1, 1, 1]} : vector<3x3x128xf32> to vector<1x1x128xf32>
    %146 = vector.shape_cast %145 : vector<1x1x128xf32> to vector<128xf32>
    %147 = vector.shape_cast %146 : vector<128xf32> to vector<1x1x1x128xf32>
    %148 = vector.extract_strided_slice %144 {offsets = [0, 0, 0, 0], sizes = [1, 7, 7, 128], strides = [1, 1, 1, 1]} : vector<1x9x7x128xf32> to vector<1x7x7x128xf32>
    %149 = vector.broadcast %147 : vector<1x1x1x128xf32> to vector<1x7x7x128xf32>
    %150 = arith.mulf %148, %149 : vector<1x7x7x128xf32>
    %151 = arith.addf %143, %150 : vector<1x7x7x128xf32>
    %152 = vector.extract_strided_slice %142 {offsets = [1, 0, 0], sizes = [1, 1, 128], strides = [1, 1, 1]} : vector<3x3x128xf32> to vector<1x1x128xf32>
    %153 = vector.shape_cast %152 : vector<1x1x128xf32> to vector<128xf32>
    %154 = vector.shape_cast %153 : vector<128xf32> to vector<1x1x1x128xf32>
    %155 = vector.extract_strided_slice %144 {offsets = [0, 1, 0, 0], sizes = [1, 7, 7, 128], strides = [1, 1, 1, 1]} : vector<1x9x7x128xf32> to vector<1x7x7x128xf32>
    %156 = vector.broadcast %154 : vector<1x1x1x128xf32> to vector<1x7x7x128xf32>
    %157 = arith.mulf %155, %156 : vector<1x7x7x128xf32>
    %158 = arith.addf %151, %157 : vector<1x7x7x128xf32>
    %159 = vector.extract_strided_slice %142 {offsets = [2, 0, 0], sizes = [1, 1, 128], strides = [1, 1, 1]} : vector<3x3x128xf32> to vector<1x1x128xf32>
    %160 = vector.shape_cast %159 : vector<1x1x128xf32> to vector<128xf32>
    %161 = vector.shape_cast %160 : vector<128xf32> to vector<1x1x1x128xf32>
    %162 = vector.extract_strided_slice %144 {offsets = [0, 2, 0, 0], sizes = [1, 7, 7, 128], strides = [1, 1, 1, 1]} : vector<1x9x7x128xf32> to vector<1x7x7x128xf32>
    %163 = vector.broadcast %161 : vector<1x1x1x128xf32> to vector<1x7x7x128xf32>
    %164 = arith.mulf %162, %163 : vector<1x7x7x128xf32>
    %165 = arith.addf %158, %164 : vector<1x7x7x128xf32>
    %c0_55 = arith.constant 0 : index
    %c0_56 = arith.constant 0 : index
    %c1_57 = arith.constant 1 : index
    %c256_58 = arith.constant 256 : index
    %166 = vector.load %arg4[%c0_55, %c0_56, %c1_57, %c256_58] : memref<1x9x9x1024xf32, #tpu.memory_space<vmem>>, vector<1x9x7x128xf32>
    %167 = vector.extract_strided_slice %142 {offsets = [0, 1, 0], sizes = [1, 1, 128], strides = [1, 1, 1]} : vector<3x3x128xf32> to vector<1x1x128xf32>
    %168 = vector.shape_cast %167 : vector<1x1x128xf32> to vector<128xf32>
    %169 = vector.shape_cast %168 : vector<128xf32> to vector<1x1x1x128xf32>
    %170 = vector.extract_strided_slice %166 {offsets = [0, 0, 0, 0], sizes = [1, 7, 7, 128], strides = [1, 1, 1, 1]} : vector<1x9x7x128xf32> to vector<1x7x7x128xf32>
    %171 = vector.broadcast %169 : vector<1x1x1x128xf32> to vector<1x7x7x128xf32>
    %172 = arith.mulf %170, %171 : vector<1x7x7x128xf32>
    %173 = arith.addf %165, %172 : vector<1x7x7x128xf32>
    %174 = vector.extract_strided_slice %142 {offsets = [1, 1, 0], sizes = [1, 1, 128], strides = [1, 1, 1]} : vector<3x3x128xf32> to vector<1x1x128xf32>
    %175 = vector.shape_cast %174 : vector<1x1x128xf32> to vector<128xf32>
    %176 = vector.shape_cast %175 : vector<128xf32> to vector<1x1x1x128xf32>
    %177 = vector.extract_strided_slice %166 {offsets = [0, 1, 0, 0], sizes = [1, 7, 7, 128], strides = [1, 1, 1, 1]} : vector<1x9x7x128xf32> to vector<1x7x7x128xf32>
    %178 = vector.broadcast %176 : vector<1x1x1x128xf32> to vector<1x7x7x128xf32>
    %179 = arith.mulf %177, %178 : vector<1x7x7x128xf32>
    %180 = arith.addf %173, %179 : vector<1x7x7x128xf32>
    %181 = vector.extract_strided_slice %142 {offsets = [2, 1, 0], sizes = [1, 1, 128], strides = [1, 1, 1]} : vector<3x3x128xf32> to vector<1x1x128xf32>
    %182 = vector.shape_cast %181 : vector<1x1x128xf32> to vector<128xf32>
    %183 = vector.shape_cast %182 : vector<128xf32> to vector<1x1x1x128xf32>
    %184 = vector.extract_strided_slice %166 {offsets = [0, 2, 0, 0], sizes = [1, 7, 7, 128], strides = [1, 1, 1, 1]} : vector<1x9x7x128xf32> to vector<1x7x7x128xf32>
    %185 = vector.broadcast %183 : vector<1x1x1x128xf32> to vector<1x7x7x128xf32>
    %186 = arith.mulf %184, %185 : vector<1x7x7x128xf32>
    %187 = arith.addf %180, %186 : vector<1x7x7x128xf32>
    %c0_59 = arith.constant 0 : index
    %c0_60 = arith.constant 0 : index
    %c2_61 = arith.constant 2 : index
    %c256_62 = arith.constant 256 : index
    %188 = vector.load %arg4[%c0_59, %c0_60, %c2_61, %c256_62] : memref<1x9x9x1024xf32, #tpu.memory_space<vmem>>, vector<1x9x7x128xf32>
    %189 = vector.extract_strided_slice %142 {offsets = [0, 2, 0], sizes = [1, 1, 128], strides = [1, 1, 1]} : vector<3x3x128xf32> to vector<1x1x128xf32>
    %190 = vector.shape_cast %189 : vector<1x1x128xf32> to vector<128xf32>
    %191 = vector.shape_cast %190 : vector<128xf32> to vector<1x1x1x128xf32>
    %192 = vector.extract_strided_slice %188 {offsets = [0, 0, 0, 0], sizes = [1, 7, 7, 128], strides = [1, 1, 1, 1]} : vector<1x9x7x128xf32> to vector<1x7x7x128xf32>
    %193 = vector.broadcast %191 : vector<1x1x1x128xf32> to vector<1x7x7x128xf32>
    %194 = arith.mulf %192, %193 : vector<1x7x7x128xf32>
    %195 = arith.addf %187, %194 : vector<1x7x7x128xf32>
    %196 = vector.extract_strided_slice %142 {offsets = [1, 2, 0], sizes = [1, 1, 128], strides = [1, 1, 1]} : vector<3x3x128xf32> to vector<1x1x128xf32>
    %197 = vector.shape_cast %196 : vector<1x1x128xf32> to vector<128xf32>
    %198 = vector.shape_cast %197 : vector<128xf32> to vector<1x1x1x128xf32>
    %199 = vector.extract_strided_slice %188 {offsets = [0, 1, 0, 0], sizes = [1, 7, 7, 128], strides = [1, 1, 1, 1]} : vector<1x9x7x128xf32> to vector<1x7x7x128xf32>
    %200 = vector.broadcast %198 : vector<1x1x1x128xf32> to vector<1x7x7x128xf32>
    %201 = arith.mulf %199, %200 : vector<1x7x7x128xf32>
    %202 = arith.addf %195, %201 : vector<1x7x7x128xf32>
    %203 = vector.extract_strided_slice %142 {offsets = [2, 2, 0], sizes = [1, 1, 128], strides = [1, 1, 1]} : vector<3x3x128xf32> to vector<1x1x128xf32>
    %204 = vector.shape_cast %203 : vector<1x1x128xf32> to vector<128xf32>
    %205 = vector.shape_cast %204 : vector<128xf32> to vector<1x1x1x128xf32>
    %206 = vector.extract_strided_slice %188 {offsets = [0, 2, 0, 0], sizes = [1, 7, 7, 128], strides = [1, 1, 1, 1]} : vector<1x9x7x128xf32> to vector<1x7x7x128xf32>
    %207 = vector.broadcast %205 : vector<1x1x1x128xf32> to vector<1x7x7x128xf32>
    %208 = arith.mulf %206, %207 : vector<1x7x7x128xf32>
    %209 = arith.addf %202, %208 : vector<1x7x7x128xf32>
    %c0_63 = arith.constant 0 : index
    %c0_64 = arith.constant 0 : index
    %c0_65 = arith.constant 0 : index
    %c256_66 = arith.constant 256 : index
    %210 = vector.load %arg3[%c0_63, %c0_64, %c0_65, %c256_66] : memref<1x7x7x1024xf32, #tpu.memory_space<vmem>>, vector<1x7x7x128xf32>
    tpu.vector_store %arg3[%c0_63, %c0_64, %c0_65, %c256_66], %209 {strides = array<i32>} : memref<1x7x7x1024xf32, #tpu.memory_space<vmem>>, vector<1x7x7x128xf32>,
    %c0_67 = arith.constant 0 : index
    %c0_68 = arith.constant 0 : index
    %c384 = arith.constant 384 : index
    %211 = vector.load %arg2[%c0_67, %c0_68, %c384] : memref<3x3x1024xf32, #tpu.memory_space<vmem>>, vector<3x3x128xf32>
    %cst_69 = arith.constant 0.000000e+00 : f32
    %212 = vector.broadcast %cst_69 : f32 to vector<1x7x7x128xf32>
    %c0_70 = arith.constant 0 : index
    %c0_71 = arith.constant 0 : index
    %c0_72 = arith.constant 0 : index
    %c384_73 = arith.constant 384 : index
    %213 = vector.load %arg4[%c0_70, %c0_71, %c0_72, %c384_73] : memref<1x9x9x1024xf32, #tpu.memory_space<vmem>>, vector<1x9x7x128xf32>
    %214 = vector.extract_strided_slice %211 {offsets = [0, 0, 0], sizes = [1, 1, 128], strides = [1, 1, 1]} : vector<3x3x128xf32> to vector<1x1x128xf32>
    %215 = vector.shape_cast %214 : vector<1x1x128xf32> to vector<128xf32>
    %216 = vector.shape_cast %215 : vector<128xf32> to vector<1x1x1x128xf32>
    %217 = vector.extract_strided_slice %213 {offsets = [0, 0, 0, 0], sizes = [1, 7, 7, 128], strides = [1, 1, 1, 1]} : vector<1x9x7x128xf32> to vector<1x7x7x128xf32>
    %218 = vector.broadcast %216 : vector<1x1x1x128xf32> to vector<1x7x7x128xf32>
    %219 = arith.mulf %217, %218 : vector<1x7x7x128xf32>
    %220 = arith.addf %212, %219 : vector<1x7x7x128xf32>
    %221 = vector.extract_strided_slice %211 {offsets = [1, 0, 0], sizes = [1, 1, 128], strides = [1, 1, 1]} : vector<3x3x128xf32> to vector<1x1x128xf32>
    %222 = vector.shape_cast %221 : vector<1x1x128xf32> to vector<128xf32>
    %223 = vector.shape_cast %222 : vector<128xf32> to vector<1x1x1x128xf32>
    %224 = vector.extract_strided_slice %213 {offsets = [0, 1, 0, 0], sizes = [1, 7, 7, 128], strides = [1, 1, 1, 1]} : vector<1x9x7x128xf32> to vector<1x7x7x128xf32>
    %225 = vector.broadcast %223 : vector<1x1x1x128xf32> to vector<1x7x7x128xf32>
    %226 = arith.mulf %224, %225 : vector<1x7x7x128xf32>
    %227 = arith.addf %220, %226 : vector<1x7x7x128xf32>
    %228 = vector.extract_strided_slice %211 {offsets = [2, 0, 0], sizes = [1, 1, 128], strides = [1, 1, 1]} : vector<3x3x128xf32> to vector<1x1x128xf32>
    %229 = vector.shape_cast %228 : vector<1x1x128xf32> to vector<128xf32>
    %230 = vector.shape_cast %229 : vector<128xf32> to vector<1x1x1x128xf32>
    %231 = vector.extract_strided_slice %213 {offsets = [0, 2, 0, 0], sizes = [1, 7, 7, 128], strides = [1, 1, 1, 1]} : vector<1x9x7x128xf32> to vector<1x7x7x128xf32>
    %232 = vector.broadcast %230 : vector<1x1x1x128xf32> to vector<1x7x7x128xf32>
    %233 = arith.mulf %231, %232 : vector<1x7x7x128xf32>
    %234 = arith.addf %227, %233 : vector<1x7x7x128xf32>
    %c0_74 = arith.constant 0 : index
    %c0_75 = arith.constant 0 : index
    %c1_76 = arith.constant 1 : index
    %c384_77 = arith.constant 384 : index
    %235 = vector.load %arg4[%c0_74, %c0_75, %c1_76, %c384_77] : memref<1x9x9x1024xf32, #tpu.memory_space<vmem>>, vector<1x9x7x128xf32>
    %236 = vector.extract_strided_slice %211 {offsets = [0, 1, 0], sizes = [1, 1, 128], strides = [1, 1, 1]} : vector<3x3x128xf32> to vector<1x1x128xf32>
    %237 = vector.shape_cast %236 : vector<1x1x128xf32> to vector<128xf32>
    %238 = vector.shape_cast %237 : vector<128xf32> to vector<1x1x1x128xf32>
    %239 = vector.extract_strided_slice %235 {offsets = [0, 0, 0, 0], sizes = [1, 7, 7, 128], strides = [1, 1, 1, 1]} : vector<1x9x7x128xf32> to vector<1x7x7x128xf32>
    %240 = vector.broadcast %238 : vector<1x1x1x128xf32> to vector<1x7x7x128xf32>
    %241 = arith.mulf %239, %240 : vector<1x7x7x128xf32>
    %242 = arith.addf %234, %241 : vector<1x7x7x128xf32>
    %243 = vector.extract_strided_slice %211 {offsets = [1, 1, 0], sizes = [1, 1, 128], strides = [1, 1, 1]} : vector<3x3x128xf32> to vector<1x1x128xf32>
    %244 = vector.shape_cast %243 : vector<1x1x128xf32> to vector<128xf32>
    %245 = vector.shape_cast %244 : vector<128xf32> to vector<1x1x1x128xf32>
    %246 = vector.extract_strided_slice %235 {offsets = [0, 1, 0, 0], sizes = [1, 7, 7, 128], strides = [1, 1, 1, 1]} : vector<1x9x7x128xf32> to vector<1x7x7x128xf32>
    %247 = vector.broadcast %245 : vector<1x1x1x128xf32> to vector<1x7x7x128xf32>
    %248 = arith.mulf %246, %247 : vector<1x7x7x128xf32>
    %249 = arith.addf %242, %248 : vector<1x7x7x128xf32>
    %250 = vector.extract_strided_slice %211 {offsets = [2, 1, 0], sizes = [1, 1, 128], strides = [1, 1, 1]} : vector<3x3x128xf32> to vector<1x1x128xf32>
    %251 = vector.shape_cast %250 : vector<1x1x128xf32> to vector<128xf32>
    %252 = vector.shape_cast %251 : vector<128xf32> to vector<1x1x1x128xf32>
    %253 = vector.extract_strided_slice %235 {offsets = [0, 2, 0, 0], sizes = [1, 7, 7, 128], strides = [1, 1, 1, 1]} : vector<1x9x7x128xf32> to vector<1x7x7x128xf32>
    %254 = vector.broadcast %252 : vector<1x1x1x128xf32> to vector<1x7x7x128xf32>
    %255 = arith.mulf %253, %254 : vector<1x7x7x128xf32>
    %256 = arith.addf %249, %255 : vector<1x7x7x128xf32>
    %c0_78 = arith.constant 0 : index
    %c0_79 = arith.constant 0 : index
    %c2_80 = arith.constant 2 : index
    %c384_81 = arith.constant 384 : index
    %257 = vector.load %arg4[%c0_78, %c0_79, %c2_80, %c384_81] : memref<1x9x9x1024xf32, #tpu.memory_space<vmem>>, vector<1x9x7x128xf32>
    %258 = vector.extract_strided_slice %211 {offsets = [0, 2, 0], sizes = [1, 1, 128], strides = [1, 1, 1]} : vector<3x3x128xf32> to vector<1x1x128xf32>
    %259 = vector.shape_cast %258 : vector<1x1x128xf32> to vector<128xf32>
    %260 = vector.shape_cast %259 : vector<128xf32> to vector<1x1x1x128xf32>
    %261 = vector.extract_strided_slice %257 {offsets = [0, 0, 0, 0], sizes = [1, 7, 7, 128], strides = [1, 1, 1, 1]} : vector<1x9x7x128xf32> to vector<1x7x7x128xf32>
    %262 = vector.broadcast %260 : vector<1x1x1x128xf32> to vector<1x7x7x128xf32>
    %263 = arith.mulf %261, %262 : vector<1x7x7x128xf32>
    %264 = arith.addf %256, %263 : vector<1x7x7x128xf32>
    %265 = vector.extract_strided_slice %211 {offsets = [1, 2, 0], sizes = [1, 1, 128], strides = [1, 1, 1]} : vector<3x3x128xf32> to vector<1x1x128xf32>
    %266 = vector.shape_cast %265 : vector<1x1x128xf32> to vector<128xf32>
    %267 = vector.shape_cast %266 : vector<128xf32> to vector<1x1x1x128xf32>
    %268 = vector.extract_strided_slice %257 {offsets = [0, 1, 0, 0], sizes = [1, 7, 7, 128], strides = [1, 1, 1, 1]} : vector<1x9x7x128xf32> to vector<1x7x7x128xf32>
    %269 = vector.broadcast %267 : vector<1x1x1x128xf32> to vector<1x7x7x128xf32>
    %270 = arith.mulf %268, %269 : vector<1x7x7x128xf32>
    %271 = arith.addf %264, %270 : vector<1x7x7x128xf32>
    %272 = vector.extract_strided_slice %211 {offsets = [2, 2, 0], sizes = [1, 1, 128], strides = [1, 1, 1]} : vector<3x3x128xf32> to vector<1x1x128xf32>
    %273 = vector.shape_cast %272 : vector<1x1x128xf32> to vector<128xf32>
    %274 = vector.shape_cast %273 : vector<128xf32> to vector<1x1x1x128xf32>
    %275 = vector.extract_strided_slice %257 {offsets = [0, 2, 0, 0], sizes = [1, 7, 7, 128], strides = [1, 1, 1, 1]} : vector<1x9x7x128xf32> to vector<1x7x7x128xf32>
    %276 = vector.broadcast %274 : vector<1x1x1x128xf32> to vector<1x7x7x128xf32>
    %277 = arith.mulf %275, %276 : vector<1x7x7x128xf32>
    %278 = arith.addf %271, %277 : vector<1x7x7x128xf32>
    %c0_82 = arith.constant 0 : index
    %c0_83 = arith.constant 0 : index
    %c0_84 = arith.constant 0 : index
    %c384_85 = arith.constant 384 : index
    %279 = vector.load %arg3[%c0_82, %c0_83, %c0_84, %c384_85] : memref<1x7x7x1024xf32, #tpu.memory_space<vmem>>, vector<1x7x7x128xf32>
    tpu.vector_store %arg3[%c0_82, %c0_83, %c0_84, %c384_85], %278 {strides = array<i32>} : memref<1x7x7x1024xf32, #tpu.memory_space<vmem>>, vector<1x7x7x128xf32>,
    %c0_86 = arith.constant 0 : index
    %c0_87 = arith.constant 0 : index
    %c512 = arith.constant 512 : index
    %280 = vector.load %arg2[%c0_86, %c0_87, %c512] : memref<3x3x1024xf32, #tpu.memory_space<vmem>>, vector<3x3x128xf32>
    %cst_88 = arith.constant 0.000000e+00 : f32
    %281 = vector.broadcast %cst_88 : f32 to vector<1x7x7x128xf32>
    %c0_89 = arith.constant 0 : index
    %c0_90 = arith.constant 0 : index
    %c0_91 = arith.constant 0 : index
    %c512_92 = arith.constant 512 : index
    %282 = vector.load %arg4[%c0_89, %c0_90, %c0_91, %c512_92] : memref<1x9x9x1024xf32, #tpu.memory_space<vmem>>, vector<1x9x7x128xf32>
    %283 = vector.extract_strided_slice %280 {offsets = [0, 0, 0], sizes = [1, 1, 128], strides = [1, 1, 1]} : vector<3x3x128xf32> to vector<1x1x128xf32>
    %284 = vector.shape_cast %283 : vector<1x1x128xf32> to vector<128xf32>
    %285 = vector.shape_cast %284 : vector<128xf32> to vector<1x1x1x128xf32>
    %286 = vector.extract_strided_slice %282 {offsets = [0, 0, 0, 0], sizes = [1, 7, 7, 128], strides = [1, 1, 1, 1]} : vector<1x9x7x128xf32> to vector<1x7x7x128xf32>
    %287 = vector.broadcast %285 : vector<1x1x1x128xf32> to vector<1x7x7x128xf32>
    %288 = arith.mulf %286, %287 : vector<1x7x7x128xf32>
    %289 = arith.addf %281, %288 : vector<1x7x7x128xf32>
    %290 = vector.extract_strided_slice %280 {offsets = [1, 0, 0], sizes = [1, 1, 128], strides = [1, 1, 1]} : vector<3x3x128xf32> to vector<1x1x128xf32>
    %291 = vector.shape_cast %290 : vector<1x1x128xf32> to vector<128xf32>
    %292 = vector.shape_cast %291 : vector<128xf32> to vector<1x1x1x128xf32>
    %293 = vector.extract_strided_slice %282 {offsets = [0, 1, 0, 0], sizes = [1, 7, 7, 128], strides = [1, 1, 1, 1]} : vector<1x9x7x128xf32> to vector<1x7x7x128xf32>
    %294 = vector.broadcast %292 : vector<1x1x1x128xf32> to vector<1x7x7x128xf32>
    %295 = arith.mulf %293, %294 : vector<1x7x7x128xf32>
    %296 = arith.addf %289, %295 : vector<1x7x7x128xf32>
    %297 = vector.extract_strided_slice %280 {offsets = [2, 0, 0], sizes = [1, 1, 128], strides = [1, 1, 1]} : vector<3x3x128xf32> to vector<1x1x128xf32>
    %298 = vector.shape_cast %297 : vector<1x1x128xf32> to vector<128xf32>
    %299 = vector.shape_cast %298 : vector<128xf32> to vector<1x1x1x128xf32>
    %300 = vector.extract_strided_slice %282 {offsets = [0, 2, 0, 0], sizes = [1, 7, 7, 128], strides = [1, 1, 1, 1]} : vector<1x9x7x128xf32> to vector<1x7x7x128xf32>
    %301 = vector.broadcast %299 : vector<1x1x1x128xf32> to vector<1x7x7x128xf32>
    %302 = arith.mulf %300, %301 : vector<1x7x7x128xf32>
    %303 = arith.addf %296, %302 : vector<1x7x7x128xf32>
    %c0_93 = arith.constant 0 : index
    %c0_94 = arith.constant 0 : index
    %c1_95 = arith.constant 1 : index
    %c512_96 = arith.constant 512 : index
    %304 = vector.load %arg4[%c0_93, %c0_94, %c1_95, %c512_96] : memref<1x9x9x1024xf32, #tpu.memory_space<vmem>>, vector<1x9x7x128xf32>
    %305 = vector.extract_strided_slice %280 {offsets = [0, 1, 0], sizes = [1, 1, 128], strides = [1, 1, 1]} : vector<3x3x128xf32> to vector<1x1x128xf32>
    %306 = vector.shape_cast %305 : vector<1x1x128xf32> to vector<128xf32>
    %307 = vector.shape_cast %306 : vector<128xf32> to vector<1x1x1x128xf32>
    %308 = vector.extract_strided_slice %304 {offsets = [0, 0, 0, 0], sizes = [1, 7, 7, 128], strides = [1, 1, 1, 1]} : vector<1x9x7x128xf32> to vector<1x7x7x128xf32>
    %309 = vector.broadcast %307 : vector<1x1x1x128xf32> to vector<1x7x7x128xf32>
    %310 = arith.mulf %308, %309 : vector<1x7x7x128xf32>
    %311 = arith.addf %303, %310 : vector<1x7x7x128xf32>
    %312 = vector.extract_strided_slice %280 {offsets = [1, 1, 0], sizes = [1, 1, 128], strides = [1, 1, 1]} : vector<3x3x128xf32> to vector<1x1x128xf32>
    %313 = vector.shape_cast %312 : vector<1x1x128xf32> to vector<128xf32>
    %314 = vector.shape_cast %313 : vector<128xf32> to vector<1x1x1x128xf32>
    %315 = vector.extract_strided_slice %304 {offsets = [0, 1, 0, 0], sizes = [1, 7, 7, 128], strides = [1, 1, 1, 1]} : vector<1x9x7x128xf32> to vector<1x7x7x128xf32>
    %316 = vector.broadcast %314 : vector<1x1x1x128xf32> to vector<1x7x7x128xf32>
    %317 = arith.mulf %315, %316 : vector<1x7x7x128xf32>
    %318 = arith.addf %311, %317 : vector<1x7x7x128xf32>
    %319 = vector.extract_strided_slice %280 {offsets = [2, 1, 0], sizes = [1, 1, 128], strides = [1, 1, 1]} : vector<3x3x128xf32> to vector<1x1x128xf32>
    %320 = vector.shape_cast %319 : vector<1x1x128xf32> to vector<128xf32>
    %321 = vector.shape_cast %320 : vector<128xf32> to vector<1x1x1x128xf32>
    %322 = vector.extract_strided_slice %304 {offsets = [0, 2, 0, 0], sizes = [1, 7, 7, 128], strides = [1, 1, 1, 1]} : vector<1x9x7x128xf32> to vector<1x7x7x128xf32>
    %323 = vector.broadcast %321 : vector<1x1x1x128xf32> to vector<1x7x7x128xf32>
    %324 = arith.mulf %322, %323 : vector<1x7x7x128xf32>
    %325 = arith.addf %318, %324 : vector<1x7x7x128xf32>
    %c0_97 = arith.constant 0 : index
    %c0_98 = arith.constant 0 : index
    %c2_99 = arith.constant 2 : index
    %c512_100 = arith.constant 512 : index
    %326 = vector.load %arg4[%c0_97, %c0_98, %c2_99, %c512_100] : memref<1x9x9x1024xf32, #tpu.memory_space<vmem>>, vector<1x9x7x128xf32>
    %327 = vector.extract_strided_slice %280 {offsets = [0, 2, 0], sizes = [1, 1, 128], strides = [1, 1, 1]} : vector<3x3x128xf32> to vector<1x1x128xf32>
    %328 = vector.shape_cast %327 : vector<1x1x128xf32> to vector<128xf32>
    %329 = vector.shape_cast %328 : vector<128xf32> to vector<1x1x1x128xf32>
    %330 = vector.extract_strided_slice %326 {offsets = [0, 0, 0, 0], sizes = [1, 7, 7, 128], strides = [1, 1, 1, 1]} : vector<1x9x7x128xf32> to vector<1x7x7x128xf32>
    %331 = vector.broadcast %329 : vector<1x1x1x128xf32> to vector<1x7x7x128xf32>
    %332 = arith.mulf %330, %331 : vector<1x7x7x128xf32>
    %333 = arith.addf %325, %332 : vector<1x7x7x128xf32>
    %334 = vector.extract_strided_slice %280 {offsets = [1, 2, 0], sizes = [1, 1, 128], strides = [1, 1, 1]} : vector<3x3x128xf32> to vector<1x1x128xf32>
    %335 = vector.shape_cast %334 : vector<1x1x128xf32> to vector<128xf32>
    %336 = vector.shape_cast %335 : vector<128xf32> to vector<1x1x1x128xf32>
    %337 = vector.extract_strided_slice %326 {offsets = [0, 1, 0, 0], sizes = [1, 7, 7, 128], strides = [1, 1, 1, 1]} : vector<1x9x7x128xf32> to vector<1x7x7x128xf32>
    %338 = vector.broadcast %336 : vector<1x1x1x128xf32> to vector<1x7x7x128xf32>
    %339 = arith.mulf %337, %338 : vector<1x7x7x128xf32>
    %340 = arith.addf %333, %339 : vector<1x7x7x128xf32>
    %341 = vector.extract_strided_slice %280 {offsets = [2, 2, 0], sizes = [1, 1, 128], strides = [1, 1, 1]} : vector<3x3x128xf32> to vector<1x1x128xf32>
    %342 = vector.shape_cast %341 : vector<1x1x128xf32> to vector<128xf32>
    %343 = vector.shape_cast %342 : vector<128xf32> to vector<1x1x1x128xf32>
    %344 = vector.extract_strided_slice %326 {offsets = [0, 2, 0, 0], sizes = [1, 7, 7, 128], strides = [1, 1, 1, 1]} : vector<1x9x7x128xf32> to vector<1x7x7x128xf32>
    %345 = vector.broadcast %343 : vector<1x1x1x128xf32> to vector<1x7x7x128xf32>
    %346 = arith.mulf %344, %345 : vector<1x7x7x128xf32>
    %347 = arith.addf %340, %346 : vector<1x7x7x128xf32>
    %c0_101 = arith.constant 0 : index
    %c0_102 = arith.constant 0 : index
    %c0_103 = arith.constant 0 : index
    %c512_104 = arith.constant 512 : index
    %348 = vector.load %arg3[%c0_101, %c0_102, %c0_103, %c512_104] : memref<1x7x7x1024xf32, #tpu.memory_space<vmem>>, vector<1x7x7x128xf32>
    tpu.vector_store %arg3[%c0_101, %c0_102, %c0_103, %c512_104], %347 {strides = array<i32>} : memref<1x7x7x1024xf32, #tpu.memory_space<vmem>>, vector<1x7x7x128xf32>,
    %c0_105 = arith.constant 0 : index
    %c0_106 = arith.constant 0 : index
    %c640 = arith.constant 640 : index
    %349 = vector.load %arg2[%c0_105, %c0_106, %c640] : memref<3x3x1024xf32, #tpu.memory_space<vmem>>, vector<3x3x128xf32>
    %cst_107 = arith.constant 0.000000e+00 : f32
    %350 = vector.broadcast %cst_107 : f32 to vector<1x7x7x128xf32>
    %c0_108 = arith.constant 0 : index
    %c0_109 = arith.constant 0 : index
    %c0_110 = arith.constant 0 : index
    %c640_111 = arith.constant 640 : index
    %351 = vector.load %arg4[%c0_108, %c0_109, %c0_110, %c640_111] : memref<1x9x9x1024xf32, #tpu.memory_space<vmem>>, vector<1x9x7x128xf32>
    %352 = vector.extract_strided_slice %349 {offsets = [0, 0, 0], sizes = [1, 1, 128], strides = [1, 1, 1]} : vector<3x3x128xf32> to vector<1x1x128xf32>
    %353 = vector.shape_cast %352 : vector<1x1x128xf32> to vector<128xf32>
    %354 = vector.shape_cast %353 : vector<128xf32> to vector<1x1x1x128xf32>
    %355 = vector.extract_strided_slice %351 {offsets = [0, 0, 0, 0], sizes = [1, 7, 7, 128], strides = [1, 1, 1, 1]} : vector<1x9x7x128xf32> to vector<1x7x7x128xf32>
    %356 = vector.broadcast %354 : vector<1x1x1x128xf32> to vector<1x7x7x128xf32>
    %357 = arith.mulf %355, %356 : vector<1x7x7x128xf32>
    %358 = arith.addf %350, %357 : vector<1x7x7x128xf32>
    %359 = vector.extract_strided_slice %349 {offsets = [1, 0, 0], sizes = [1, 1, 128], strides = [1, 1, 1]} : vector<3x3x128xf32> to vector<1x1x128xf32>
    %360 = vector.shape_cast %359 : vector<1x1x128xf32> to vector<128xf32>
    %361 = vector.shape_cast %360 : vector<128xf32> to vector<1x1x1x128xf32>
    %362 = vector.extract_strided_slice %351 {offsets = [0, 1, 0, 0], sizes = [1, 7, 7, 128], strides = [1, 1, 1, 1]} : vector<1x9x7x128xf32> to vector<1x7x7x128xf32>
    %363 = vector.broadcast %361 : vector<1x1x1x128xf32> to vector<1x7x7x128xf32>
    %364 = arith.mulf %362, %363 : vector<1x7x7x128xf32>
    %365 = arith.addf %358, %364 : vector<1x7x7x128xf32>
    %366 = vector.extract_strided_slice %349 {offsets = [2, 0, 0], sizes = [1, 1, 128], strides = [1, 1, 1]} : vector<3x3x128xf32> to vector<1x1x128xf32>
    %367 = vector.shape_cast %366 : vector<1x1x128xf32> to vector<128xf32>
    %368 = vector.shape_cast %367 : vector<128xf32> to vector<1x1x1x128xf32>
    %369 = vector.extract_strided_slice %351 {offsets = [0, 2, 0, 0], sizes = [1, 7, 7, 128], strides = [1, 1, 1, 1]} : vector<1x9x7x128xf32> to vector<1x7x7x128xf32>
    %370 = vector.broadcast %368 : vector<1x1x1x128xf32> to vector<1x7x7x128xf32>
    %371 = arith.mulf %369, %370 : vector<1x7x7x128xf32>
    %372 = arith.addf %365, %371 : vector<1x7x7x128xf32>
    %c0_112 = arith.constant 0 : index
    %c0_113 = arith.constant 0 : index
    %c1_114 = arith.constant 1 : index
    %c640_115 = arith.constant 640 : index
    %373 = vector.load %arg4[%c0_112, %c0_113, %c1_114, %c640_115] : memref<1x9x9x1024xf32, #tpu.memory_space<vmem>>, vector<1x9x7x128xf32>
    %374 = vector.extract_strided_slice %349 {offsets = [0, 1, 0], sizes = [1, 1, 128], strides = [1, 1, 1]} : vector<3x3x128xf32> to vector<1x1x128xf32>
    %375 = vector.shape_cast %374 : vector<1x1x128xf32> to vector<128xf32>
    %376 = vector.shape_cast %375 : vector<128xf32> to vector<1x1x1x128xf32>
    %377 = vector.extract_strided_slice %373 {offsets = [0, 0, 0, 0], sizes = [1, 7, 7, 128], strides = [1, 1, 1, 1]} : vector<1x9x7x128xf32> to vector<1x7x7x128xf32>
    %378 = vector.broadcast %376 : vector<1x1x1x128xf32> to vector<1x7x7x128xf32>
    %379 = arith.mulf %377, %378 : vector<1x7x7x128xf32>
    %380 = arith.addf %372, %379 : vector<1x7x7x128xf32>
    %381 = vector.extract_strided_slice %349 {offsets = [1, 1, 0], sizes = [1, 1, 128], strides = [1, 1, 1]} : vector<3x3x128xf32> to vector<1x1x128xf32>
    %382 = vector.shape_cast %381 : vector<1x1x128xf32> to vector<128xf32>
    %383 = vector.shape_cast %382 : vector<128xf32> to vector<1x1x1x128xf32>
    %384 = vector.extract_strided_slice %373 {offsets = [0, 1, 0, 0], sizes = [1, 7, 7, 128], strides = [1, 1, 1, 1]} : vector<1x9x7x128xf32> to vector<1x7x7x128xf32>
    %385 = vector.broadcast %383 : vector<1x1x1x128xf32> to vector<1x7x7x128xf32>
    %386 = arith.mulf %384, %385 : vector<1x7x7x128xf32>
    %387 = arith.addf %380, %386 : vector<1x7x7x128xf32>
    %388 = vector.extract_strided_slice %349 {offsets = [2, 1, 0], sizes = [1, 1, 128], strides = [1, 1, 1]} : vector<3x3x128xf32> to vector<1x1x128xf32>
    %389 = vector.shape_cast %388 : vector<1x1x128xf32> to vector<128xf32>
    %390 = vector.shape_cast %389 : vector<128xf32> to vector<1x1x1x128xf32>
    %391 = vector.extract_strided_slice %373 {offsets = [0, 2, 0, 0], sizes = [1, 7, 7, 128], strides = [1, 1, 1, 1]} : vector<1x9x7x128xf32> to vector<1x7x7x128xf32>
    %392 = vector.broadcast %390 : vector<1x1x1x128xf32> to vector<1x7x7x128xf32>
    %393 = arith.mulf %391, %392 : vector<1x7x7x128xf32>
    %394 = arith.addf %387, %393 : vector<1x7x7x128xf32>
    %c0_116 = arith.constant 0 : index
    %c0_117 = arith.constant 0 : index
    %c2_118 = arith.constant 2 : index
    %c640_119 = arith.constant 640 : index
    %395 = vector.load %arg4[%c0_116, %c0_117, %c2_118, %c640_119] : memref<1x9x9x1024xf32, #tpu.memory_space<vmem>>, vector<1x9x7x128xf32>
    %396 = vector.extract_strided_slice %349 {offsets = [0, 2, 0], sizes = [1, 1, 128], strides = [1, 1, 1]} : vector<3x3x128xf32> to vector<1x1x128xf32>
    %397 = vector.shape_cast %396 : vector<1x1x128xf32> to vector<128xf32>
    %398 = vector.shape_cast %397 : vector<128xf32> to vector<1x1x1x128xf32>
    %399 = vector.extract_strided_slice %395 {offsets = [0, 0, 0, 0], sizes = [1, 7, 7, 128], strides = [1, 1, 1, 1]} : vector<1x9x7x128xf32> to vector<1x7x7x128xf32>
    %400 = vector.broadcast %398 : vector<1x1x1x128xf32> to vector<1x7x7x128xf32>
    %401 = arith.mulf %399, %400 : vector<1x7x7x128xf32>
    %402 = arith.addf %394, %401 : vector<1x7x7x128xf32>
    %403 = vector.extract_strided_slice %349 {offsets = [1, 2, 0], sizes = [1, 1, 128], strides = [1, 1, 1]} : vector<3x3x128xf32> to vector<1x1x128xf32>
    %404 = vector.shape_cast %403 : vector<1x1x128xf32> to vector<128xf32>
    %405 = vector.shape_cast %404 : vector<128xf32> to vector<1x1x1x128xf32>
    %406 = vector.extract_strided_slice %395 {offsets = [0, 1, 0, 0], sizes = [1, 7, 7, 128], strides = [1, 1, 1, 1]} : vector<1x9x7x128xf32> to vector<1x7x7x128xf32>
    %407 = vector.broadcast %405 : vector<1x1x1x128xf32> to vector<1x7x7x128xf32>
    %408 = arith.mulf %406, %407 : vector<1x7x7x128xf32>
    %409 = arith.addf %402, %408 : vector<1x7x7x128xf32>
    %410 = vector.extract_strided_slice %349 {offsets = [2, 2, 0], sizes = [1, 1, 128], strides = [1, 1, 1]} : vector<3x3x128xf32> to vector<1x1x128xf32>
    %411 = vector.shape_cast %410 : vector<1x1x128xf32> to vector<128xf32>
    %412 = vector.shape_cast %411 : vector<128xf32> to vector<1x1x1x128xf32>
    %413 = vector.extract_strided_slice %395 {offsets = [0, 2, 0, 0], sizes = [1, 7, 7, 128], strides = [1, 1, 1, 1]} : vector<1x9x7x128xf32> to vector<1x7x7x128xf32>
    %414 = vector.broadcast %412 : vector<1x1x1x128xf32> to vector<1x7x7x128xf32>
    %415 = arith.mulf %413, %414 : vector<1x7x7x128xf32>
    %416 = arith.addf %409, %415 : vector<1x7x7x128xf32>
    %c0_120 = arith.constant 0 : index
    %c0_121 = arith.constant 0 : index
    %c0_122 = arith.constant 0 : index
    %c640_123 = arith.constant 640 : index
    %417 = vector.load %arg3[%c0_120, %c0_121, %c0_122, %c640_123] : memref<1x7x7x1024xf32, #tpu.memory_space<vmem>>, vector<1x7x7x128xf32>
    tpu.vector_store %arg3[%c0_120, %c0_121, %c0_122, %c640_123], %416 {strides = array<i32>} : memref<1x7x7x1024xf32, #tpu.memory_space<vmem>>, vector<1x7x7x128xf32>,
    %c0_124 = arith.constant 0 : index
    %c0_125 = arith.constant 0 : index
    %c768 = arith.constant 768 : index
    %418 = vector.load %arg2[%c0_124, %c0_125, %c768] : memref<3x3x1024xf32, #tpu.memory_space<vmem>>, vector<3x3x128xf32>
    %cst_126 = arith.constant 0.000000e+00 : f32
    %419 = vector.broadcast %cst_126 : f32 to vector<1x7x7x128xf32>
    %c0_127 = arith.constant 0 : index
    %c0_128 = arith.constant 0 : index
    %c0_129 = arith.constant 0 : index
    %c768_130 = arith.constant 768 : index
    %420 = vector.load %arg4[%c0_127, %c0_128, %c0_129, %c768_130] : memref<1x9x9x1024xf32, #tpu.memory_space<vmem>>, vector<1x9x7x128xf32>
    %421 = vector.extract_strided_slice %418 {offsets = [0, 0, 0], sizes = [1, 1, 128], strides = [1, 1, 1]} : vector<3x3x128xf32> to vector<1x1x128xf32>
    %422 = vector.shape_cast %421 : vector<1x1x128xf32> to vector<128xf32>
    %423 = vector.shape_cast %422 : vector<128xf32> to vector<1x1x1x128xf32>
    %424 = vector.extract_strided_slice %420 {offsets = [0, 0, 0, 0], sizes = [1, 7, 7, 128], strides = [1, 1, 1, 1]} : vector<1x9x7x128xf32> to vector<1x7x7x128xf32>
    %425 = vector.broadcast %423 : vector<1x1x1x128xf32> to vector<1x7x7x128xf32>
    %426 = arith.mulf %424, %425 : vector<1x7x7x128xf32>
    %427 = arith.addf %419, %426 : vector<1x7x7x128xf32>
    %428 = vector.extract_strided_slice %418 {offsets = [1, 0, 0], sizes = [1, 1, 128], strides = [1, 1, 1]} : vector<3x3x128xf32> to vector<1x1x128xf32>
    %429 = vector.shape_cast %428 : vector<1x1x128xf32> to vector<128xf32>
    %430 = vector.shape_cast %429 : vector<128xf32> to vector<1x1x1x128xf32>
    %431 = vector.extract_strided_slice %420 {offsets = [0, 1, 0, 0], sizes = [1, 7, 7, 128], strides = [1, 1, 1, 1]} : vector<1x9x7x128xf32> to vector<1x7x7x128xf32>
    %432 = vector.broadcast %430 : vector<1x1x1x128xf32> to vector<1x7x7x128xf32>
    %433 = arith.mulf %431, %432 : vector<1x7x7x128xf32>
    %434 = arith.addf %427, %433 : vector<1x7x7x128xf32>
    %435 = vector.extract_strided_slice %418 {offsets = [2, 0, 0], sizes = [1, 1, 128], strides = [1, 1, 1]} : vector<3x3x128xf32> to vector<1x1x128xf32>
    %436 = vector.shape_cast %435 : vector<1x1x128xf32> to vector<128xf32>
    %437 = vector.shape_cast %436 : vector<128xf32> to vector<1x1x1x128xf32>
    %438 = vector.extract_strided_slice %420 {offsets = [0, 2, 0, 0], sizes = [1, 7, 7, 128], strides = [1, 1, 1, 1]} : vector<1x9x7x128xf32> to vector<1x7x7x128xf32>
    %439 = vector.broadcast %437 : vector<1x1x1x128xf32> to vector<1x7x7x128xf32>
    %440 = arith.mulf %438, %439 : vector<1x7x7x128xf32>
    %441 = arith.addf %434, %440 : vector<1x7x7x128xf32>
    %c0_131 = arith.constant 0 : index
    %c0_132 = arith.constant 0 : index
    %c1_133 = arith.constant 1 : index
    %c768_134 = arith.constant 768 : index
    %442 = vector.load %arg4[%c0_131, %c0_132, %c1_133, %c768_134] : memref<1x9x9x1024xf32, #tpu.memory_space<vmem>>, vector<1x9x7x128xf32>
    %443 = vector.extract_strided_slice %418 {offsets = [0, 1, 0], sizes = [1, 1, 128], strides = [1, 1, 1]} : vector<3x3x128xf32> to vector<1x1x128xf32>
    %444 = vector.shape_cast %443 : vector<1x1x128xf32> to vector<128xf32>
    %445 = vector.shape_cast %444 : vector<128xf32> to vector<1x1x1x128xf32>
    %446 = vector.extract_strided_slice %442 {offsets = [0, 0, 0, 0], sizes = [1, 7, 7, 128], strides = [1, 1, 1, 1]} : vector<1x9x7x128xf32> to vector<1x7x7x128xf32>
    %447 = vector.broadcast %445 : vector<1x1x1x128xf32> to vector<1x7x7x128xf32>
    %448 = arith.mulf %446, %447 : vector<1x7x7x128xf32>
    %449 = arith.addf %441, %448 : vector<1x7x7x128xf32>
    %450 = vector.extract_strided_slice %418 {offsets = [1, 1, 0], sizes = [1, 1, 128], strides = [1, 1, 1]} : vector<3x3x128xf32> to vector<1x1x128xf32>
    %451 = vector.shape_cast %450 : vector<1x1x128xf32> to vector<128xf32>
    %452 = vector.shape_cast %451 : vector<128xf32> to vector<1x1x1x128xf32>
    %453 = vector.extract_strided_slice %442 {offsets = [0, 1, 0, 0], sizes = [1, 7, 7, 128], strides = [1, 1, 1, 1]} : vector<1x9x7x128xf32> to vector<1x7x7x128xf32>
    %454 = vector.broadcast %452 : vector<1x1x1x128xf32> to vector<1x7x7x128xf32>
    %455 = arith.mulf %453, %454 : vector<1x7x7x128xf32>
    %456 = arith.addf %449, %455 : vector<1x7x7x128xf32>
    %457 = vector.extract_strided_slice %418 {offsets = [2, 1, 0], sizes = [1, 1, 128], strides = [1, 1, 1]} : vector<3x3x128xf32> to vector<1x1x128xf32>
    %458 = vector.shape_cast %457 : vector<1x1x128xf32> to vector<128xf32>
    %459 = vector.shape_cast %458 : vector<128xf32> to vector<1x1x1x128xf32>
    %460 = vector.extract_strided_slice %442 {offsets = [0, 2, 0, 0], sizes = [1, 7, 7, 128], strides = [1, 1, 1, 1]} : vector<1x9x7x128xf32> to vector<1x7x7x128xf32>
    %461 = vector.broadcast %459 : vector<1x1x1x128xf32> to vector<1x7x7x128xf32>
    %462 = arith.mulf %460, %461 : vector<1x7x7x128xf32>
    %463 = arith.addf %456, %462 : vector<1x7x7x128xf32>
    %c0_135 = arith.constant 0 : index
    %c0_136 = arith.constant 0 : index
    %c2_137 = arith.constant 2 : index
    %c768_138 = arith.constant 768 : index
    %464 = vector.load %arg4[%c0_135, %c0_136, %c2_137, %c768_138] : memref<1x9x9x1024xf32, #tpu.memory_space<vmem>>, vector<1x9x7x128xf32>
    %465 = vector.extract_strided_slice %418 {offsets = [0, 2, 0], sizes = [1, 1, 128], strides = [1, 1, 1]} : vector<3x3x128xf32> to vector<1x1x128xf32>
    %466 = vector.shape_cast %465 : vector<1x1x128xf32> to vector<128xf32>
    %467 = vector.shape_cast %466 : vector<128xf32> to vector<1x1x1x128xf32>
    %468 = vector.extract_strided_slice %464 {offsets = [0, 0, 0, 0], sizes = [1, 7, 7, 128], strides = [1, 1, 1, 1]} : vector<1x9x7x128xf32> to vector<1x7x7x128xf32>
    %469 = vector.broadcast %467 : vector<1x1x1x128xf32> to vector<1x7x7x128xf32>
    %470 = arith.mulf %468, %469 : vector<1x7x7x128xf32>
    %471 = arith.addf %463, %470 : vector<1x7x7x128xf32>
    %472 = vector.extract_strided_slice %418 {offsets = [1, 2, 0], sizes = [1, 1, 128], strides = [1, 1, 1]} : vector<3x3x128xf32> to vector<1x1x128xf32>
    %473 = vector.shape_cast %472 : vector<1x1x128xf32> to vector<128xf32>
    %474 = vector.shape_cast %473 : vector<128xf32> to vector<1x1x1x128xf32>
    %475 = vector.extract_strided_slice %464 {offsets = [0, 1, 0, 0], sizes = [1, 7, 7, 128], strides = [1, 1, 1, 1]} : vector<1x9x7x128xf32> to vector<1x7x7x128xf32>
    %476 = vector.broadcast %474 : vector<1x1x1x128xf32> to vector<1x7x7x128xf32>
    %477 = arith.mulf %475, %476 : vector<1x7x7x128xf32>
    %478 = arith.addf %471, %477 : vector<1x7x7x128xf32>
    %479 = vector.extract_strided_slice %418 {offsets = [2, 2, 0], sizes = [1, 1, 128], strides = [1, 1, 1]} : vector<3x3x128xf32> to vector<1x1x128xf32>
    %480 = vector.shape_cast %479 : vector<1x1x128xf32> to vector<128xf32>
    %481 = vector.shape_cast %480 : vector<128xf32> to vector<1x1x1x128xf32>
    %482 = vector.extract_strided_slice %464 {offsets = [0, 2, 0, 0], sizes = [1, 7, 7, 128], strides = [1, 1, 1, 1]} : vector<1x9x7x128xf32> to vector<1x7x7x128xf32>
    %483 = vector.broadcast %481 : vector<1x1x1x128xf32> to vector<1x7x7x128xf32>
    %484 = arith.mulf %482, %483 : vector<1x7x7x128xf32>
    %485 = arith.addf %478, %484 : vector<1x7x7x128xf32>
    %c0_139 = arith.constant 0 : index
    %c0_140 = arith.constant 0 : index
    %c0_141 = arith.constant 0 : index
    %c768_142 = arith.constant 768 : index
    %486 = vector.load %arg3[%c0_139, %c0_140, %c0_141, %c768_142] : memref<1x7x7x1024xf32, #tpu.memory_space<vmem>>, vector<1x7x7x128xf32>
    tpu.vector_store %arg3[%c0_139, %c0_140, %c0_141, %c768_142], %485 {strides = array<i32>} : memref<1x7x7x1024xf32, #tpu.memory_space<vmem>>, vector<1x7x7x128xf32>,
    %c0_143 = arith.constant 0 : index
    %c0_144 = arith.constant 0 : index
    %c896 = arith.constant 896 : index
    %487 = vector.load %arg2[%c0_143, %c0_144, %c896] : memref<3x3x1024xf32, #tpu.memory_space<vmem>>, vector<3x3x128xf32>
    %cst_145 = arith.constant 0.000000e+00 : f32
    %488 = vector.broadcast %cst_145 : f32 to vector<1x7x7x128xf32>
    %c0_146 = arith.constant 0 : index
    %c0_147 = arith.constant 0 : index
    %c0_148 = arith.constant 0 : index
    %c896_149 = arith.constant 896 : index
    %489 = vector.load %arg4[%c0_146, %c0_147, %c0_148, %c896_149] : memref<1x9x9x1024xf32, #tpu.memory_space<vmem>>, vector<1x9x7x128xf32>
    %490 = vector.extract_strided_slice %487 {offsets = [0, 0, 0], sizes = [1, 1, 128], strides = [1, 1, 1]} : vector<3x3x128xf32> to vector<1x1x128xf32>
    %491 = vector.shape_cast %490 : vector<1x1x128xf32> to vector<128xf32>
    %492 = vector.shape_cast %491 : vector<128xf32> to vector<1x1x1x128xf32>
    %493 = vector.extract_strided_slice %489 {offsets = [0, 0, 0, 0], sizes = [1, 7, 7, 128], strides = [1, 1, 1, 1]} : vector<1x9x7x128xf32> to vector<1x7x7x128xf32>
    %494 = vector.broadcast %492 : vector<1x1x1x128xf32> to vector<1x7x7x128xf32>
    %495 = arith.mulf %493, %494 : vector<1x7x7x128xf32>
    %496 = arith.addf %488, %495 : vector<1x7x7x128xf32>
    %497 = vector.extract_strided_slice %487 {offsets = [1, 0, 0], sizes = [1, 1, 128], strides = [1, 1, 1]} : vector<3x3x128xf32> to vector<1x1x128xf32>
    %498 = vector.shape_cast %497 : vector<1x1x128xf32> to vector<128xf32>
    %499 = vector.shape_cast %498 : vector<128xf32> to vector<1x1x1x128xf32>
    %500 = vector.extract_strided_slice %489 {offsets = [0, 1, 0, 0], sizes = [1, 7, 7, 128], strides = [1, 1, 1, 1]} : vector<1x9x7x128xf32> to vector<1x7x7x128xf32>
    %501 = vector.broadcast %499 : vector<1x1x1x128xf32> to vector<1x7x7x128xf32>
    %502 = arith.mulf %500, %501 : vector<1x7x7x128xf32>
    %503 = arith.addf %496, %502 : vector<1x7x7x128xf32>
    %504 = vector.extract_strided_slice %487 {offsets = [2, 0, 0], sizes = [1, 1, 128], strides = [1, 1, 1]} : vector<3x3x128xf32> to vector<1x1x128xf32>
    %505 = vector.shape_cast %504 : vector<1x1x128xf32> to vector<128xf32>
    %506 = vector.shape_cast %505 : vector<128xf32> to vector<1x1x1x128xf32>
    %507 = vector.extract_strided_slice %489 {offsets = [0, 2, 0, 0], sizes = [1, 7, 7, 128], strides = [1, 1, 1, 1]} : vector<1x9x7x128xf32> to vector<1x7x7x128xf32>
    %508 = vector.broadcast %506 : vector<1x1x1x128xf32> to vector<1x7x7x128xf32>
    %509 = arith.mulf %507, %508 : vector<1x7x7x128xf32>
    %510 = arith.addf %503, %509 : vector<1x7x7x128xf32>
    %c0_150 = arith.constant 0 : index
    %c0_151 = arith.constant 0 : index
    %c1_152 = arith.constant 1 : index
    %c896_153 = arith.constant 896 : index
    %511 = vector.load %arg4[%c0_150, %c0_151, %c1_152, %c896_153] : memref<1x9x9x1024xf32, #tpu.memory_space<vmem>>, vector<1x9x7x128xf32>
    %512 = vector.extract_strided_slice %487 {offsets = [0, 1, 0], sizes = [1, 1, 128], strides = [1, 1, 1]} : vector<3x3x128xf32> to vector<1x1x128xf32>
    %513 = vector.shape_cast %512 : vector<1x1x128xf32> to vector<128xf32>
    %514 = vector.shape_cast %513 : vector<128xf32> to vector<1x1x1x128xf32>
    %515 = vector.extract_strided_slice %511 {offsets = [0, 0, 0, 0], sizes = [1, 7, 7, 128], strides = [1, 1, 1, 1]} : vector<1x9x7x128xf32> to vector<1x7x7x128xf32>
    %516 = vector.broadcast %514 : vector<1x1x1x128xf32> to vector<1x7x7x128xf32>
    %517 = arith.mulf %515, %516 : vector<1x7x7x128xf32>
    %518 = arith.addf %510, %517 : vector<1x7x7x128xf32>
    %519 = vector.extract_strided_slice %487 {offsets = [1, 1, 0], sizes = [1, 1, 128], strides = [1, 1, 1]} : vector<3x3x128xf32> to vector<1x1x128xf32>
    %520 = vector.shape_cast %519 : vector<1x1x128xf32> to vector<128xf32>
    %521 = vector.shape_cast %520 : vector<128xf32> to vector<1x1x1x128xf32>
    %522 = vector.extract_strided_slice %511 {offsets = [0, 1, 0, 0], sizes = [1, 7, 7, 128], strides = [1, 1, 1, 1]} : vector<1x9x7x128xf32> to vector<1x7x7x128xf32>
    %523 = vector.broadcast %521 : vector<1x1x1x128xf32> to vector<1x7x7x128xf32>
    %524 = arith.mulf %522, %523 : vector<1x7x7x128xf32>
    %525 = arith.addf %518, %524 : vector<1x7x7x128xf32>
    %526 = vector.extract_strided_slice %487 {offsets = [2, 1, 0], sizes = [1, 1, 128], strides = [1, 1, 1]} : vector<3x3x128xf32> to vector<1x1x128xf32>
    %527 = vector.shape_cast %526 : vector<1x1x128xf32> to vector<128xf32>
    %528 = vector.shape_cast %527 : vector<128xf32> to vector<1x1x1x128xf32>
    %529 = vector.extract_strided_slice %511 {offsets = [0, 2, 0, 0], sizes = [1, 7, 7, 128], strides = [1, 1, 1, 1]} : vector<1x9x7x128xf32> to vector<1x7x7x128xf32>
    %530 = vector.broadcast %528 : vector<1x1x1x128xf32> to vector<1x7x7x128xf32>
    %531 = arith.mulf %529, %530 : vector<1x7x7x128xf32>
    %532 = arith.addf %525, %531 : vector<1x7x7x128xf32>
    %c0_154 = arith.constant 0 : index
    %c0_155 = arith.constant 0 : index
    %c2_156 = arith.constant 2 : index
    %c896_157 = arith.constant 896 : index
    %533 = vector.load %arg4[%c0_154, %c0_155, %c2_156, %c896_157] : memref<1x9x9x1024xf32, #tpu.memory_space<vmem>>, vector<1x9x7x128xf32>
    %534 = vector.extract_strided_slice %487 {offsets = [0, 2, 0], sizes = [1, 1, 128], strides = [1, 1, 1]} : vector<3x3x128xf32> to vector<1x1x128xf32>
    %535 = vector.shape_cast %534 : vector<1x1x128xf32> to vector<128xf32>
    %536 = vector.shape_cast %535 : vector<128xf32> to vector<1x1x1x128xf32>
    %537 = vector.extract_strided_slice %533 {offsets = [0, 0, 0, 0], sizes = [1, 7, 7, 128], strides = [1, 1, 1, 1]} : vector<1x9x7x128xf32> to vector<1x7x7x128xf32>
    %538 = vector.broadcast %536 : vector<1x1x1x128xf32> to vector<1x7x7x128xf32>
    %539 = arith.mulf %537, %538 : vector<1x7x7x128xf32>
    %540 = arith.addf %532, %539 : vector<1x7x7x128xf32>
    %541 = vector.extract_strided_slice %487 {offsets = [1, 2, 0], sizes = [1, 1, 128], strides = [1, 1, 1]} : vector<3x3x128xf32> to vector<1x1x128xf32>
    %542 = vector.shape_cast %541 : vector<1x1x128xf32> to vector<128xf32>
    %543 = vector.shape_cast %542 : vector<128xf32> to vector<1x1x1x128xf32>
    %544 = vector.extract_strided_slice %533 {offsets = [0, 1, 0, 0], sizes = [1, 7, 7, 128], strides = [1, 1, 1, 1]} : vector<1x9x7x128xf32> to vector<1x7x7x128xf32>
    %545 = vector.broadcast %543 : vector<1x1x1x128xf32> to vector<1x7x7x128xf32>
    %546 = arith.mulf %544, %545 : vector<1x7x7x128xf32>
    %547 = arith.addf %540, %546 : vector<1x7x7x128xf32>
    %548 = vector.extract_strided_slice %487 {offsets = [2, 2, 0], sizes = [1, 1, 128], strides = [1, 1, 1]} : vector<3x3x128xf32> to vector<1x1x128xf32>
    %549 = vector.shape_cast %548 : vector<1x1x128xf32> to vector<128xf32>
    %550 = vector.shape_cast %549 : vector<128xf32> to vector<1x1x1x128xf32>
    %551 = vector.extract_strided_slice %533 {offsets = [0, 2, 0, 0], sizes = [1, 7, 7, 128], strides = [1, 1, 1, 1]} : vector<1x9x7x128xf32> to vector<1x7x7x128xf32>
    %552 = vector.broadcast %550 : vector<1x1x1x128xf32> to vector<1x7x7x128xf32>
    %553 = arith.mulf %551, %552 : vector<1x7x7x128xf32>
    %554 = arith.addf %547, %553 : vector<1x7x7x128xf32>
    %c0_158 = arith.constant 0 : index
    %c0_159 = arith.constant 0 : index
    %c0_160 = arith.constant 0 : index
    %c896_161 = arith.constant 896 : index
    %555 = vector.load %arg3[%c0_158, %c0_159, %c0_160, %c896_161] : memref<1x7x7x1024xf32, #tpu.memory_space<vmem>>, vector<1x7x7x128xf32>
    tpu.vector_store %arg3[%c0_158, %c0_159, %c0_160, %c896_161], %554 {strides = array<i32>} : memref<1x7x7x1024xf32, #tpu.memory_space<vmem>>, vector<1x7x7x128xf32>,
    return
  }
  func.func @transform_0(%arg0: i32) -> (i32, i32, i32, i32) {
    %c0_i32 = arith.constant 0 : i32
    %c0_i32_0 = arith.constant 0 : i32
    %c0_i32_1 = arith.constant 0 : i32
    %c0_i32_2 = arith.constant 0 : i32
    return %c0_i32, %c0_i32_0, %c0_i32_1, %arg0 : i32, i32, i32, i32
  }
  func.func @transform_1(%arg0: i32) -> (i32, i32, i32) {
    %c0_i32 = arith.constant 0 : i32
    %c0_i32_0 = arith.constant 0 : i32
    %c0_i32_1 = arith.constant 0 : i32
    return %c0_i32, %c0_i32_0, %arg0 : i32, i32, i32
  }
  func.func @transform_2(%arg0: i32) -> (i32, i32, i32, i32) {
    %c0_i32 = arith.constant 0 : i32
    %c0_i32_0 = arith.constant 0 : i32
    %c0_i32_1 = arith.constant 0 : i32
    %c0_i32_2 = arith.constant 0 : i32
    return %c0_i32, %c0_i32_0, %c0_i32_1, %arg0 : i32, i32, i32, i32
  }
}

</mosaic_0001>

<llo_original>
// kernel: tpu_custom_call.1
$region0: #{tpu_custom_call.1}
  #allocation0 [shape = 'u32[]', space=smem, size = 0x4, offset = 0x4, fixed_abs, tag = 'smem constant byte address 0x4 - core index']
  #allocation1 [shape = 'u32[144,128]{1,0:T(1,128)}', space=vmem, size = 0x12000, scoped, tag = 'internal scratch']
  #allocation2 [shape = 'f32[1,9,9,1024]{3,2,1,0:T(8,128)}', space=vmem, size = 0x90000, scoped, tag = 'scratch operand']
  %s0 = inlined_call_operand.vmem [shape: f32[1,7,7,2048], index: 0, kind: input, shape index: {}]
  %s1 = inlined_call_operand.vmem [shape: f32[3,3,2048], index: 1, kind: input, shape index: {}]
  %s2 = inlined_call_operand.vmem [shape: f32[1,7,7,2048], index: 2, kind: output, shape index: {}]
  %s3 = sld [smem:[#allocation0]]
  $region106: #{tpu_custom_call.1} parent=0
    _
  %s5 = ssub.s32 1, %s3
  %s6 = scalar_select 0, %s5, %s3
  $region1: #{tpu_custom_call.1} parent=0
    #allocation3 [shape = 'u8[458752]{0}', space=vmem, size = 0x70000, scoped, tag = 'input window, operand 0']
    #allocation4 [shape = 'u8[98304]{0}', space=vmem, size = 0x18000, scoped, tag = 'input window, operand 1']
    #allocation5 [shape = 'u8[458752]{0}', space=vmem, size = 0x70000, scoped, tag = 'output window, operand 0']
    loop: start=0, step=1, limit=4
    $region2: #{tpu_custom_call.1} parent=1 // loop_pre_header
      _
    $region3: #{tpu_custom_call.1} parent=1 // loop_header
      %s8 = sphi 0, %s12
      %p9 = scmp.ge.s32.totalorder %s8, 4
      %s18 = sphi 0, %s20
      %s21 = sphi 0, %s18
      %s22 = sphi 0, %s21
      %s38 = sphi 0, %s22
      %s44 = sphi 0, %s46
      %s47 = sphi 0, %s44
      %s48 = sphi 0, %s47
      %s64 = sphi 0, %s48
      %s70 = sphi 0, %s72
      %s73 = sphi 0, %s70
      %s74 = sphi 0, %s73
      %s90 = sphi 0, %s74
    $region4: #{tpu_custom_call.1} parent=1 // loop_header_branch
      %11 = sbr.rel (%p9) target = $region8
    $region5: #{tpu_custom_call.1} parent=1 // loop_body
      %s13 = ssub.s32 %s8, 1
      %s14 = ssub.s32 %s8, 2
      %s15 = sadd.s32 %s8, 1
      %s16 = ssub.s32 %s8, %s15
      %p17 = scmp.eq.s32.totalorder %s16, 0
      %s19 = sadd.s32 %s18, 1
      %s20 = scalar_select %p17, %s18, %s19
      %p23 = pneg %p17
      %p24 = scmp.eq.s32.totalorder %s8, 1
      %p25 = por %p23, %p24
      %p26 = scmp.ne.s32.totalorder %s18, %s21
      %p27 = scmp.eq.s32.totalorder %s8, 0
      %p28 = por %p26, %p27
      %p29 = scmp.ne.s32.totalorder %s18, %s21
      %p30 = scmp.eq.s32.totalorder %s13, 1
      %p31 = por %p29, %p30
      %p32 = scmp.ne.s32.totalorder %s21, %s22
      %p33 = scmp.eq.s32.totalorder %s13, 0
      %p34 = por %p32, %p33
      %p35 = scmp.ne.s32.totalorder %s21, %s22
      %p36 = scmp.eq.s32.totalorder %s14, 1
      %p37 = por %p35, %p36
      %p39 = scmp.ne.s32.totalorder %s22, %s38
      %p40 = scmp.eq.s32.totalorder %s14, 0
      %p41 = por %p39, %p40
      %s42 = ssub.s32 %s8, %s15
      %p43 = scmp.eq.s32.totalorder %s42, 0
      %s45 = sadd.s32 %s44, 1
      %s46 = scalar_select %p43, %s44, %s45
      %p49 = pneg %p43
      %p50 = scmp.eq.s32.totalorder %s8, 1
      %p51 = por %p49, %p50
      %p52 = scmp.ne.s32.totalorder %s44, %s47
      %p53 = scmp.eq.s32.totalorder %s8, 0
      %p54 = por %p52, %p53
      %p55 = scmp.ne.s32.totalorder %s44, %s47
      %p56 = scmp.eq.s32.totalorder %s13, 1
      %p57 = por %p55, %p56
      %p58 = scmp.ne.s32.totalorder %s47, %s48
      %p59 = scmp.eq.s32.totalorder %s13, 0
      %p60 = por %p58, %p59
      %p61 = scmp.ne.s32.totalorder %s47, %s48
      %p62 = scmp.eq.s32.totalorder %s14, 1
      %p63 = por %p61, %p62
      %p65 = scmp.ne.s32.totalorder %s48, %s64
      %p66 = scmp.eq.s32.totalorder %s14, 0
      %p67 = por %p65, %p66
      %s68 = ssub.s32 %s8, %s15
      %p69 = scmp.eq.s32.totalorder %s68, 0
      %s71 = sadd.s32 %s70, 1
      %s72 = scalar_select %p69, %s70, %s71
      %p75 = pneg %p69
      %p76 = scmp.eq.s32.totalorder %s8, 1
      %p77 = por %p75, %p76
      %p78 = scmp.ne.s32.totalorder %s70, %s73
      %p79 = scmp.eq.s32.totalorder %s8, 0
      %p80 = por %p78, %p79
      %p81 = scmp.ne.s32.totalorder %s70, %s73
      %p82 = scmp.eq.s32.totalorder %s13, 1
      %p83 = por %p81, %p82
      %p84 = scmp.ne.s32.totalorder %s73, %s74
      %p85 = scmp.eq.s32.totalorder %s13, 0
      %p86 = por %p84, %p85
      %p87 = scmp.ne.s32.totalorder %s73, %s74
      %p88 = scmp.eq.s32.totalorder %s14, 1
      %p89 = por %p87, %p88
      %p91 = scmp.ne.s32.totalorder %s74, %s90
      %p92 = scmp.eq.s32.totalorder %s14, 0
      %p93 = por %p91, %p92
      %p94 = scmp.le.s32.totalorder 1, %s8
      %p95 = scmp.lt.s32.totalorder %s8, 3
      %p96 = pnand %p94, %p95
      %p97 = pneg %p96
      // Predicated region
      $region9: #{tpu_custom_call.1} parent=5 // pred_check
        _
      $region10: #{tpu_custom_call.1} parent=5 // pred_check_branch
        %99 = sbr.rel (%p96) target = $region12
      $region11: #{tpu_custom_call.1} parent=5 // pred_region
        %s100 = ssub.s32 %s8, 1
      $region12: #{tpu_custom_call.1} parent=5 // pred_fallthru
        _
      %p101 = scmp.lt.s32.totalorder %s8, 2
      // Predicated region
      $region13: #{tpu_custom_call.1} parent=5 // pred_check
        %p102 = pneg %p101
      $region14: #{tpu_custom_call.1} parent=5 // pred_check_branch
        %104 = sbr.rel (%p102) target = $region16
      $region15: #{tpu_custom_call.1} parent=5 // pred_region
        // Predicated region
        $region17: #{tpu_custom_call.1} parent=15 // pred_check
          %p105 = pneg %p28
        $region18: #{tpu_custom_call.1} parent=15 // pred_check_branch
          %107 = sbr.rel (%p105) target = $region20
        $region19: #{tpu_custom_call.1} parent=15 // pred_region
          %s108 = sand.u32 %s18, 1
          %s109 = sand.u32 %s18, 1
          %s110 = smul.addr %s109, 448
          %s111 = scalar_lea.vmem [#allocation3], %s110
          %s112 = smul.u32 8, %s8
          %s113 = smul.addr %s112, 8
          %s114 = scalar_lea.vmem %s0, %s113
          // Predicated region
          $region21: #{tpu_custom_call.1} parent=19 // pred_check
            _
          $region22: #{tpu_custom_call.1} parent=19 // pred_check_branch
            %116 = sbr.rel (0) target = $region24
          $region23: #{tpu_custom_call.1} parent=19 // pred_region
            // Predicated region
            $region25: #{tpu_custom_call.1} parent=23 // pred_check
              _
            $region26: #{tpu_custom_call.1} parent=23 // pred_check_branch
              %118 = sbr.rel (0) target = $region28
            $region27: #{tpu_custom_call.1} parent=23 // pred_region
              loop: start=0, step=1, limit=1
              $region29: #{tpu_custom_call.1} parent=27 // loop_pre_header
                _
              $region30: #{tpu_custom_call.1} parent=27 // loop_header
                %s120 = sphi 0, %s124
                %p121 = scmp.ge.s32.totalorder %s120, 1
                %s125 = sphi %s114, %s114
                %s126 = sphi %s111, %s111
              $region31: #{tpu_custom_call.1} parent=27 // loop_header_branch
                %123 = sbr.rel (%p121) target = $region35
              $region32: #{tpu_custom_call.1} parent=27 // loop_body
                %v127 = vld [vmem:[%s125] sm:$0xff]
                %128 = vst [vmem:[%s126] sm:$0xff] %v127
                %v129 = vld [vmem:[%s125 + $0x8] sm:$0xff]
                %130 = vst [vmem:[%s126 + $0x8] sm:$0xff] %v129
                %v131 = vld [vmem:[%s125 + $0x10] sm:$0xff]
                %132 = vst [vmem:[%s126 + $0x10] sm:$0xff] %v131
                %v133 = vld [vmem:[%s125 + $0x18] sm:$0xff]
                %134 = vst [vmem:[%s126 + $0x18] sm:$0xff] %v133
                %v135 = vld [vmem:[%s125 + $0x20] sm:$0xff]
                %136 = vst [vmem:[%s126 + $0x20] sm:$0xff] %v135
                %v137 = vld [vmem:[%s125 + $0x28] sm:$0xff]
                %138 = vst [vmem:[%s126 + $0x28] sm:$0xff] %v137
                %v139 = vld [vmem:[%s125 + $0x30] sm:$0xff]
                %140 = vst [vmem:[%s126 + $0x30] sm:$0xff] %v139
                %v141 = vld [vmem:[%s125 + $0x38] sm:$0xff]
                %142 = vst [vmem:[%s126 + $0x38] sm:$0xff] %v141
                %v143 = vld [vmem:[%s125 + $0x80] sm:$0xff]
                %144 = vst [vmem:[%s126 + $0x40] sm:$0xff] %v143
                %v145 = vld [vmem:[%s125 + $0x88] sm:$0xff]
                %146 = vst [vmem:[%s126 + $0x48] sm:$0xff] %v145
                %v147 = vld [vmem:[%s125 + $0x90] sm:$0xff]
                %148 = vst [vmem:[%s126 + $0x50] sm:$0xff] %v147
                %v149 = vld [vmem:[%s125 + $0x98] sm:$0xff]
                %150 = vst [vmem:[%s126 + $0x58] sm:$0xff] %v149
                %v151 = vld [vmem:[%s125 + $0xa0] sm:$0xff]
                %152 = vst [vmem:[%s126 + $0x60] sm:$0xff] %v151
                %v153 = vld [vmem:[%s125 + $0xa8] sm:$0xff]
                %154 = vst [vmem:[%s126 + $0x68] sm:$0xff] %v153
                %v155 = vld [vmem:[%s125 + $0xb0] sm:$0xff]
                %156 = vst [vmem:[%s126 + $0x70] sm:$0xff] %v155
                %v157 = vld [vmem:[%s125 + $0xb8] sm:$0xff]
                %158 = vst [vmem:[%s126 + $0x78] sm:$0xff] %v157
                %v159 = vld [vmem:[%s125 + $0x100] sm:$0xff]
                %160 = vst [vmem:[%s126 + $0x80] sm:$0xff] %v159
                %v161 = vld [vmem:[%s125 + $0x108] sm:$0xff]
                %162 = vst [vmem:[%s126 + $0x88] sm:$0xff] %v161
                %v163 = vld [vmem:[%s125 + $0x110] sm:$0xff]
                %164 = vst [vmem:[%s126 + $0x90] sm:$0xff] %v163
                %v165 = vld [vmem:[%s125 + $0x118] sm:$0xff]
                %166 = vst [vmem:[%s126 + $0x98] sm:$0xff] %v165
                %v167 = vld [vmem:[%s125 + $0x120] sm:$0xff]
                %168 = vst [vmem:[%s126 + $0xa0] sm:$0xff] %v167
                %v169 = vld [vmem:[%s125 + $0x128] sm:$0xff]
                %170 = vst [vmem:[%s126 + $0xa8] sm:$0xff] %v169
                %v171 = vld [vmem:[%s125 + $0x130] sm:$0xff]
                %172 = vst [vmem:[%s126 + $0xb0] sm:$0xff] %v171
                %v173 = vld [vmem:[%s125 + $0x138] sm:$0xff]
                %174 = vst [vmem:[%s126 + $0xb8] sm:$0xff] %v173
                %v175 = vld [vmem:[%s125 + $0x180] sm:$0xff]
                %176 = vst [vmem:[%s126 + $0xc0] sm:$0xff] %v175
                %v177 = vld [vmem:[%s125 + $0x188] sm:$0xff]
                %178 = vst [vmem:[%s126 + $0xc8] sm:$0xff] %v177
                %v179 = vld [vmem:[%s125 + $0x190] sm:$0xff]
                %180 = vst [vmem:[%s126 + $0xd0] sm:$0xff] %v179
                %v181 = vld [vmem:[%s125 + $0x198] sm:$0xff]
                %182 = vst [vmem:[%s126 + $0xd8] sm:$0xff] %v181
                %v183 = vld [vmem:[%s125 + $0x1a0] sm:$0xff]
                %184 = vst [vmem:[%s126 + $0xe0] sm:$0xff] %v183
                %v185 = vld [vmem:[%s125 + $0x1a8] sm:$0xff]
                %186 = vst [vmem:[%s126 + $0xe8] sm:$0xff] %v185
                %v187 = vld [vmem:[%s125 + $0x1b0] sm:$0xff]
                %188 = vst [vmem:[%s126 + $0xf0] sm:$0xff] %v187
                %v189 = vld [vmem:[%s125 + $0x1b8] sm:$0xff]
                %190 = vst [vmem:[%s126 + $0xf8] sm:$0xff] %v189
                %v191 = vld [vmem:[%s125 + $0x200] sm:$0xff]
                %192 = vst [vmem:[%s126 + $0x100] sm:$0xff] %v191
                %v193 = vld [vmem:[%s125 + $0x208] sm:$0xff]
                %194 = vst [vmem:[%s126 + $0x108] sm:$0xff] %v193
                %v195 = vld [vmem:[%s125 + $0x210] sm:$0xff]
                %196 = vst [vmem:[%s126 + $0x110] sm:$0xff] %v195
                %v197 = vld [vmem:[%s125 + $0x218] sm:$0xff]
                %198 = vst [vmem:[%s126 + $0x118] sm:$0xff] %v197
                %v199 = vld [vmem:[%s125 + $0x220] sm:$0xff]
                %200 = vst [vmem:[%s126 + $0x120] sm:$0xff] %v199
                %v201 = vld [vmem:[%s125 + $0x228] sm:$0xff]
                %202 = vst [vmem:[%s126 + $0x128] sm:$0xff] %v201
                %v203 = vld [vmem:[%s125 + $0x230] sm:$0xff]
                %204 = vst [vmem:[%s126 + $0x130] sm:$0xff] %v203
                %v205 = vld [vmem:[%s125 + $0x238] sm:$0xff]
                %206 = vst [vmem:[%s126 + $0x138] sm:$0xff] %v205
                %v207 = vld [vmem:[%s125 + $0x280] sm:$0xff]
                %208 = vst [vmem:[%s126 + $0x140] sm:$0xff] %v207
                %v209 = vld [vmem:[%s125 + $0x288] sm:$0xff]
                %210 = vst [vmem:[%s126 + $0x148] sm:$0xff] %v209
                %v211 = vld [vmem:[%s125 + $0x290] sm:$0xff]
                %212 = vst [vmem:[%s126 + $0x150] sm:$0xff] %v211
                %v213 = vld [vmem:[%s125 + $0x298] sm:$0xff]
                %214 = vst [vmem:[%s126 + $0x158] sm:$0xff] %v213
                %v215 = vld [vmem:[%s125 + $0x2a0] sm:$0xff]
                %216 = vst [vmem:[%s126 + $0x160] sm:$0xff] %v215
                %v217 = vld [vmem:[%s125 + $0x2a8] sm:$0xff]
                %218 = vst [vmem:[%s126 + $0x168] sm:$0xff] %v217
                %v219 = vld [vmem:[%s125 + $0x2b0] sm:$0xff]
                %220 = vst [vmem:[%s126 + $0x170] sm:$0xff] %v219
                %v221 = vld [vmem:[%s125 + $0x2b8] sm:$0xff]
                %222 = vst [vmem:[%s126 + $0x178] sm:$0xff] %v221
                %v223 = vld [vmem:[%s125 + $0x300] sm:$0xff]
                %224 = vst [vmem:[%s126 + $0x180] sm:$0xff] %v223
                %v225 = vld [vmem:[%s125 + $0x308] sm:$0xff]
                %226 = vst [vmem:[%s126 + $0x188] sm:$0xff] %v225
                %v227 = vld [vmem:[%s125 + $0x310] sm:$0xff]
                %228 = vst [vmem:[%s126 + $0x190] sm:$0xff] %v227
                %v229 = vld [vmem:[%s125 + $0x318] sm:$0xff]
                %230 = vst [vmem:[%s126 + $0x198] sm:$0xff] %v229
                %v231 = vld [vmem:[%s125 + $0x320] sm:$0xff]
                %232 = vst [vmem:[%s126 + $0x1a0] sm:$0xff] %v231
                %v233 = vld [vmem:[%s125 + $0x328] sm:$0xff]
                %234 = vst [vmem:[%s126 + $0x1a8] sm:$0xff] %v233
                %v235 = vld [vmem:[%s125 + $0x330] sm:$0xff]
                %236 = vst [vmem:[%s126 + $0x1b0] sm:$0xff] %v235
                %v237 = vld [vmem:[%s125 + $0x338] sm:$0xff]
                %238 = vst [vmem:[%s126 + $0x1b8] sm:$0xff] %v237
              $region33: #{tpu_custom_call.1} parent=27 // loop_footer
                %s124 = sadd.s32 1, %s120
              $region34: #{tpu_custom_call.1} parent=27 // loop_footer_branch
                %119 = sbr.rel target = $region30
              $region35: #{tpu_custom_call.1} parent=27 // loop_exit
                _
            $region28: #{tpu_custom_call.1} parent=23 // pred_fallthru
              _
            // Predicated region
            $region36: #{tpu_custom_call.1} parent=23 // pred_check
              _
            $region37: #{tpu_custom_call.1} parent=23 // pred_check_branch
              %240 = sbr.rel target = $region39
            $region38: #{tpu_custom_call.1} parent=23 // pred_region
              _
            $region39: #{tpu_custom_call.1} parent=23 // pred_fallthru
              _
          $region24: #{tpu_custom_call.1} parent=19 // pred_fallthru
            _
          %241 = vnop
        $region20: #{tpu_custom_call.1} parent=15 // pred_fallthru
          _
        // Predicated region
        $region40: #{tpu_custom_call.1} parent=15 // pred_check
          %p242 = pneg %p54
        $region41: #{tpu_custom_call.1} parent=15 // pred_check_branch
          %244 = sbr.rel (%p242) target = $region43
        $region42: #{tpu_custom_call.1} parent=15 // pred_region
          %s245 = sand.u32 %s44, 1
          %s246 = sand.u32 %s44, 1
          %s247 = smul.addr %s246, 96
          %s248 = scalar_lea.vmem [#allocation4], %s247
          %s249 = smul.u32 8, %s8
          %s250 = smul.addr %s249, 4
          %s251 = scalar_lea.vmem %s1, %s250
          // Predicated region
          $region44: #{tpu_custom_call.1} parent=42 // pred_check
            _
          $region45: #{tpu_custom_call.1} parent=42 // pred_check_branch
            %253 = sbr.rel (0) target = $region47
          $region46: #{tpu_custom_call.1} parent=42 // pred_region
            // Predicated region
            $region48: #{tpu_custom_call.1} parent=46 // pred_check
              _
            $region49: #{tpu_custom_call.1} parent=46 // pred_check_branch
              %255 = sbr.rel (0) target = $region51
            $region50: #{tpu_custom_call.1} parent=46 // pred_region
              loop: start=0, step=1, limit=1
              $region52: #{tpu_custom_call.1} parent=50 // loop_pre_header
                _
              $region53: #{tpu_custom_call.1} parent=50 // loop_header
                %s257 = sphi 0, %s261
                %p258 = scmp.ge.s32.totalorder %s257, 1
                %s262 = sphi %s251, %s251
                %s263 = sphi %s248, %s248
              $region54: #{tpu_custom_call.1} parent=50 // loop_header_branch
                %260 = sbr.rel (%p258) target = $region58
              $region55: #{tpu_custom_call.1} parent=50 // loop_body
                %v264 = vld [vmem:[%s262] sm:$0xff]
                %265 = vst [vmem:[%s263] sm:$0xff] %v264
                %v266 = vld [vmem:[%s262 + $0x8] sm:$0xff]
                %267 = vst [vmem:[%s263 + $0x8] sm:$0xff] %v266
                %v268 = vld [vmem:[%s262 + $0x10] sm:$0xff]
                %269 = vst [vmem:[%s263 + $0x10] sm:$0xff] %v268
                %v270 = vld [vmem:[%s262 + $0x18] sm:$0xff]
                %271 = vst [vmem:[%s263 + $0x18] sm:$0xff] %v270
                %v272 = vld [vmem:[%s262 + $0x40] sm:$0xff]
                %273 = vst [vmem:[%s263 + $0x20] sm:$0xff] %v272
                %v274 = vld [vmem:[%s262 + $0x48] sm:$0xff]
                %275 = vst [vmem:[%s263 + $0x28] sm:$0xff] %v274
                %v276 = vld [vmem:[%s262 + $0x50] sm:$0xff]
                %277 = vst [vmem:[%s263 + $0x30] sm:$0xff] %v276
                %v278 = vld [vmem:[%s262 + $0x58] sm:$0xff]
                %279 = vst [vmem:[%s263 + $0x38] sm:$0xff] %v278
                %v280 = vld [vmem:[%s262 + $0x80] sm:$0xff]
                %281 = vst [vmem:[%s263 + $0x40] sm:$0xff] %v280
                %v282 = vld [vmem:[%s262 + $0x88] sm:$0xff]
                %283 = vst [vmem:[%s263 + $0x48] sm:$0xff] %v282
                %v284 = vld [vmem:[%s262 + $0x90] sm:$0xff]
                %285 = vst [vmem:[%s263 + $0x50] sm:$0xff] %v284
                %v286 = vld [vmem:[%s262 + $0x98] sm:$0xff]
                %287 = vst [vmem:[%s263 + $0x58] sm:$0xff] %v286
              $region56: #{tpu_custom_call.1} parent=50 // loop_footer
                %s261 = sadd.s32 1, %s257
              $region57: #{tpu_custom_call.1} parent=50 // loop_footer_branch
                %256 = sbr.rel target = $region53
              $region58: #{tpu_custom_call.1} parent=50 // loop_exit
                _
            $region51: #{tpu_custom_call.1} parent=46 // pred_fallthru
              _
            // Predicated region
            $region59: #{tpu_custom_call.1} parent=46 // pred_check
              _
            $region60: #{tpu_custom_call.1} parent=46 // pred_check_branch
              %289 = sbr.rel target = $region62
            $region61: #{tpu_custom_call.1} parent=46 // pred_region
              _
            $region62: #{tpu_custom_call.1} parent=46 // pred_fallthru
              _
          $region47: #{tpu_custom_call.1} parent=42 // pred_fallthru
            _
          %290 = vnop
        $region43: #{tpu_custom_call.1} parent=15 // pred_fallthru
          _
      $region16: #{tpu_custom_call.1} parent=5 // pred_fallthru
        _
      %p291 = scmp.le.s32.totalorder 1, %s8
      %p292 = scmp.lt.s32.totalorder %s8, 3
      %p293 = pnand %p291, %p292
      %p294 = pneg %p293
      // Predicated region
      $region63: #{tpu_custom_call.1} parent=5 // pred_check
        _
      $region64: #{tpu_custom_call.1} parent=5 // pred_check_branch
        %296 = sbr.rel (%p293) target = $region66
      $region65: #{tpu_custom_call.1} parent=5 // pred_region
        %s297 = ssub.s32 %s8, 1
        %s298 = sand.u32 %s21, 1
        %s299 = sand.u32 %s21, 1
        %s300 = smul.addr %s299, 448
        %s301 = scalar_lea.vmem [#allocation3], %s300
        // Predicated region
        $region67: #{tpu_custom_call.1} parent=65 // pred_check
          %p302 = pneg %p34
        $region68: #{tpu_custom_call.1} parent=65 // pred_check_branch
          %304 = sbr.rel (%p302) target = $region70
        $region69: #{tpu_custom_call.1} parent=65 // pred_region
          _
        $region70: #{tpu_custom_call.1} parent=65 // pred_fallthru
          _
        %s305 = sand.u32 %s47, 1
        %s306 = sand.u32 %s47, 1
        %s307 = smul.addr %s306, 96
        %s308 = scalar_lea.vmem [#allocation4], %s307
        // Predicated region
        $region71: #{tpu_custom_call.1} parent=65 // pred_check
          %p309 = pneg %p60
        $region72: #{tpu_custom_call.1} parent=65 // pred_check_branch
          %311 = sbr.rel (%p309) target = $region74
        $region73: #{tpu_custom_call.1} parent=65 // pred_region
          _
        $region74: #{tpu_custom_call.1} parent=65 // pred_fallthru
          _
        %s312 = sand.u32 %s21, 1
        %s313 = sand.u32 %s21, 1
        %s314 = smul.addr %s313, 448
        %s315 = scalar_lea.vmem [#allocation3], %s314
        %p316 = pneg %p34
        %p317 = pneg %p31
        %s318 = sand.u32 %s47, 1
        %s319 = sand.u32 %s47, 1
        %s320 = smul.addr %s319, 96
        %s321 = scalar_lea.vmem [#allocation4], %s320
        %p322 = pneg %p60
        %p323 = pneg %p57
        %p324 = pneg %p86
        %p325 = pneg %p83
        %s326 = sand.u32 %s73, 1
        %s327 = sand.u32 %s73, 1
        %s328 = smul.addr %s327, 448
        %s329 = scalar_lea.vmem [#allocation5], %s328
        %s330 = smul.u32 8, %s13
        %s331 = smul.u32 8, %s13
        %s332 = smul.u32 8, %s13
        %333 = vst [vmem:[#allocation2] sm:$0xff] 0.0
        %334 = vst [vmem:[#allocation2 + $0x8] sm:$0xff] 0.0
        %335 = vst [vmem:[#allocation2 + $0x10] sm:$0xff] 0.0
        %336 = vst [vmem:[#allocation2 + $0x18] sm:$0xff] 0.0
        %337 = vst [vmem:[#allocation2 + $0x20] sm:$0xff] 0.0
        %338 = vst [vmem:[#allocation2 + $0x28] sm:$0xff] 0.0
        %339 = vst [vmem:[#allocation2 + $0x30] sm:$0xff] 0.0
        %340 = vst [vmem:[#allocation2 + $0x38] sm:$0xff] 0.0
        %341 = vst [vmem:[#allocation2 + $0x40] sm:$0x1] 0.0
        %342 = vst [vmem:[#allocation2 + $0x48] sm:$0x1] 0.0
        %343 = vst [vmem:[#allocation2 + $0x50] sm:$0x1] 0.0
        %344 = vst [vmem:[#allocation2 + $0x58] sm:$0x1] 0.0
        %345 = vst [vmem:[#allocation2 + $0x60] sm:$0x1] 0.0
        %346 = vst [vmem:[#allocation2 + $0x68] sm:$0x1] 0.0
        %347 = vst [vmem:[#allocation2 + $0x70] sm:$0x1] 0.0
        %348 = vst [vmem:[#allocation2 + $0x78] sm:$0x1] 0.0
        %349 = vst [vmem:[#allocation2 + $0x80] sm:$0xff] 0.0
        %350 = vst [vmem:[#allocation2 + $0x88] sm:$0xff] 0.0
        %351 = vst [vmem:[#allocation2 + $0x90] sm:$0xff] 0.0
        %352 = vst [vmem:[#allocation2 + $0x98] sm:$0xff] 0.0
        %353 = vst [vmem:[#allocation2 + $0xa0] sm:$0xff] 0.0
        %354 = vst [vmem:[#allocation2 + $0xa8] sm:$0xff] 0.0
        %355 = vst [vmem:[#allocation2 + $0xb0] sm:$0xff] 0.0
        %356 = vst [vmem:[#allocation2 + $0xb8] sm:$0xff] 0.0
        %357 = vst [vmem:[#allocation2 + $0xc0] sm:$0x1] 0.0
        %358 = vst [vmem:[#allocation2 + $0xc8] sm:$0x1] 0.0
        %359 = vst [vmem:[#allocation2 + $0xd0] sm:$0x1] 0.0
        %360 = vst [vmem:[#allocation2 + $0xd8] sm:$0x1] 0.0
        %361 = vst [vmem:[#allocation2 + $0xe0] sm:$0x1] 0.0
        %362 = vst [vmem:[#allocation2 + $0xe8] sm:$0x1] 0.0
        %363 = vst [vmem:[#allocation2 + $0xf0] sm:$0x1] 0.0
        %364 = vst [vmem:[#allocation2 + $0xf8] sm:$0x1] 0.0
        %365 = vst [vmem:[#allocation2 + $0x100] sm:$0xff] 0.0
        %366 = vst [vmem:[#allocation2 + $0x108] sm:$0xff] 0.0
        %367 = vst [vmem:[#allocation2 + $0x110] sm:$0xff] 0.0
        %368 = vst [vmem:[#allocation2 + $0x118] sm:$0xff] 0.0
        %369 = vst [vmem:[#allocation2 + $0x120] sm:$0xff] 0.0
        %370 = vst [vmem:[#allocation2 + $0x128] sm:$0xff] 0.0
        %371 = vst [vmem:[#allocation2 + $0x130] sm:$0xff] 0.0
        %372 = vst [vmem:[#allocation2 + $0x138] sm:$0xff] 0.0
        %373 = vst [vmem:[#allocation2 + $0x140] sm:$0x1] 0.0
        %374 = vst [vmem:[#allocation2 + $0x148] sm:$0x1] 0.0
        %375 = vst [vmem:[#allocation2 + $0x150] sm:$0x1] 0.0
        %376 = vst [vmem:[#allocation2 + $0x158] sm:$0x1] 0.0
        %377 = vst [vmem:[#allocation2 + $0x160] sm:$0x1] 0.0
        %378 = vst [vmem:[#allocation2 + $0x168] sm:$0x1] 0.0
        %379 = vst [vmem:[#allocation2 + $0x170] sm:$0x1] 0.0
        %380 = vst [vmem:[#allocation2 + $0x178] sm:$0x1] 0.0
        %381 = vst [vmem:[#allocation2 + $0x180] sm:$0xff] 0.0
        %382 = vst [vmem:[#allocation2 + $0x188] sm:$0xff] 0.0
        %383 = vst [vmem:[#allocation2 + $0x190] sm:$0xff] 0.0
        %384 = vst [vmem:[#allocation2 + $0x198] sm:$0xff] 0.0
        %385 = vst [vmem:[#allocation2 + $0x1a0] sm:$0xff] 0.0
        %386 = vst [vmem:[#allocation2 + $0x1a8] sm:$0xff] 0.0
        %387 = vst [vmem:[#allocation2 + $0x1b0] sm:$0xff] 0.0
        %388 = vst [vmem:[#allocation2 + $0x1b8] sm:$0xff] 0.0
        %389 = vst [vmem:[#allocation2 + $0x1c0] sm:$0x1] 0.0
        %390 = vst [vmem:[#allocation2 + $0x1c8] sm:$0x1] 0.0
        %391 = vst [vmem:[#allocation2 + $0x1d0] sm:$0x1] 0.0
        %392 = vst [vmem:[#allocation2 + $0x1d8] sm:$0x1] 0.0
        %393 = vst [vmem:[#allocation2 + $0x1e0] sm:$0x1] 0.0
        %394 = vst [vmem:[#allocation2 + $0x1e8] sm:$0x1] 0.0
        %395 = vst [vmem:[#allocation2 + $0x1f0] sm:$0x1] 0.0
        %396 = vst [vmem:[#allocation2 + $0x1f8] sm:$0x1] 0.0
        %397 = vst [vmem:[#allocation2 + $0x200] sm:$0xff] 0.0
        %398 = vst [vmem:[#allocation2 + $0x208] sm:$0xff] 0.0
        %399 = vst [vmem:[#allocation2 + $0x210] sm:$0xff] 0.0
        %400 = vst [vmem:[#allocation2 + $0x218] sm:$0xff] 0.0
        %401 = vst [vmem:[#allocation2 + $0x220] sm:$0xff] 0.0
        %402 = vst [vmem:[#allocation2 + $0x228] sm:$0xff] 0.0
        %403 = vst [vmem:[#allocation2 + $0x230] sm:$0xff] 0.0
        %404 = vst [vmem:[#allocation2 + $0x238] sm:$0xff] 0.0
        %405 = vst [vmem:[#allocation2 + $0x240] sm:$0x1] 0.0
        %406 = vst [vmem:[#allocation2 + $0x248] sm:$0x1] 0.0
        %407 = vst [vmem:[#allocation2 + $0x250] sm:$0x1] 0.0
        %408 = vst [vmem:[#allocation2 + $0x258] sm:$0x1] 0.0
        %409 = vst [vmem:[#allocation2 + $0x260] sm:$0x1] 0.0
        %410 = vst [vmem:[#allocation2 + $0x268] sm:$0x1] 0.0
        %411 = vst [vmem:[#allocation2 + $0x270] sm:$0x1] 0.0
        %412 = vst [vmem:[#allocation2 + $0x278] sm:$0x1] 0.0
        %413 = vst [vmem:[#allocation2 + $0x280] sm:$0xff] 0.0
        %414 = vst [vmem:[#allocation2 + $0x288] sm:$0xff] 0.0
        %415 = vst [vmem:[#allocation2 + $0x290] sm:$0xff] 0.0
        %416 = vst [vmem:[#allocation2 + $0x298] sm:$0xff] 0.0
        %417 = vst [vmem:[#allocation2 + $0x2a0] sm:$0xff] 0.0
        %418 = vst [vmem:[#allocation2 + $0x2a8] sm:$0xff] 0.0
        %419 = vst [vmem:[#allocation2 + $0x2b0] sm:$0xff] 0.0
        %420 = vst [vmem:[#allocation2 + $0x2b8] sm:$0xff] 0.0
        %421 = vst [vmem:[#allocation2 + $0x2c0] sm:$0x1] 0.0
        %422 = vst [vmem:[#allocation2 + $0x2c8] sm:$0x1] 0.0
        %423 = vst [vmem:[#allocation2 + $0x2d0] sm:$0x1] 0.0
        %424 = vst [vmem:[#allocation2 + $0x2d8] sm:$0x1] 0.0
        %425 = vst [vmem:[#allocation2 + $0x2e0] sm:$0x1] 0.0
        %426 = vst [vmem:[#allocation2 + $0x2e8] sm:$0x1] 0.0
        %427 = vst [vmem:[#allocation2 + $0x2f0] sm:$0x1] 0.0
        %428 = vst [vmem:[#allocation2 + $0x2f8] sm:$0x1] 0.0
        %429 = vst [vmem:[#allocation2 + $0x300] sm:$0xff] 0.0
        %430 = vst [vmem:[#allocation2 + $0x308] sm:$0xff] 0.0
        %431 = vst [vmem:[#allocation2 + $0x310] sm:$0xff] 0.0
        %432 = vst [vmem:[#allocation2 + $0x318] sm:$0xff] 0.0
        %433 = vst [vmem:[#allocation2 + $0x320] sm:$0xff] 0.0
        %434 = vst [vmem:[#allocation2 + $0x328] sm:$0xff] 0.0
        %435 = vst [vmem:[#allocation2 + $0x330] sm:$0xff] 0.0
        %436 = vst [vmem:[#allocation2 + $0x338] sm:$0xff] 0.0
        %437 = vst [vmem:[#allocation2 + $0x340] sm:$0x1] 0.0
        %438 = vst [vmem:[#allocation2 + $0x348] sm:$0x1] 0.0
        %439 = vst [vmem:[#allocation2 + $0x350] sm:$0x1] 0.0
        %440 = vst [vmem:[#allocation2 + $0x358] sm:$0x1] 0.0
        %441 = vst [vmem:[#allocation2 + $0x360] sm:$0x1] 0.0
        %442 = vst [vmem:[#allocation2 + $0x368] sm:$0x1] 0.0
        %443 = vst [vmem:[#allocation2 + $0x370] sm:$0x1] 0.0
        %444 = vst [vmem:[#allocation2 + $0x378] sm:$0x1] 0.0
        %445 = vst [vmem:[#allocation2 + $0x380] sm:$0xff] 0.0
        %446 = vst [vmem:[#allocation2 + $0x388] sm:$0xff] 0.0
        %447 = vst [vmem:[#allocation2 + $0x390] sm:$0xff] 0.0
        %448 = vst [vmem:[#allocation2 + $0x398] sm:$0xff] 0.0
        %449 = vst [vmem:[#allocation2 + $0x3a0] sm:$0xff] 0.0
        %450 = vst [vmem:[#allocation2 + $0x3a8] sm:$0xff] 0.0
        %451 = vst [vmem:[#allocation2 + $0x3b0] sm:$0xff] 0.0
        %452 = vst [vmem:[#allocation2 + $0x3b8] sm:$0xff] 0.0
        %453 = vst [vmem:[#allocation2 + $0x3c0] sm:$0x1] 0.0
        %454 = vst [vmem:[#allocation2 + $0x3c8] sm:$0x1] 0.0
        %455 = vst [vmem:[#allocation2 + $0x3d0] sm:$0x1] 0.0
        %456 = vst [vmem:[#allocation2 + $0x3d8] sm:$0x1] 0.0
        %457 = vst [vmem:[#allocation2 + $0x3e0] sm:$0x1] 0.0
        %458 = vst [vmem:[#allocation2 + $0x3e8] sm:$0x1] 0.0
        %459 = vst [vmem:[#allocation2 + $0x3f0] sm:$0x1] 0.0
        %460 = vst [vmem:[#allocation2 + $0x3f8] sm:$0x1] 0.0
        %461 = vst [vmem:[#allocation2 + $0x400] sm:$0xff] 0.0
        %462 = vst [vmem:[#allocation2 + $0x408] sm:$0xff] 0.0
        %463 = vst [vmem:[#allocation2 + $0x410] sm:$0xff] 0.0
        %464 = vst [vmem:[#allocation2 + $0x418] sm:$0xff] 0.0
        %465 = vst [vmem:[#allocation2 + $0x420] sm:$0xff] 0.0
        %466 = vst [vmem:[#allocation2 + $0x428] sm:$0xff] 0.0
        %467 = vst [vmem:[#allocation2 + $0x430] sm:$0xff] 0.0
        %468 = vst [vmem:[#allocation2 + $0x438] sm:$0xff] 0.0
        %469 = vst [vmem:[#allocation2 + $0x440] sm:$0x1] 0.0
        %470 = vst [vmem:[#allocation2 + $0x448] sm:$0x1] 0.0
        %471 = vst [vmem:[#allocation2 + $0x450] sm:$0x1] 0.0
        %472 = vst [vmem:[#allocation2 + $0x458] sm:$0x1] 0.0
        %473 = vst [vmem:[#allocation2 + $0x460] sm:$0x1] 0.0
        %474 = vst [vmem:[#allocation2 + $0x468] sm:$0x1] 0.0
        %475 = vst [vmem:[#allocation2 + $0x470] sm:$0x1] 0.0
        %476 = vst [vmem:[#allocation2 + $0x478] sm:$0x1] 0.0
        %v477 = vld [vmem:[%s301] sm:$0x7f]
        %v478 = vld [vmem:[%s301 + $0x8] sm:$0x7f]
        %v479 = vld [vmem:[%s301 + $0x10] sm:$0x7f]
        %v480 = vld [vmem:[%s301 + $0x18] sm:$0x7f]
        %v481 = vld [vmem:[%s301 + $0x20] sm:$0x7f]
        %v482 = vld [vmem:[%s301 + $0x28] sm:$0x7f]
        %v483 = vld [vmem:[%s301 + $0x30] sm:$0x7f]
        %v484 = vld [vmem:[%s301 + $0x38] sm:$0x7f]
        %v485 = vld [vmem:[%s301 + $0x40] sm:$0x7f]
        %v486 = vld [vmem:[%s301 + $0x48] sm:$0x7f]
        %v487 = vld [vmem:[%s301 + $0x50] sm:$0x7f]
        %v488 = vld [vmem:[%s301 + $0x58] sm:$0x7f]
        %v489 = vld [vmem:[%s301 + $0x60] sm:$0x7f]
        %v490 = vld [vmem:[%s301 + $0x68] sm:$0x7f]
        %v491 = vld [vmem:[%s301 + $0x70] sm:$0x7f]
        %v492 = vld [vmem:[%s301 + $0x78] sm:$0x7f]
        %v493 = vld [vmem:[%s301 + $0x80] sm:$0x7f]
        %v494 = vld [vmem:[%s301 + $0x88] sm:$0x7f]
        %v495 = vld [vmem:[%s301 + $0x90] sm:$0x7f]
        %v496 = vld [vmem:[%s301 + $0x98] sm:$0x7f]
        %v497 = vld [vmem:[%s301 + $0xa0] sm:$0x7f]
        %v498 = vld [vmem:[%s301 + $0xa8] sm:$0x7f]
        %v499 = vld [vmem:[%s301 + $0xb0] sm:$0x7f]
        %v500 = vld [vmem:[%s301 + $0xb8] sm:$0x7f]
        %v501 = vld [vmem:[%s301 + $0xc0] sm:$0x7f]
        %v502 = vld [vmem:[%s301 + $0xc8] sm:$0x7f]
        %v503 = vld [vmem:[%s301 + $0xd0] sm:$0x7f]
        %v504 = vld [vmem:[%s301 + $0xd8] sm:$0x7f]
        %v505 = vld [vmem:[%s301 + $0xe0] sm:$0x7f]
        %v506 = vld [vmem:[%s301 + $0xe8] sm:$0x7f]
        %v507 = vld [vmem:[%s301 + $0xf0] sm:$0x7f]
        %v508 = vld [vmem:[%s301 + $0xf8] sm:$0x7f]
        %v509 = vld [vmem:[%s301 + $0x100] sm:$0x7f]
        %v510 = vld [vmem:[%s301 + $0x108] sm:$0x7f]
        %v511 = vld [vmem:[%s301 + $0x110] sm:$0x7f]
        %v512 = vld [vmem:[%s301 + $0x118] sm:$0x7f]
        %v513 = vld [vmem:[%s301 + $0x120] sm:$0x7f]
        %v514 = vld [vmem:[%s301 + $0x128] sm:$0x7f]
        %v515 = vld [vmem:[%s301 + $0x130] sm:$0x7f]
        %v516 = vld [vmem:[%s301 + $0x138] sm:$0x7f]
        %v517 = vld [vmem:[%s301 + $0x140] sm:$0x7f]
        %v518 = vld [vmem:[%s301 + $0x148] sm:$0x7f]
        %v519 = vld [vmem:[%s301 + $0x150] sm:$0x7f]
        %v520 = vld [vmem:[%s301 + $0x158] sm:$0x7f]
        %v521 = vld [vmem:[%s301 + $0x160] sm:$0x7f]
        %v522 = vld [vmem:[%s301 + $0x168] sm:$0x7f]
        %v523 = vld [vmem:[%s301 + $0x170] sm:$0x7f]
        %v524 = vld [vmem:[%s301 + $0x178] sm:$0x7f]
        %v525 = vld [vmem:[%s301 + $0x180] sm:$0x7f]
        %v526 = vld [vmem:[%s301 + $0x188] sm:$0x7f]
        %v527 = vld [vmem:[%s301 + $0x190] sm:$0x7f]
        %v528 = vld [vmem:[%s301 + $0x198] sm:$0x7f]
        %v529 = vld [vmem:[%s301 + $0x1a0] sm:$0x7f]
        %v530 = vld [vmem:[%s301 + $0x1a8] sm:$0x7f]
        %v531 = vld [vmem:[%s301 + $0x1b0] sm:$0x7f]
        %v532 = vld [vmem:[%s301 + $0x1b8] sm:$0x7f]
        %v589 = vrot.slane %v477, 7
        %v590 = vrot.slane %v478, 7
        %v591 = vrot.slane %v479, 7
        %v592 = vrot.slane %v480, 7
        %v593 = vrot.slane %v481, 7
        %v594 = vrot.slane %v482, 7
        %v595 = vrot.slane %v483, 7
        %v596 = vrot.slane %v484, 7
        %v597 = vrot.slane %v485, 7
        %v598 = vrot.slane %v486, 7
        %v599 = vrot.slane %v487, 7
        %v600 = vrot.slane %v488, 7
        %v601 = vrot.slane %v489, 7
        %v602 = vrot.slane %v490, 7
        %v603 = vrot.slane %v491, 7
        %v604 = vrot.slane %v492, 7
        %v605 = vrot.slane %v493, 7
        %v606 = vrot.slane %v494, 7
        %v607 = vrot.slane %v495, 7
        %v608 = vrot.slane %v496, 7
        %v609 = vrot.slane %v497, 7
        %v610 = vrot.slane %v498, 7
        %v611 = vrot.slane %v499, 7
        %v612 = vrot.slane %v500, 7
        %v613 = vrot.slane %v501, 7
        %v614 = vrot.slane %v502, 7
        %v615 = vrot.slane %v503, 7
        %v616 = vrot.slane %v504, 7
        %v617 = vrot.slane %v505, 7
        %v618 = vrot.slane %v506, 7
        %v619 = vrot.slane %v507, 7
        %v620 = vrot.slane %v508, 7
        %v621 = vrot.slane %v509, 7
        %v622 = vrot.slane %v510, 7
        %v623 = vrot.slane %v511, 7
        %v624 = vrot.slane %v512, 7
        %v625 = vrot.slane %v513, 7
        %v626 = vrot.slane %v514, 7
        %v627 = vrot.slane %v515, 7
        %v628 = vrot.slane %v516, 7
        %v629 = vrot.slane %v517, 7
        %v630 = vrot.slane %v518, 7
        %v631 = vrot.slane %v519, 7
        %v632 = vrot.slane %v520, 7
        %v633 = vrot.slane %v521, 7
        %v634 = vrot.slane %v522, 7
        %v635 = vrot.slane %v523, 7
        %v636 = vrot.slane %v524, 7
        %v637 = vrot.slane %v525, 7
        %v638 = vrot.slane %v526, 7
        %v639 = vrot.slane %v527, 7
        %v640 = vrot.slane %v528, 7
        %v641 = vrot.slane %v529, 7
        %v642 = vrot.slane %v530, 7
        %v643 = vrot.slane %v531, 7
        %v644 = vrot.slane %v532, 7
        %s701 = scalar_lea.vmem [#allocation2], 128
        %702 = vst [vmem:[%s701] sm:$0xfe] %v589
        %703 = vst [vmem:[%s701 + $0x8] sm:$0xfe] %v590
        %704 = vst [vmem:[%s701 + $0x10] sm:$0xfe] %v591
        %705 = vst [vmem:[%s701 + $0x18] sm:$0xfe] %v592
        %706 = vst [vmem:[%s701 + $0x20] sm:$0xfe] %v593
        %707 = vst [vmem:[%s701 + $0x28] sm:$0xfe] %v594
        %708 = vst [vmem:[%s701 + $0x30] sm:$0xfe] %v595
        %709 = vst [vmem:[%s701 + $0x38] sm:$0xfe] %v596
        %710 = vst [vmem:[%s701 + $0x80] sm:$0xfe] %v597
        %711 = vst [vmem:[%s701 + $0x88] sm:$0xfe] %v598
        %712 = vst [vmem:[%s701 + $0x90] sm:$0xfe] %v599
        %713 = vst [vmem:[%s701 + $0x98] sm:$0xfe] %v600
        %714 = vst [vmem:[%s701 + $0xa0] sm:$0xfe] %v601
        %715 = vst [vmem:[%s701 + $0xa8] sm:$0xfe] %v602
        %716 = vst [vmem:[%s701 + $0xb0] sm:$0xfe] %v603
        %717 = vst [vmem:[%s701 + $0xb8] sm:$0xfe] %v604
        %718 = vst [vmem:[%s701 + $0x100] sm:$0xfe] %v605
        %719 = vst [vmem:[%s701 + $0x108] sm:$0xfe] %v606
        %720 = vst [vmem:[%s701 + $0x110] sm:$0xfe] %v607
        %721 = vst [vmem:[%s701 + $0x118] sm:$0xfe] %v608
        %722 = vst [vmem:[%s701 + $0x120] sm:$0xfe] %v609
        %723 = vst [vmem:[%s701 + $0x128] sm:$0xfe] %v610
        %724 = vst [vmem:[%s701 + $0x130] sm:$0xfe] %v611
        %725 = vst [vmem:[%s701 + $0x138] sm:$0xfe] %v612
        %726 = vst [vmem:[%s701 + $0x180] sm:$0xfe] %v613
        %727 = vst [vmem:[%s701 + $0x188] sm:$0xfe] %v614
        %728 = vst [vmem:[%s701 + $0x190] sm:$0xfe] %v615
        %729 = vst [vmem:[%s701 + $0x198] sm:$0xfe] %v616
        %730 = vst [vmem:[%s701 + $0x1a0] sm:$0xfe] %v617
        %731 = vst [vmem:[%s701 + $0x1a8] sm:$0xfe] %v618
        %732 = vst [vmem:[%s701 + $0x1b0] sm:$0xfe] %v619
        %733 = vst [vmem:[%s701 + $0x1b8] sm:$0xfe] %v620
        %734 = vst [vmem:[%s701 + $0x200] sm:$0xfe] %v621
        %735 = vst [vmem:[%s701 + $0x208] sm:$0xfe] %v622
        %736 = vst [vmem:[%s701 + $0x210] sm:$0xfe] %v623
        %737 = vst [vmem:[%s701 + $0x218] sm:$0xfe] %v624
        %738 = vst [vmem:[%s701 + $0x220] sm:$0xfe] %v625
        %739 = vst [vmem:[%s701 + $0x228] sm:$0xfe] %v626
        %740 = vst [vmem:[%s701 + $0x230] sm:$0xfe] %v627
        %741 = vst [vmem:[%s701 + $0x238] sm:$0xfe] %v628
        %742 = vst [vmem:[%s701 + $0x280] sm:$0xfe] %v629
        %743 = vst [vmem:[%s701 + $0x288] sm:$0xfe] %v630
        %744 = vst [vmem:[%s701 + $0x290] sm:$0xfe] %v631
        %745 = vst [vmem:[%s701 + $0x298] sm:$0xfe] %v632
        %746 = vst [vmem:[%s701 + $0x2a0] sm:$0xfe] %v633
        %747 = vst [vmem:[%s701 + $0x2a8] sm:$0xfe] %v634
        %748 = vst [vmem:[%s701 + $0x2b0] sm:$0xfe] %v635
        %749 = vst [vmem:[%s701 + $0x2b8] sm:$0xfe] %v636
        %750 = vst [vmem:[%s701 + $0x300] sm:$0xfe] %v637
        %751 = vst [vmem:[%s701 + $0x308] sm:$0xfe] %v638
        %752 = vst [vmem:[%s701 + $0x310] sm:$0xfe] %v639
        %753 = vst [vmem:[%s701 + $0x318] sm:$0xfe] %v640
        %754 = vst [vmem:[%s701 + $0x320] sm:$0xfe] %v641
        %755 = vst [vmem:[%s701 + $0x328] sm:$0xfe] %v642
        %756 = vst [vmem:[%s701 + $0x330] sm:$0xfe] %v643
        %757 = vst [vmem:[%s701 + $0x338] sm:$0xfe] %v644
        %v758 = vld [vmem:[%s308] sm:$0x7]
        %v759 = vld [vmem:[%s308 + $0x20] sm:$0x7]
        %v760 = vld [vmem:[%s308 + $0x40] sm:$0x7]
        %v761 = vld [vmem:[#allocation2] sm:$0x7f]
        %v762 = vld [vmem:[#allocation2 + $0x80] sm:$0x7f]
        %v763 = vld [vmem:[#allocation2 + $0x100] sm:$0x7f]
        %v764 = vld [vmem:[#allocation2 + $0x180] sm:$0x7f]
        %v765 = vld [vmem:[#allocation2 + $0x200] sm:$0x7f]
        %v766 = vld [vmem:[#allocation2 + $0x280] sm:$0x7f]
        %v767 = vld [vmem:[#allocation2 + $0x300] sm:$0x7f]
        %v768 = vld [vmem:[#allocation2 + $0x380] sm:$0x7f]
        %v769 = vld [vmem:[#allocation2 + $0x400] sm:$0x7f]
        %v770 = vlaneseq
        %v771 = vshrl.u32 %v770, 7
        %v772 = vsub.s32 0, %v771
        %v773 = vrot.slane %v758, %v772
        %v774 = vmul.f32 %v761, %v773
        %v775 = vmul.f32 %v762, %v773
        %v776 = vmul.f32 %v763, %v773
        %v777 = vmul.f32 %v764, %v773
        %v778 = vmul.f32 %v765, %v773
        %v779 = vmul.f32 %v766, %v773
        %v780 = vmul.f32 %v767, %v773
        %v781 = vadd.f32 %v774, 0.0
        %v782 = vadd.f32 %v775, 0.0
        %v783 = vadd.f32 %v776, 0.0
        %v784 = vadd.f32 %v777, 0.0
        %v785 = vadd.f32 %v778, 0.0
        %v786 = vadd.f32 %v779, 0.0
        %v787 = vadd.f32 %v780, 0.0
        %v788 = vlaneseq
        %v789 = vshrl.u32 %v788, 7
        %v790 = vsub.s32 0, %v789
        %v791 = vrot.slane %v759, %v790
        %v792 = vmul.f32 %v762, %v791
        %v793 = vmul.f32 %v763, %v791
        %v794 = vmul.f32 %v764, %v791
        %v795 = vmul.f32 %v765, %v791
        %v796 = vmul.f32 %v766, %v791
        %v797 = vmul.f32 %v767, %v791
        %v798 = vmul.f32 %v768, %v791
        %v799 = vadd.f32 %v781, %v792
        %v800 = vadd.f32 %v782, %v793
        %v801 = vadd.f32 %v783, %v794
        %v802 = vadd.f32 %v784, %v795
        %v803 = vadd.f32 %v785, %v796
        %v804 = vadd.f32 %v786, %v797
        %v805 = vadd.f32 %v787, %v798
        %v806 = vlaneseq
        %v807 = vshrl.u32 %v806, 7
        %v808 = vsub.s32 0, %v807
        %v809 = vrot.slane %v760, %v808
        %v810 = vmul.f32 %v763, %v809
        %v811 = vmul.f32 %v764, %v809
        %v812 = vmul.f32 %v765, %v809
        %v813 = vmul.f32 %v766, %v809
        %v814 = vmul.f32 %v767, %v809
        %v815 = vmul.f32 %v768, %v809
        %v816 = vmul.f32 %v769, %v809
        %v817 = vadd.f32 %v799, %v810
        %v818 = vadd.f32 %v800, %v811
        %v819 = vadd.f32 %v801, %v812
        %v820 = vadd.f32 %v802, %v813
        %v821 = vadd.f32 %v803, %v814
        %v822 = vadd.f32 %v804, %v815
        %v823 = vadd.f32 %v805, %v816
        %v824 = vld [vmem:[#allocation2] sm:$0xfe]
        %v825 = vld [vmem:[#allocation2 + $0x80] sm:$0xfe]
        %v826 = vld [vmem:[#allocation2 + $0x100] sm:$0xfe]
        %v827 = vld [vmem:[#allocation2 + $0x180] sm:$0xfe]
        %v828 = vld [vmem:[#allocation2 + $0x200] sm:$0xfe]
        %v829 = vld [vmem:[#allocation2 + $0x280] sm:$0xfe]
        %v830 = vld [vmem:[#allocation2 + $0x300] sm:$0xfe]
        %v831 = vld [vmem:[#allocation2 + $0x380] sm:$0xfe]
        %v832 = vld [vmem:[#allocation2 + $0x400] sm:$0xfe]
        %v833 = vlaneseq
        %v834 = vshrl.u32 %v833, 7
        %v835 = vsub.s32 1, %v834
        %v836 = vrot.slane %v758, %v835
        %v837 = vmul.f32 %v824, %v836
        %v838 = vmul.f32 %v825, %v836
        %v839 = vmul.f32 %v826, %v836
        %v840 = vmul.f32 %v827, %v836
        %v841 = vmul.f32 %v828, %v836
        %v842 = vmul.f32 %v829, %v836
        %v843 = vmul.f32 %v830, %v836
        %v851 = vrot.slane %v837, 1
        %v852 = vrot.slane %v838, 1
        %v853 = vrot.slane %v839, 1
        %v854 = vrot.slane %v840, 1
        %v855 = vrot.slane %v841, 1
        %v856 = vrot.slane %v842, 1
        %v857 = vrot.slane %v843, 1
        %v865 = vadd.f32 %v817, %v851
        %v866 = vadd.f32 %v818, %v852
        %v867 = vadd.f32 %v819, %v853
        %v868 = vadd.f32 %v820, %v854
        %v869 = vadd.f32 %v821, %v855
        %v870 = vadd.f32 %v822, %v856
        %v871 = vadd.f32 %v823, %v857
        %v872 = vlaneseq
        %v873 = vshrl.u32 %v872, 7
        %v874 = vsub.s32 1, %v873
        %v875 = vrot.slane %v759, %v874
        %v876 = vmul.f32 %v825, %v875
        %v877 = vmul.f32 %v826, %v875
        %v878 = vmul.f32 %v827, %v875
        %v879 = vmul.f32 %v828, %v875
        %v880 = vmul.f32 %v829, %v875
        %v881 = vmul.f32 %v830, %v875
        %v882 = vmul.f32 %v831, %v875
        %v890 = vrot.slane %v876, 1
        %v891 = vrot.slane %v877, 1
        %v892 = vrot.slane %v878, 1
        %v893 = vrot.slane %v879, 1
        %v894 = vrot.slane %v880, 1
        %v895 = vrot.slane %v881, 1
        %v896 = vrot.slane %v882, 1
        %v904 = vadd.f32 %v865, %v890
        %v905 = vadd.f32 %v866, %v891
        %v906 = vadd.f32 %v867, %v892
        %v907 = vadd.f32 %v868, %v893
        %v908 = vadd.f32 %v869, %v894
        %v909 = vadd.f32 %v870, %v895
        %v910 = vadd.f32 %v871, %v896
        %v911 = vlaneseq
        %v912 = vshrl.u32 %v911, 7
        %v913 = vsub.s32 1, %v912
        %v914 = vrot.slane %v760, %v913
        %v915 = vmul.f32 %v826, %v914
        %v916 = vmul.f32 %v827, %v914
        %v917 = vmul.f32 %v828, %v914
        %v918 = vmul.f32 %v829, %v914
        %v919 = vmul.f32 %v830, %v914
        %v920 = vmul.f32 %v831, %v914
        %v921 = vmul.f32 %v832, %v914
        %v929 = vrot.slane %v915, 1
        %v930 = vrot.slane %v916, 1
        %v931 = vrot.slane %v917, 1
        %v932 = vrot.slane %v918, 1
        %v933 = vrot.slane %v919, 1
        %v934 = vrot.slane %v920, 1
        %v935 = vrot.slane %v921, 1
        %v943 = vadd.f32 %v904, %v929
        %v944 = vadd.f32 %v905, %v930
        %v945 = vadd.f32 %v906, %v931
        %v946 = vadd.f32 %v907, %v932
        %v947 = vadd.f32 %v908, %v933
        %v948 = vadd.f32 %v909, %v934
        %v949 = vadd.f32 %v910, %v935
        %v950 = vld [vmem:[#allocation2] sm:$0xfc]
        %v951 = vld [vmem:[#allocation2 + $0x40] sm:$0x1]
        %v952 = vld [vmem:[#allocation2 + $0x80] sm:$0xfc]
        %v953 = vld [vmem:[#allocation2 + $0xc0] sm:$0x1]
        %v954 = vld [vmem:[#allocation2 + $0x100] sm:$0xfc]
        %v955 = vld [vmem:[#allocation2 + $0x140] sm:$0x1]
        %v956 = vld [vmem:[#allocation2 + $0x180] sm:$0xfc]
        %v957 = vld [vmem:[#allocation2 + $0x1c0] sm:$0x1]
        %v958 = vld [vmem:[#allocation2 + $0x200] sm:$0xfc]
        %v959 = vld [vmem:[#allocation2 + $0x240] sm:$0x1]
        %v960 = vld [vmem:[#allocation2 + $0x280] sm:$0xfc]
        %v961 = vld [vmem:[#allocation2 + $0x2c0] sm:$0x1]
        %v962 = vld [vmem:[#allocation2 + $0x300] sm:$0xfc]
        %v963 = vld [vmem:[#allocation2 + $0x340] sm:$0x1]
        %v964 = vld [vmem:[#allocation2 + $0x380] sm:$0xfc]
        %v965 = vld [vmem:[#allocation2 + $0x3c0] sm:$0x1]
        %v966 = vld [vmem:[#allocation2 + $0x400] sm:$0xfc]
        %v967 = vld [vmem:[#allocation2 + $0x440] sm:$0x1]
        %v968 = vlaneseq
        %v969 = vshrl.u32 %v968, 7
        %v970 = vsub.s32 2, %v969
        %v971 = vrot.slane %v758, %v970
        %v972 = vmul.f32 %v950, %v971
        %v973 = vmul.f32 %v951, %v971
        %v974 = vmul.f32 %v952, %v971
        %v975 = vmul.f32 %v953, %v971
        %v976 = vmul.f32 %v954, %v971
        %v977 = vmul.f32 %v955, %v971
        %v978 = vmul.f32 %v956, %v971
        %v979 = vmul.f32 %v957, %v971
        %v980 = vmul.f32 %v958, %v971
        %v981 = vmul.f32 %v959, %v971
        %v982 = vmul.f32 %v960, %v971
        %v983 = vmul.f32 %v961, %v971
        %v984 = vmul.f32 %v962, %v971
        %v985 = vmul.f32 %v963, %v971
        %vm1000 = vcmask 1045504
        %v1001 = vrot.slane %v972, 2
        %v1002 = vrot.slane %v973, 2
        %v1003 = vsel %vm1000, %v1001, %v1002
        %v1004 = vrot.slane %v974, 2
        %v1005 = vrot.slane %v975, 2
        %v1006 = vsel %vm1000, %v1004, %v1005
        %v1007 = vrot.slane %v976, 2
        %v1008 = vrot.slane %v977, 2
        %v1009 = vsel %vm1000, %v1007, %v1008
        %v1010 = vrot.slane %v978, 2
        %v1011 = vrot.slane %v979, 2
        %v1012 = vsel %vm1000, %v1010, %v1011
        %v1013 = vrot.slane %v980, 2
        %v1014 = vrot.slane %v981, 2
        %v1015 = vsel %vm1000, %v1013, %v1014
        %v1016 = vrot.slane %v982, 2
        %v1017 = vrot.slane %v983, 2
        %v1018 = vsel %vm1000, %v1016, %v1017
        %v1019 = vrot.slane %v984, 2
        %v1020 = vrot.slane %v985, 2
        %v1021 = vsel %vm1000, %v1019, %v1020
        %v1029 = vadd.f32 %v943, %v1003
        %v1030 = vadd.f32 %v944, %v1006
        %v1031 = vadd.f32 %v945, %v1009
        %v1032 = vadd.f32 %v946, %v1012
        %v1033 = vadd.f32 %v947, %v1015
        %v1034 = vadd.f32 %v948, %v1018
        %v1035 = vadd.f32 %v949, %v1021
        %v1036 = vlaneseq
        %v1037 = vshrl.u32 %v1036, 7
        %v1038 = vsub.s32 2, %v1037
        %v1039 = vrot.slane %v759, %v1038
        %v1040 = vmul.f32 %v952, %v1039
        %v1041 = vmul.f32 %v953, %v1039
        %v1042 = vmul.f32 %v954, %v1039
        %v1043 = vmul.f32 %v955, %v1039
        %v1044 = vmul.f32 %v956, %v1039
        %v1045 = vmul.f32 %v957, %v1039
        %v1046 = vmul.f32 %v958, %v1039
        %v1047 = vmul.f32 %v959, %v1039
        %v1048 = vmul.f32 %v960, %v1039
        %v1049 = vmul.f32 %v961, %v1039
        %v1050 = vmul.f32 %v962, %v1039
        %v1051 = vmul.f32 %v963, %v1039
        %v1052 = vmul.f32 %v964, %v1039
        %v1053 = vmul.f32 %v965, %v1039
        %v1068 = vrot.slane %v1040, 2
        %v1069 = vrot.slane %v1041, 2
        %v1070 = vsel %vm1000, %v1068, %v1069
        %v1071 = vrot.slane %v1042, 2
        %v1072 = vrot.slane %v1043, 2
        %v1073 = vsel %vm1000, %v1071, %v1072
        %v1074 = vrot.slane %v1044, 2
        %v1075 = vrot.slane %v1045, 2
        %v1076 = vsel %vm1000, %v1074, %v1075
        %v1077 = vrot.slane %v1046, 2
        %v1078 = vrot.slane %v1047, 2
        %v1079 = vsel %vm1000, %v1077, %v1078
        %v1080 = vrot.slane %v1048, 2
        %v1081 = vrot.slane %v1049, 2
        %v1082 = vsel %vm1000, %v1080, %v1081
        %v1083 = vrot.slane %v1050, 2
        %v1084 = vrot.slane %v1051, 2
        %v1085 = vsel %vm1000, %v1083, %v1084
        %v1086 = vrot.slane %v1052, 2
        %v1087 = vrot.slane %v1053, 2
        %v1088 = vsel %vm1000, %v1086, %v1087
        %v1096 = vadd.f32 %v1029, %v1070
        %v1097 = vadd.f32 %v1030, %v1073
        %v1098 = vadd.f32 %v1031, %v1076
        %v1099 = vadd.f32 %v1032, %v1079
        %v1100 = vadd.f32 %v1033, %v1082
        %v1101 = vadd.f32 %v1034, %v1085
        %v1102 = vadd.f32 %v1035, %v1088
        %v1103 = vlaneseq
        %v1104 = vshrl.u32 %v1103, 7
        %v1105 = vsub.s32 2, %v1104
        %v1106 = vrot.slane %v760, %v1105
        %v1107 = vmul.f32 %v954, %v1106
        %v1108 = vmul.f32 %v955, %v1106
        %v1109 = vmul.f32 %v956, %v1106
        %v1110 = vmul.f32 %v957, %v1106
        %v1111 = vmul.f32 %v958, %v1106
        %v1112 = vmul.f32 %v959, %v1106
        %v1113 = vmul.f32 %v960, %v1106
        %v1114 = vmul.f32 %v961, %v1106
        %v1115 = vmul.f32 %v962, %v1106
        %v1116 = vmul.f32 %v963, %v1106
        %v1117 = vmul.f32 %v964, %v1106
        %v1118 = vmul.f32 %v965, %v1106
        %v1119 = vmul.f32 %v966, %v1106
        %v1120 = vmul.f32 %v967, %v1106
        %v1135 = vrot.slane %v1107, 2
        %v1136 = vrot.slane %v1108, 2
        %v1137 = vsel %vm1000, %v1135, %v1136
        %v1138 = vrot.slane %v1109, 2
        %v1139 = vrot.slane %v1110, 2
        %v1140 = vsel %vm1000, %v1138, %v1139
        %v1141 = vrot.slane %v1111, 2
        %v1142 = vrot.slane %v1112, 2
        %v1143 = vsel %vm1000, %v1141, %v1142
        %v1144 = vrot.slane %v1113, 2
        %v1145 = vrot.slane %v1114, 2
        %v1146 = vsel %vm1000, %v1144, %v1145
        %v1147 = vrot.slane %v1115, 2
        %v1148 = vrot.slane %v1116, 2
        %v1149 = vsel %vm1000, %v1147, %v1148
        %v1150 = vrot.slane %v1117, 2
        %v1151 = vrot.slane %v1118, 2
        %v1152 = vsel %vm1000, %v1150, %v1151
        %v1153 = vrot.slane %v1119, 2
        %v1154 = vrot.slane %v1120, 2
        %v1155 = vsel %vm1000, %v1153, %v1154
        %v1163 = vadd.f32 %v1096, %v1137
        %v1164 = vadd.f32 %v1097, %v1140
        %v1165 = vadd.f32 %v1098, %v1143
        %v1166 = vadd.f32 %v1099, %v1146
        %v1167 = vadd.f32 %v1100, %v1149
        %v1168 = vadd.f32 %v1101, %v1152
        %v1169 = vadd.f32 %v1102, %v1155
        %1170 = vst [vmem:[%s329] sm:$0x7f] %v1163
        %1171 = vst [vmem:[%s329 + $0x40] sm:$0x7f] %v1164
        %1172 = vst [vmem:[%s329 + $0x80] sm:$0x7f] %v1165
        %1173 = vst [vmem:[%s329 + $0xc0] sm:$0x7f] %v1166
        %1174 = vst [vmem:[%s329 + $0x100] sm:$0x7f] %v1167
        %1175 = vst [vmem:[%s329 + $0x140] sm:$0x7f] %v1168
        %1176 = vst [vmem:[%s329 + $0x180] sm:$0x7f] %v1169
        %v1177 = vld [vmem:[%s308 + $0x4] sm:$0x7]
        %v1178 = vld [vmem:[%s308 + $0x24] sm:$0x7]
        %v1179 = vld [vmem:[%s308 + $0x44] sm:$0x7]
        %v1180 = vld [vmem:[#allocation2 + $0x8] sm:$0x7f]
        %v1181 = vld [vmem:[#allocation2 + $0x88] sm:$0x7f]
        %v1182 = vld [vmem:[#allocation2 + $0x108] sm:$0x7f]
        %v1183 = vld [vmem:[#allocation2 + $0x188] sm:$0x7f]
        %v1184 = vld [vmem:[#allocation2 + $0x208] sm:$0x7f]
        %v1185 = vld [vmem:[#allocation2 + $0x288] sm:$0x7f]
        %v1186 = vld [vmem:[#allocation2 + $0x308] sm:$0x7f]
        %v1187 = vld [vmem:[#allocation2 + $0x388] sm:$0x7f]
        %v1188 = vld [vmem:[#allocation2 + $0x408] sm:$0x7f]
        %v1189 = vlaneseq
        %v1190 = vshrl.u32 %v1189, 7
        %v1191 = vsub.s32 0, %v1190
        %v1192 = vrot.slane %v1177, %v1191
        %v1193 = vmul.f32 %v1180, %v1192
        %v1194 = vmul.f32 %v1181, %v1192
        %v1195 = vmul.f32 %v1182, %v1192
        %v1196 = vmul.f32 %v1183, %v1192
        %v1197 = vmul.f32 %v1184, %v1192
        %v1198 = vmul.f32 %v1185, %v1192
        %v1199 = vmul.f32 %v1186, %v1192
        %v1200 = vadd.f32 %v1193, 0.0
        %v1201 = vadd.f32 %v1194, 0.0
        %v1202 = vadd.f32 %v1195, 0.0
        %v1203 = vadd.f32 %v1196, 0.0
        %v1204 = vadd.f32 %v1197, 0.0
        %v1205 = vadd.f32 %v1198, 0.0
        %v1206 = vadd.f32 %v1199, 0.0
        %v1207 = vlaneseq
        %v1208 = vshrl.u32 %v1207, 7
        %v1209 = vsub.s32 0, %v1208
        %v1210 = vrot.slane %v1178, %v1209
        %v1211 = vmul.f32 %v1181, %v1210
        %v1212 = vmul.f32 %v1182, %v1210
        %v1213 = vmul.f32 %v1183, %v1210
        %v1214 = vmul.f32 %v1184, %v1210
        %v1215 = vmul.f32 %v1185, %v1210
        %v1216 = vmul.f32 %v1186, %v1210
        %v1217 = vmul.f32 %v1187, %v1210
        %v1218 = vadd.f32 %v1200, %v1211
        %v1219 = vadd.f32 %v1201, %v1212
        %v1220 = vadd.f32 %v1202, %v1213
        %v1221 = vadd.f32 %v1203, %v1214
        %v1222 = vadd.f32 %v1204, %v1215
        %v1223 = vadd.f32 %v1205, %v1216
        %v1224 = vadd.f32 %v1206, %v1217
        %v1225 = vlaneseq
        %v1226 = vshrl.u32 %v1225, 7
        %v1227 = vsub.s32 0, %v1226
        %v1228 = vrot.slane %v1179, %v1227
        %v1229 = vmul.f32 %v1182, %v1228
        %v1230 = vmul.f32 %v1183, %v1228
        %v1231 = vmul.f32 %v1184, %v1228
        %v1232 = vmul.f32 %v1185, %v1228
        %v1233 = vmul.f32 %v1186, %v1228
        %v1234 = vmul.f32 %v1187, %v1228
        %v1235 = vmul.f32 %v1188, %v1228
        %v1236 = vadd.f32 %v1218, %v1229
        %v1237 = vadd.f32 %v1219, %v1230
        %v1238 = vadd.f32 %v1220, %v1231
        %v1239 = vadd.f32 %v1221, %v1232
        %v1240 = vadd.f32 %v1222, %v1233
        %v1241 = vadd.f32 %v1223, %v1234
        %v1242 = vadd.f32 %v1224, %v1235
        %v1243 = vld [vmem:[#allocation2 + $0x8] sm:$0xfe]
        %v1244 = vld [vmem:[#allocation2 + $0x88] sm:$0xfe]
        %v1245 = vld [vmem:[#allocation2 + $0x108] sm:$0xfe]
        %v1246 = vld [vmem:[#allocation2 + $0x188] sm:$0xfe]
        %v1247 = vld [vmem:[#allocation2 + $0x208] sm:$0xfe]
        %v1248 = vld [vmem:[#allocation2 + $0x288] sm:$0xfe]
        %v1249 = vld [vmem:[#allocation2 + $0x308] sm:$0xfe]
        %v1250 = vld [vmem:[#allocation2 + $0x388] sm:$0xfe]
        %v1251 = vld [vmem:[#allocation2 + $0x408] sm:$0xfe]
        %v1252 = vlaneseq
        %v1253 = vshrl.u32 %v1252, 7
        %v1254 = vsub.s32 1, %v1253
        %v1255 = vrot.slane %v1177, %v1254
        %v1256 = vmul.f32 %v1243, %v1255
        %v1257 = vmul.f32 %v1244, %v1255
        %v1258 = vmul.f32 %v1245, %v1255
        %v1259 = vmul.f32 %v1246, %v1255
        %v1260 = vmul.f32 %v1247, %v1255
        %v1261 = vmul.f32 %v1248, %v1255
        %v1262 = vmul.f32 %v1249, %v1255
        %v1270 = vrot.slane %v1256, 1
        %v1271 = vrot.slane %v1257, 1
        %v1272 = vrot.slane %v1258, 1
        %v1273 = vrot.slane %v1259, 1
        %v1274 = vrot.slane %v1260, 1
        %v1275 = vrot.slane %v1261, 1
        %v1276 = vrot.slane %v1262, 1
        %v1284 = vadd.f32 %v1236, %v1270
        %v1285 = vadd.f32 %v1237, %v1271
        %v1286 = vadd.f32 %v1238, %v1272
        %v1287 = vadd.f32 %v1239, %v1273
        %v1288 = vadd.f32 %v1240, %v1274
        %v1289 = vadd.f32 %v1241, %v1275
        %v1290 = vadd.f32 %v1242, %v1276
        %v1291 = vlaneseq
        %v1292 = vshrl.u32 %v1291, 7
        %v1293 = vsub.s32 1, %v1292
        %v1294 = vrot.slane %v1178, %v1293
        %v1295 = vmul.f32 %v1244, %v1294
        %v1296 = vmul.f32 %v1245, %v1294
        %v1297 = vmul.f32 %v1246, %v1294
        %v1298 = vmul.f32 %v1247, %v1294
        %v1299 = vmul.f32 %v1248, %v1294
        %v1300 = vmul.f32 %v1249, %v1294
        %v1301 = vmul.f32 %v1250, %v1294
        %v1309 = vrot.slane %v1295, 1
        %v1310 = vrot.slane %v1296, 1
        %v1311 = vrot.slane %v1297, 1
        %v1312 = vrot.slane %v1298, 1
        %v1313 = vrot.slane %v1299, 1
        %v1314 = vrot.slane %v1300, 1
        %v1315 = vrot.slane %v1301, 1
        %v1323 = vadd.f32 %v1284, %v1309
        %v1324 = vadd.f32 %v1285, %v1310
        %v1325 = vadd.f32 %v1286, %v1311
        %v1326 = vadd.f32 %v1287, %v1312
        %v1327 = vadd.f32 %v1288, %v1313
        %v1328 = vadd.f32 %v1289, %v1314
        %v1329 = vadd.f32 %v1290, %v1315
        %v1330 = vlaneseq
        %v1331 = vshrl.u32 %v1330, 7
        %v1332 = vsub.s32 1, %v1331
        %v1333 = vrot.slane %v1179, %v1332
        %v1334 = vmul.f32 %v1245, %v1333
        %v1335 = vmul.f32 %v1246, %v1333
        %v1336 = vmul.f32 %v1247, %v1333
        %v1337 = vmul.f32 %v1248, %v1333
        %v1338 = vmul.f32 %v1249, %v1333
        %v1339 = vmul.f32 %v1250, %v1333
        %v1340 = vmul.f32 %v1251, %v1333
        %v1348 = vrot.slane %v1334, 1
        %v1349 = vrot.slane %v1335, 1
        %v1350 = vrot.slane %v1336, 1
        %v1351 = vrot.slane %v1337, 1
        %v1352 = vrot.slane %v1338, 1
        %v1353 = vrot.slane %v1339, 1
        %v1354 = vrot.slane %v1340, 1
        %v1362 = vadd.f32 %v1323, %v1348
        %v1363 = vadd.f32 %v1324, %v1349
        %v1364 = vadd.f32 %v1325, %v1350
        %v1365 = vadd.f32 %v1326, %v1351
        %v1366 = vadd.f32 %v1327, %v1352
        %v1367 = vadd.f32 %v1328, %v1353
        %v1368 = vadd.f32 %v1329, %v1354
        %v1369 = vld [vmem:[#allocation2 + $0x8] sm:$0xfc]
        %v1370 = vld [vmem:[#allocation2 + $0x48] sm:$0x1]
        %v1371 = vld [vmem:[#allocation2 + $0x88] sm:$0xfc]
        %v1372 = vld [vmem:[#allocation2 + $0xc8] sm:$0x1]
        %v1373 = vld [vmem:[#allocation2 + $0x108] sm:$0xfc]
        %v1374 = vld [vmem:[#allocation2 + $0x148] sm:$0x1]
        %v1375 = vld [vmem:[#allocation2 + $0x188] sm:$0xfc]
        %v1376 = vld [vmem:[#allocation2 + $0x1c8] sm:$0x1]
        %v1377 = vld [vmem:[#allocation2 + $0x208] sm:$0xfc]
        %v1378 = vld [vmem:[#allocation2 + $0x248] sm:$0x1]
        %v1379 = vld [vmem:[#allocation2 + $0x288] sm:$0xfc]
        %v1380 = vld [vmem:[#allocation2 + $0x2c8] sm:$0x1]
        %v1381 = vld [vmem:[#allocation2 + $0x308] sm:$0xfc]
        %v1382 = vld [vmem:[#allocation2 + $0x348] sm:$0x1]
        %v1383 = vld [vmem:[#allocation2 + $0x388] sm:$0xfc]
        %v1384 = vld [vmem:[#allocation2 + $0x3c8] sm:$0x1]
        %v1385 = vld [vmem:[#allocation2 + $0x408] sm:$0xfc]
        %v1386 = vld [vmem:[#allocation2 + $0x448] sm:$0x1]
        %v1387 = vlaneseq
        %v1388 = vshrl.u32 %v1387, 7
        %v1389 = vsub.s32 2, %v1388
        %v1390 = vrot.slane %v1177, %v1389
        %v1391 = vmul.f32 %v1369, %v1390
        %v1392 = vmul.f32 %v1370, %v1390
        %v1393 = vmul.f32 %v1371, %v1390
        %v1394 = vmul.f32 %v1372, %v1390
        %v1395 = vmul.f32 %v1373, %v1390
        %v1396 = vmul.f32 %v1374, %v1390
        %v1397 = vmul.f32 %v1375, %v1390
        %v1398 = vmul.f32 %v1376, %v1390
        %v1399 = vmul.f32 %v1377, %v1390
        %v1400 = vmul.f32 %v1378, %v1390
        %v1401 = vmul.f32 %v1379, %v1390
        %v1402 = vmul.f32 %v1380, %v1390
        %v1403 = vmul.f32 %v1381, %v1390
        %v1404 = vmul.f32 %v1382, %v1390
        %v1419 = vrot.slane %v1391, 2
        %v1420 = vrot.slane %v1392, 2
        %v1421 = vsel %vm1000, %v1419, %v1420
        %v1422 = vrot.slane %v1393, 2
        %v1423 = vrot.slane %v1394, 2
        %v1424 = vsel %vm1000, %v1422, %v1423
        %v1425 = vrot.slane %v1395, 2
        %v1426 = vrot.slane %v1396, 2
        %v1427 = vsel %vm1000, %v1425, %v1426
        %v1428 = vrot.slane %v1397, 2
        %v1429 = vrot.slane %v1398, 2
        %v1430 = vsel %vm1000, %v1428, %v1429
        %v1431 = vrot.slane %v1399, 2
        %v1432 = vrot.slane %v1400, 2
        %v1433 = vsel %vm1000, %v1431, %v1432
        %v1434 = vrot.slane %v1401, 2
        %v1435 = vrot.slane %v1402, 2
        %v1436 = vsel %vm1000, %v1434, %v1435
        %v1437 = vrot.slane %v1403, 2
        %v1438 = vrot.slane %v1404, 2
        %v1439 = vsel %vm1000, %v1437, %v1438
        %v1447 = vadd.f32 %v1362, %v1421
        %v1448 = vadd.f32 %v1363, %v1424
        %v1449 = vadd.f32 %v1364, %v1427
        %v1450 = vadd.f32 %v1365, %v1430
        %v1451 = vadd.f32 %v1366, %v1433
        %v1452 = vadd.f32 %v1367, %v1436
        %v1453 = vadd.f32 %v1368, %v1439
        %v1454 = vlaneseq
        %v1455 = vshrl.u32 %v1454, 7
        %v1456 = vsub.s32 2, %v1455
        %v1457 = vrot.slane %v1178, %v1456
        %v1458 = vmul.f32 %v1371, %v1457
        %v1459 = vmul.f32 %v1372, %v1457
        %v1460 = vmul.f32 %v1373, %v1457
        %v1461 = vmul.f32 %v1374, %v1457
        %v1462 = vmul.f32 %v1375, %v1457
        %v1463 = vmul.f32 %v1376, %v1457
        %v1464 = vmul.f32 %v1377, %v1457
        %v1465 = vmul.f32 %v1378, %v1457
        %v1466 = vmul.f32 %v1379, %v1457
        %v1467 = vmul.f32 %v1380, %v1457
        %v1468 = vmul.f32 %v1381, %v1457
        %v1469 = vmul.f32 %v1382, %v1457
        %v1470 = vmul.f32 %v1383, %v1457
        %v1471 = vmul.f32 %v1384, %v1457
        %v1486 = vrot.slane %v1458, 2
        %v1487 = vrot.slane %v1459, 2
        %v1488 = vsel %vm1000, %v1486, %v1487
        %v1489 = vrot.slane %v1460, 2
        %v1490 = vrot.slane %v1461, 2
        %v1491 = vsel %vm1000, %v1489, %v1490
        %v1492 = vrot.slane %v1462, 2
        %v1493 = vrot.slane %v1463, 2
        %v1494 = vsel %vm1000, %v1492, %v1493
        %v1495 = vrot.slane %v1464, 2
        %v1496 = vrot.slane %v1465, 2
        %v1497 = vsel %vm1000, %v1495, %v1496
        %v1498 = vrot.slane %v1466, 2
        %v1499 = vrot.slane %v1467, 2
        %v1500 = vsel %vm1000, %v1498, %v1499
        %v1501 = vrot.slane %v1468, 2
        %v1502 = vrot.slane %v1469, 2
        %v1503 = vsel %vm1000, %v1501, %v1502
        %v1504 = vrot.slane %v1470, 2
        %v1505 = vrot.slane %v1471, 2
        %v1506 = vsel %vm1000, %v1504, %v1505
        %v1514 = vadd.f32 %v1447, %v1488
        %v1515 = vadd.f32 %v1448, %v1491
        %v1516 = vadd.f32 %v1449, %v1494
        %v1517 = vadd.f32 %v1450, %v1497
        %v1518 = vadd.f32 %v1451, %v1500
        %v1519 = vadd.f32 %v1452, %v1503
        %v1520 = vadd.f32 %v1453, %v1506
        %v1521 = vlaneseq
        %v1522 = vshrl.u32 %v1521, 7
        %v1523 = vsub.s32 2, %v1522
        %v1524 = vrot.slane %v1179, %v1523
        %v1525 = vmul.f32 %v1373, %v1524
        %v1526 = vmul.f32 %v1374, %v1524
        %v1527 = vmul.f32 %v1375, %v1524
        %v1528 = vmul.f32 %v1376, %v1524
        %v1529 = vmul.f32 %v1377, %v1524
        %v1530 = vmul.f32 %v1378, %v1524
        %v1531 = vmul.f32 %v1379, %v1524
        %v1532 = vmul.f32 %v1380, %v1524
        %v1533 = vmul.f32 %v1381, %v1524
        %v1534 = vmul.f32 %v1382, %v1524
        %v1535 = vmul.f32 %v1383, %v1524
        %v1536 = vmul.f32 %v1384, %v1524
        %v1537 = vmul.f32 %v1385, %v1524
        %v1538 = vmul.f32 %v1386, %v1524
        %v1553 = vrot.slane %v1525, 2
        %v1554 = vrot.slane %v1526, 2
        %v1555 = vsel %vm1000, %v1553, %v1554
        %v1556 = vrot.slane %v1527, 2
        %v1557 = vrot.slane %v1528, 2
        %v1558 = vsel %vm1000, %v1556, %v1557
        %v1559 = vrot.slane %v1529, 2
        %v1560 = vrot.slane %v1530, 2
        %v1561 = vsel %vm1000, %v1559, %v1560
        %v1562 = vrot.slane %v1531, 2
        %v1563 = vrot.slane %v1532, 2
        %v1564 = vsel %vm1000, %v1562, %v1563
        %v1565 = vrot.slane %v1533, 2
        %v1566 = vrot.slane %v1534, 2
        %v1567 = vsel %vm1000, %v1565, %v1566
        %v1568 = vrot.slane %v1535, 2
        %v1569 = vrot.slane %v1536, 2
        %v1570 = vsel %vm1000, %v1568, %v1569
        %v1571 = vrot.slane %v1537, 2
        %v1572 = vrot.slane %v1538, 2
        %v1573 = vsel %vm1000, %v1571, %v1572
        %v1581 = vadd.f32 %v1514, %v1555
        %v1582 = vadd.f32 %v1515, %v1558
        %v1583 = vadd.f32 %v1516, %v1561
        %v1584 = vadd.f32 %v1517, %v1564
        %v1585 = vadd.f32 %v1518, %v1567
        %v1586 = vadd.f32 %v1519, %v1570
        %v1587 = vadd.f32 %v1520, %v1573
        %1588 = vst [vmem:[%s329 + $0x8] sm:$0x7f] %v1581
        %1589 = vst [vmem:[%s329 + $0x48] sm:$0x7f] %v1582
        %1590 = vst [vmem:[%s329 + $0x88] sm:$0x7f] %v1583
        %1591 = vst [vmem:[%s329 + $0xc8] sm:$0x7f] %v1584
        %1592 = vst [vmem:[%s329 + $0x108] sm:$0x7f] %v1585
        %1593 = vst [vmem:[%s329 + $0x148] sm:$0x7f] %v1586
        %1594 = vst [vmem:[%s329 + $0x188] sm:$0x7f] %v1587
        %v1595 = vld [vmem:[%s308 + $0x8] sm:$0x7]
        %v1596 = vld [vmem:[%s308 + $0x28] sm:$0x7]
        %v1597 = vld [vmem:[%s308 + $0x48] sm:$0x7]
        %v1598 = vld [vmem:[#allocation2 + $0x10] sm:$0x7f]
        %v1599 = vld [vmem:[#allocation2 + $0x90] sm:$0x7f]
        %v1600 = vld [vmem:[#allocation2 + $0x110] sm:$0x7f]
        %v1601 = vld [vmem:[#allocation2 + $0x190] sm:$0x7f]
        %v1602 = vld [vmem:[#allocation2 + $0x210] sm:$0x7f]
        %v1603 = vld [vmem:[#allocation2 + $0x290] sm:$0x7f]
        %v1604 = vld [vmem:[#allocation2 + $0x310] sm:$0x7f]
        %v1605 = vld [vmem:[#allocation2 + $0x390] sm:$0x7f]
        %v1606 = vld [vmem:[#allocation2 + $0x410] sm:$0x7f]
        %v1607 = vlaneseq
        %v1608 = vshrl.u32 %v1607, 7
        %v1609 = vsub.s32 0, %v1608
        %v1610 = vrot.slane %v1595, %v1609
        %v1611 = vmul.f32 %v1598, %v1610
        %v1612 = vmul.f32 %v1599, %v1610
        %v1613 = vmul.f32 %v1600, %v1610
        %v1614 = vmul.f32 %v1601, %v1610
        %v1615 = vmul.f32 %v1602, %v1610
        %v1616 = vmul.f32 %v1603, %v1610
        %v1617 = vmul.f32 %v1604, %v1610
        %v1618 = vadd.f32 %v1611, 0.0
        %v1619 = vadd.f32 %v1612, 0.0
        %v1620 = vadd.f32 %v1613, 0.0
        %v1621 = vadd.f32 %v1614, 0.0
        %v1622 = vadd.f32 %v1615, 0.0
        %v1623 = vadd.f32 %v1616, 0.0
        %v1624 = vadd.f32 %v1617, 0.0
        %v1625 = vlaneseq
        %v1626 = vshrl.u32 %v1625, 7
        %v1627 = vsub.s32 0, %v1626
        %v1628 = vrot.slane %v1596, %v1627
        %v1629 = vmul.f32 %v1599, %v1628
        %v1630 = vmul.f32 %v1600, %v1628
        %v1631 = vmul.f32 %v1601, %v1628
        %v1632 = vmul.f32 %v1602, %v1628
        %v1633 = vmul.f32 %v1603, %v1628
        %v1634 = vmul.f32 %v1604, %v1628
        %v1635 = vmul.f32 %v1605, %v1628
        %v1636 = vadd.f32 %v1618, %v1629
        %v1637 = vadd.f32 %v1619, %v1630
        %v1638 = vadd.f32 %v1620, %v1631
        %v1639 = vadd.f32 %v1621, %v1632
        %v1640 = vadd.f32 %v1622, %v1633
        %v1641 = vadd.f32 %v1623, %v1634
        %v1642 = vadd.f32 %v1624, %v1635
        %v1643 = vlaneseq
        %v1644 = vshrl.u32 %v1643, 7
        %v1645 = vsub.s32 0, %v1644
        %v1646 = vrot.slane %v1597, %v1645
        %v1647 = vmul.f32 %v1600, %v1646
        %v1648 = vmul.f32 %v1601, %v1646
        %v1649 = vmul.f32 %v1602, %v1646
        %v1650 = vmul.f32 %v1603, %v1646
        %v1651 = vmul.f32 %v1604, %v1646
        %v1652 = vmul.f32 %v1605, %v1646
        %v1653 = vmul.f32 %v1606, %v1646
        %v1654 = vadd.f32 %v1636, %v1647
        %v1655 = vadd.f32 %v1637, %v1648
        %v1656 = vadd.f32 %v1638, %v1649
        %v1657 = vadd.f32 %v1639, %v1650
        %v1658 = vadd.f32 %v1640, %v1651
        %v1659 = vadd.f32 %v1641, %v1652
        %v1660 = vadd.f32 %v1642, %v1653
        %v1661 = vld [vmem:[#allocation2 + $0x10] sm:$0xfe]
        %v1662 = vld [vmem:[#allocation2 + $0x90] sm:$0xfe]
        %v1663 = vld [vmem:[#allocation2 + $0x110] sm:$0xfe]
        %v1664 = vld [vmem:[#allocation2 + $0x190] sm:$0xfe]
        %v1665 = vld [vmem:[#allocation2 + $0x210] sm:$0xfe]
        %v1666 = vld [vmem:[#allocation2 + $0x290] sm:$0xfe]
        %v1667 = vld [vmem:[#allocation2 + $0x310] sm:$0xfe]
        %v1668 = vld [vmem:[#allocation2 + $0x390] sm:$0xfe]
        %v1669 = vld [vmem:[#allocation2 + $0x410] sm:$0xfe]
        %v1670 = vlaneseq
        %v1671 = vshrl.u32 %v1670, 7
        %v1672 = vsub.s32 1, %v1671
        %v1673 = vrot.slane %v1595, %v1672
        %v1674 = vmul.f32 %v1661, %v1673
        %v1675 = vmul.f32 %v1662, %v1673
        %v1676 = vmul.f32 %v1663, %v1673
        %v1677 = vmul.f32 %v1664, %v1673
        %v1678 = vmul.f32 %v1665, %v1673
        %v1679 = vmul.f32 %v1666, %v1673
        %v1680 = vmul.f32 %v1667, %v1673
        %v1688 = vrot.slane %v1674, 1
        %v1689 = vrot.slane %v1675, 1
        %v1690 = vrot.slane %v1676, 1
        %v1691 = vrot.slane %v1677, 1
        %v1692 = vrot.slane %v1678, 1
        %v1693 = vrot.slane %v1679, 1
        %v1694 = vrot.slane %v1680, 1
        %v1702 = vadd.f32 %v1654, %v1688
        %v1703 = vadd.f32 %v1655, %v1689
        %v1704 = vadd.f32 %v1656, %v1690
        %v1705 = vadd.f32 %v1657, %v1691
        %v1706 = vadd.f32 %v1658, %v1692
        %v1707 = vadd.f32 %v1659, %v1693
        %v1708 = vadd.f32 %v1660, %v1694
        %v1709 = vlaneseq
        %v1710 = vshrl.u32 %v1709, 7
        %v1711 = vsub.s32 1, %v1710
        %v1712 = vrot.slane %v1596, %v1711
        %v1713 = vmul.f32 %v1662, %v1712
        %v1714 = vmul.f32 %v1663, %v1712
        %v1715 = vmul.f32 %v1664, %v1712
        %v1716 = vmul.f32 %v1665, %v1712
        %v1717 = vmul.f32 %v1666, %v1712
        %v1718 = vmul.f32 %v1667, %v1712
        %v1719 = vmul.f32 %v1668, %v1712
        %v1727 = vrot.slane %v1713, 1
        %v1728 = vrot.slane %v1714, 1
        %v1729 = vrot.slane %v1715, 1
        %v1730 = vrot.slane %v1716, 1
        %v1731 = vrot.slane %v1717, 1
        %v1732 = vrot.slane %v1718, 1
        %v1733 = vrot.slane %v1719, 1
        %v1741 = vadd.f32 %v1702, %v1727
        %v1742 = vadd.f32 %v1703, %v1728
        %v1743 = vadd.f32 %v1704, %v1729
        %v1744 = vadd.f32 %v1705, %v1730
        %v1745 = vadd.f32 %v1706, %v1731
        %v1746 = vadd.f32 %v1707, %v1732
        %v1747 = vadd.f32 %v1708, %v1733
        %v1748 = vlaneseq
        %v1749 = vshrl.u32 %v1748, 7
        %v1750 = vsub.s32 1, %v1749
        %v1751 = vrot.slane %v1597, %v1750
        %v1752 = vmul.f32 %v1663, %v1751
        %v1753 = vmul.f32 %v1664, %v1751
        %v1754 = vmul.f32 %v1665, %v1751
        %v1755 = vmul.f32 %v1666, %v1751
        %v1756 = vmul.f32 %v1667, %v1751
        %v1757 = vmul.f32 %v1668, %v1751
        %v1758 = vmul.f32 %v1669, %v1751
        %v1766 = vrot.slane %v1752, 1
        %v1767 = vrot.slane %v1753, 1
        %v1768 = vrot.slane %v1754, 1
        %v1769 = vrot.slane %v1755, 1
        %v1770 = vrot.slane %v1756, 1
        %v1771 = vrot.slane %v1757, 1
        %v1772 = vrot.slane %v1758, 1
        %v1780 = vadd.f32 %v1741, %v1766
        %v1781 = vadd.f32 %v1742, %v1767
        %v1782 = vadd.f32 %v1743, %v1768
        %v1783 = vadd.f32 %v1744, %v1769
        %v1784 = vadd.f32 %v1745, %v1770
        %v1785 = vadd.f32 %v1746, %v1771
        %v1786 = vadd.f32 %v1747, %v1772
        %v1787 = vld [vmem:[#allocation2 + $0x10] sm:$0xfc]
        %v1788 = vld [vmem:[#allocation2 + $0x50] sm:$0x1]
        %v1789 = vld [vmem:[#allocation2 + $0x90] sm:$0xfc]
        %v1790 = vld [vmem:[#allocation2 + $0xd0] sm:$0x1]
        %v1791 = vld [vmem:[#allocation2 + $0x110] sm:$0xfc]
        %v1792 = vld [vmem:[#allocation2 + $0x150] sm:$0x1]
        %v1793 = vld [vmem:[#allocation2 + $0x190] sm:$0xfc]
        %v1794 = vld [vmem:[#allocation2 + $0x1d0] sm:$0x1]
        %v1795 = vld [vmem:[#allocation2 + $0x210] sm:$0xfc]
        %v1796 = vld [vmem:[#allocation2 + $0x250] sm:$0x1]
        %v1797 = vld [vmem:[#allocation2 + $0x290] sm:$0xfc]
        %v1798 = vld [vmem:[#allocation2 + $0x2d0] sm:$0x1]
        %v1799 = vld [vmem:[#allocation2 + $0x310] sm:$0xfc]
        %v1800 = vld [vmem:[#allocation2 + $0x350] sm:$0x1]
        %v1801 = vld [vmem:[#allocation2 + $0x390] sm:$0xfc]
        %v1802 = vld [vmem:[#allocation2 + $0x3d0] sm:$0x1]
        %v1803 = vld [vmem:[#allocation2 + $0x410] sm:$0xfc]
        %v1804 = vld [vmem:[#allocation2 + $0x450] sm:$0x1]
        %v1805 = vlaneseq
        %v1806 = vshrl.u32 %v1805, 7
        %v1807 = vsub.s32 2, %v1806
        %v1808 = vrot.slane %v1595, %v1807
        %v1809 = vmul.f32 %v1787, %v1808
        %v1810 = vmul.f32 %v1788, %v1808
        %v1811 = vmul.f32 %v1789, %v1808
        %v1812 = vmul.f32 %v1790, %v1808
        %v1813 = vmul.f32 %v1791, %v1808
        %v1814 = vmul.f32 %v1792, %v1808
        %v1815 = vmul.f32 %v1793, %v1808
        %v1816 = vmul.f32 %v1794, %v1808
        %v1817 = vmul.f32 %v1795, %v1808
        %v1818 = vmul.f32 %v1796, %v1808
        %v1819 = vmul.f32 %v1797, %v1808
        %v1820 = vmul.f32 %v1798, %v1808
        %v1821 = vmul.f32 %v1799, %v1808
        %v1822 = vmul.f32 %v1800, %v1808
        %v1837 = vrot.slane %v1809, 2
        %v1838 = vrot.slane %v1810, 2
        %v1839 = vsel %vm1000, %v1837, %v1838
        %v1840 = vrot.slane %v1811, 2
        %v1841 = vrot.slane %v1812, 2
        %v1842 = vsel %vm1000, %v1840, %v1841
        %v1843 = vrot.slane %v1813, 2
        %v1844 = vrot.slane %v1814, 2
        %v1845 = vsel %vm1000, %v1843, %v1844
        %v1846 = vrot.slane %v1815, 2
        %v1847 = vrot.slane %v1816, 2
        %v1848 = vsel %vm1000, %v1846, %v1847
        %v1849 = vrot.slane %v1817, 2
        %v1850 = vrot.slane %v1818, 2
        %v1851 = vsel %vm1000, %v1849, %v1850
        %v1852 = vrot.slane %v1819, 2
        %v1853 = vrot.slane %v1820, 2
        %v1854 = vsel %vm1000, %v1852, %v1853
        %v1855 = vrot.slane %v1821, 2
        %v1856 = vrot.slane %v1822, 2
        %v1857 = vsel %vm1000, %v1855, %v1856
        %v1865 = vadd.f32 %v1780, %v1839
        %v1866 = vadd.f32 %v1781, %v1842
        %v1867 = vadd.f32 %v1782, %v1845
        %v1868 = vadd.f32 %v1783, %v1848
        %v1869 = vadd.f32 %v1784, %v1851
        %v1870 = vadd.f32 %v1785, %v1854
        %v1871 = vadd.f32 %v1786, %v1857
        %v1872 = vlaneseq
        %v1873 = vshrl.u32 %v1872, 7
        %v1874 = vsub.s32 2, %v1873
        %v1875 = vrot.slane %v1596, %v1874
        %v1876 = vmul.f32 %v1789, %v1875
        %v1877 = vmul.f32 %v1790, %v1875
        %v1878 = vmul.f32 %v1791, %v1875
        %v1879 = vmul.f32 %v1792, %v1875
        %v1880 = vmul.f32 %v1793, %v1875
        %v1881 = vmul.f32 %v1794, %v1875
        %v1882 = vmul.f32 %v1795, %v1875
        %v1883 = vmul.f32 %v1796, %v1875
        %v1884 = vmul.f32 %v1797, %v1875
        %v1885 = vmul.f32 %v1798, %v1875
        %v1886 = vmul.f32 %v1799, %v1875
        %v1887 = vmul.f32 %v1800, %v1875
        %v1888 = vmul.f32 %v1801, %v1875
        %v1889 = vmul.f32 %v1802, %v1875
        %v1904 = vrot.slane %v1876, 2
        %v1905 = vrot.slane %v1877, 2
        %v1906 = vsel %vm1000, %v1904, %v1905
        %v1907 = vrot.slane %v1878, 2
        %v1908 = vrot.slane %v1879, 2
        %v1909 = vsel %vm1000, %v1907, %v1908
        %v1910 = vrot.slane %v1880, 2
        %v1911 = vrot.slane %v1881, 2
        %v1912 = vsel %vm1000, %v1910, %v1911
        %v1913 = vrot.slane %v1882, 2
        %v1914 = vrot.slane %v1883, 2
        %v1915 = vsel %vm1000, %v1913, %v1914
        %v1916 = vrot.slane %v1884, 2
        %v1917 = vrot.slane %v1885, 2
        %v1918 = vsel %vm1000, %v1916, %v1917
        %v1919 = vrot.slane %v1886, 2
        %v1920 = vrot.slane %v1887, 2
        %v1921 = vsel %vm1000, %v1919, %v1920
        %v1922 = vrot.slane %v1888, 2
        %v1923 = vrot.slane %v1889, 2
        %v1924 = vsel %vm1000, %v1922, %v1923
        %v1932 = vadd.f32 %v1865, %v1906
        %v1933 = vadd.f32 %v1866, %v1909
        %v1934 = vadd.f32 %v1867, %v1912
        %v1935 = vadd.f32 %v1868, %v1915
        %v1936 = vadd.f32 %v1869, %v1918
        %v1937 = vadd.f32 %v1870, %v1921
        %v1938 = vadd.f32 %v1871, %v1924
        %v1939 = vlaneseq
        %v1940 = vshrl.u32 %v1939, 7
        %v1941 = vsub.s32 2, %v1940
        %v1942 = vrot.slane %v1597, %v1941
        %v1943 = vmul.f32 %v1791, %v1942
        %v1944 = vmul.f32 %v1792, %v1942
        %v1945 = vmul.f32 %v1793, %v1942
        %v1946 = vmul.f32 %v1794, %v1942
        %v1947 = vmul.f32 %v1795, %v1942
        %v1948 = vmul.f32 %v1796, %v1942
        %v1949 = vmul.f32 %v1797, %v1942
        %v1950 = vmul.f32 %v1798, %v1942
        %v1951 = vmul.f32 %v1799, %v1942
        %v1952 = vmul.f32 %v1800, %v1942
        %v1953 = vmul.f32 %v1801, %v1942
        %v1954 = vmul.f32 %v1802, %v1942
        %v1955 = vmul.f32 %v1803, %v1942
        %v1956 = vmul.f32 %v1804, %v1942
        %v1971 = vrot.slane %v1943, 2
        %v1972 = vrot.slane %v1944, 2
        %v1973 = vsel %vm1000, %v1971, %v1972
        %v1974 = vrot.slane %v1945, 2
        %v1975 = vrot.slane %v1946, 2
        %v1976 = vsel %vm1000, %v1974, %v1975
        %v1977 = vrot.slane %v1947, 2
        %v1978 = vrot.slane %v1948, 2
        %v1979 = vsel %vm1000, %v1977, %v1978
        %v1980 = vrot.slane %v1949, 2
        %v1981 = vrot.slane %v1950, 2
        %v1982 = vsel %vm1000, %v1980, %v1981
        %v1983 = vrot.slane %v1951, 2
        %v1984 = vrot.slane %v1952, 2
        %v1985 = vsel %vm1000, %v1983, %v1984
        %v1986 = vrot.slane %v1953, 2
        %v1987 = vrot.slane %v1954, 2
        %v1988 = vsel %vm1000, %v1986, %v1987
        %v1989 = vrot.slane %v1955, 2
        %v1990 = vrot.slane %v1956, 2
        %v1991 = vsel %vm1000, %v1989, %v1990
        %v1999 = vadd.f32 %v1932, %v1973
        %v2000 = vadd.f32 %v1933, %v1976
        %v2001 = vadd.f32 %v1934, %v1979
        %v2002 = vadd.f32 %v1935, %v1982
        %v2003 = vadd.f32 %v1936, %v1985
        %v2004 = vadd.f32 %v1937, %v1988
        %v2005 = vadd.f32 %v1938, %v1991
        %2006 = vst [vmem:[%s329 + $0x10] sm:$0x7f] %v1999
        %2007 = vst [vmem:[%s329 + $0x50] sm:$0x7f] %v2000
        %2008 = vst [vmem:[%s329 + $0x90] sm:$0x7f] %v2001
        %2009 = vst [vmem:[%s329 + $0xd0] sm:$0x7f] %v2002
        %2010 = vst [vmem:[%s329 + $0x110] sm:$0x7f] %v2003
        %2011 = vst [vmem:[%s329 + $0x150] sm:$0x7f] %v2004
        %2012 = vst [vmem:[%s329 + $0x190] sm:$0x7f] %v2005
        %v2013 = vld [vmem:[%s308 + $0xc] sm:$0x7]
        %v2014 = vld [vmem:[%s308 + $0x2c] sm:$0x7]
        %v2015 = vld [vmem:[%s308 + $0x4c] sm:$0x7]
        %v2016 = vld [vmem:[#allocation2 + $0x18] sm:$0x7f]
        %v2017 = vld [vmem:[#allocation2 + $0x98] sm:$0x7f]
        %v2018 = vld [vmem:[#allocation2 + $0x118] sm:$0x7f]
        %v2019 = vld [vmem:[#allocation2 + $0x198] sm:$0x7f]
        %v2020 = vld [vmem:[#allocation2 + $0x218] sm:$0x7f]
        %v2021 = vld [vmem:[#allocation2 + $0x298] sm:$0x7f]
        %v2022 = vld [vmem:[#allocation2 + $0x318] sm:$0x7f]
        %v2023 = vld [vmem:[#allocation2 + $0x398] sm:$0x7f]
        %v2024 = vld [vmem:[#allocation2 + $0x418] sm:$0x7f]
        %v2025 = vlaneseq
        %v2026 = vshrl.u32 %v2025, 7
        %v2027 = vsub.s32 0, %v2026
        %v2028 = vrot.slane %v2013, %v2027
        %v2029 = vmul.f32 %v2016, %v2028
        %v2030 = vmul.f32 %v2017, %v2028
        %v2031 = vmul.f32 %v2018, %v2028
        %v2032 = vmul.f32 %v2019, %v2028
        %v2033 = vmul.f32 %v2020, %v2028
        %v2034 = vmul.f32 %v2021, %v2028
        %v2035 = vmul.f32 %v2022, %v2028
        %v2036 = vadd.f32 %v2029, 0.0
        %v2037 = vadd.f32 %v2030, 0.0
        %v2038 = vadd.f32 %v2031, 0.0
        %v2039 = vadd.f32 %v2032, 0.0
        %v2040 = vadd.f32 %v2033, 0.0
        %v2041 = vadd.f32 %v2034, 0.0
        %v2042 = vadd.f32 %v2035, 0.0
        %v2043 = vlaneseq
        %v2044 = vshrl.u32 %v2043, 7
        %v2045 = vsub.s32 0, %v2044
        %v2046 = vrot.slane %v2014, %v2045
        %v2047 = vmul.f32 %v2017, %v2046
        %v2048 = vmul.f32 %v2018, %v2046
        %v2049 = vmul.f32 %v2019, %v2046
        %v2050 = vmul.f32 %v2020, %v2046
        %v2051 = vmul.f32 %v2021, %v2046
        %v2052 = vmul.f32 %v2022, %v2046
        %v2053 = vmul.f32 %v2023, %v2046
        %v2054 = vadd.f32 %v2036, %v2047
        %v2055 = vadd.f32 %v2037, %v2048
        %v2056 = vadd.f32 %v2038, %v2049
        %v2057 = vadd.f32 %v2039, %v2050
        %v2058 = vadd.f32 %v2040, %v2051
        %v2059 = vadd.f32 %v2041, %v2052
        %v2060 = vadd.f32 %v2042, %v2053
        %v2061 = vlaneseq
        %v2062 = vshrl.u32 %v2061, 7
        %v2063 = vsub.s32 0, %v2062
        %v2064 = vrot.slane %v2015, %v2063
        %v2065 = vmul.f32 %v2018, %v2064
        %v2066 = vmul.f32 %v2019, %v2064
        %v2067 = vmul.f32 %v2020, %v2064
        %v2068 = vmul.f32 %v2021, %v2064
        %v2069 = vmul.f32 %v2022, %v2064
        %v2070 = vmul.f32 %v2023, %v2064
        %v2071 = vmul.f32 %v2024, %v2064
        %v2072 = vadd.f32 %v2054, %v2065
        %v2073 = vadd.f32 %v2055, %v2066
        %v2074 = vadd.f32 %v2056, %v2067
        %v2075 = vadd.f32 %v2057, %v2068
        %v2076 = vadd.f32 %v2058, %v2069
        %v2077 = vadd.f32 %v2059, %v2070
        %v2078 = vadd.f32 %v2060, %v2071
        %v2079 = vld [vmem:[#allocation2 + $0x18] sm:$0xfe]
        %v2080 = vld [vmem:[#allocation2 + $0x98] sm:$0xfe]
        %v2081 = vld [vmem:[#allocation2 + $0x118] sm:$0xfe]
        %v2082 = vld [vmem:[#allocation2 + $0x198] sm:$0xfe]
        %v2083 = vld [vmem:[#allocation2 + $0x218] sm:$0xfe]
        %v2084 = vld [vmem:[#allocation2 + $0x298] sm:$0xfe]
        %v2085 = vld [vmem:[#allocation2 + $0x318] sm:$0xfe]
        %v2086 = vld [vmem:[#allocation2 + $0x398] sm:$0xfe]
        %v2087 = vld [vmem:[#allocation2 + $0x418] sm:$0xfe]
        %v2088 = vlaneseq
        %v2089 = vshrl.u32 %v2088, 7
        %v2090 = vsub.s32 1, %v2089
        %v2091 = vrot.slane %v2013, %v2090
        %v2092 = vmul.f32 %v2079, %v2091
        %v2093 = vmul.f32 %v2080, %v2091
        %v2094 = vmul.f32 %v2081, %v2091
        %v2095 = vmul.f32 %v2082, %v2091
        %v2096 = vmul.f32 %v2083, %v2091
        %v2097 = vmul.f32 %v2084, %v2091
        %v2098 = vmul.f32 %v2085, %v2091
        %v2106 = vrot.slane %v2092, 1
        %v2107 = vrot.slane %v2093, 1
        %v2108 = vrot.slane %v2094, 1
        %v2109 = vrot.slane %v2095, 1
        %v2110 = vrot.slane %v2096, 1
        %v2111 = vrot.slane %v2097, 1
        %v2112 = vrot.slane %v2098, 1
        %v2120 = vadd.f32 %v2072, %v2106
        %v2121 = vadd.f32 %v2073, %v2107
        %v2122 = vadd.f32 %v2074, %v2108
        %v2123 = vadd.f32 %v2075, %v2109
        %v2124 = vadd.f32 %v2076, %v2110
        %v2125 = vadd.f32 %v2077, %v2111
        %v2126 = vadd.f32 %v2078, %v2112
        %v2127 = vlaneseq
        %v2128 = vshrl.u32 %v2127, 7
        %v2129 = vsub.s32 1, %v2128
        %v2130 = vrot.slane %v2014, %v2129
        %v2131 = vmul.f32 %v2080, %v2130
        %v2132 = vmul.f32 %v2081, %v2130
        %v2133 = vmul.f32 %v2082, %v2130
        %v2134 = vmul.f32 %v2083, %v2130
        %v2135 = vmul.f32 %v2084, %v2130
        %v2136 = vmul.f32 %v2085, %v2130
        %v2137 = vmul.f32 %v2086, %v2130
        %v2145 = vrot.slane %v2131, 1
        %v2146 = vrot.slane %v2132, 1
        %v2147 = vrot.slane %v2133, 1
        %v2148 = vrot.slane %v2134, 1
        %v2149 = vrot.slane %v2135, 1
        %v2150 = vrot.slane %v2136, 1
        %v2151 = vrot.slane %v2137, 1
        %v2159 = vadd.f32 %v2120, %v2145
        %v2160 = vadd.f32 %v2121, %v2146
        %v2161 = vadd.f32 %v2122, %v2147
        %v2162 = vadd.f32 %v2123, %v2148
        %v2163 = vadd.f32 %v2124, %v2149
        %v2164 = vadd.f32 %v2125, %v2150
        %v2165 = vadd.f32 %v2126, %v2151
        %v2166 = vlaneseq
        %v2167 = vshrl.u32 %v2166, 7
        %v2168 = vsub.s32 1, %v2167
        %v2169 = vrot.slane %v2015, %v2168
        %v2170 = vmul.f32 %v2081, %v2169
        %v2171 = vmul.f32 %v2082, %v2169
        %v2172 = vmul.f32 %v2083, %v2169
        %v2173 = vmul.f32 %v2084, %v2169
        %v2174 = vmul.f32 %v2085, %v2169
        %v2175 = vmul.f32 %v2086, %v2169
        %v2176 = vmul.f32 %v2087, %v2169
        %v2184 = vrot.slane %v2170, 1
        %v2185 = vrot.slane %v2171, 1
        %v2186 = vrot.slane %v2172, 1
        %v2187 = vrot.slane %v2173, 1
        %v2188 = vrot.slane %v2174, 1
        %v2189 = vrot.slane %v2175, 1
        %v2190 = vrot.slane %v2176, 1
        %v2198 = vadd.f32 %v2159, %v2184
        %v2199 = vadd.f32 %v2160, %v2185
        %v2200 = vadd.f32 %v2161, %v2186
        %v2201 = vadd.f32 %v2162, %v2187
        %v2202 = vadd.f32 %v2163, %v2188
        %v2203 = vadd.f32 %v2164, %v2189
        %v2204 = vadd.f32 %v2165, %v2190
        %v2205 = vld [vmem:[#allocation2 + $0x18] sm:$0xfc]
        %v2206 = vld [vmem:[#allocation2 + $0x58] sm:$0x1]
        %v2207 = vld [vmem:[#allocation2 + $0x98] sm:$0xfc]
        %v2208 = vld [vmem:[#allocation2 + $0xd8] sm:$0x1]
        %v2209 = vld [vmem:[#allocation2 + $0x118] sm:$0xfc]
        %v2210 = vld [vmem:[#allocation2 + $0x158] sm:$0x1]
        %v2211 = vld [vmem:[#allocation2 + $0x198] sm:$0xfc]
        %v2212 = vld [vmem:[#allocation2 + $0x1d8] sm:$0x1]
        %v2213 = vld [vmem:[#allocation2 + $0x218] sm:$0xfc]
        %v2214 = vld [vmem:[#allocation2 + $0x258] sm:$0x1]
        %v2215 = vld [vmem:[#allocation2 + $0x298] sm:$0xfc]
        %v2216 = vld [vmem:[#allocation2 + $0x2d8] sm:$0x1]
        %v2217 = vld [vmem:[#allocation2 + $0x318] sm:$0xfc]
        %v2218 = vld [vmem:[#allocation2 + $0x358] sm:$0x1]
        %v2219 = vld [vmem:[#allocation2 + $0x398] sm:$0xfc]
        %v2220 = vld [vmem:[#allocation2 + $0x3d8] sm:$0x1]
        %v2221 = vld [vmem:[#allocation2 + $0x418] sm:$0xfc]
        %v2222 = vld [vmem:[#allocation2 + $0x458] sm:$0x1]
        %v2223 = vlaneseq
        %v2224 = vshrl.u32 %v2223, 7
        %v2225 = vsub.s32 2, %v2224
        %v2226 = vrot.slane %v2013, %v2225
        %v2227 = vmul.f32 %v2205, %v2226
        %v2228 = vmul.f32 %v2206, %v2226
        %v2229 = vmul.f32 %v2207, %v2226
        %v2230 = vmul.f32 %v2208, %v2226
        %v2231 = vmul.f32 %v2209, %v2226
        %v2232 = vmul.f32 %v2210, %v2226
        %v2233 = vmul.f32 %v2211, %v2226
        %v2234 = vmul.f32 %v2212, %v2226
        %v2235 = vmul.f32 %v2213, %v2226
        %v2236 = vmul.f32 %v2214, %v2226
        %v2237 = vmul.f32 %v2215, %v2226
        %v2238 = vmul.f32 %v2216, %v2226
        %v2239 = vmul.f32 %v2217, %v2226
        %v2240 = vmul.f32 %v2218, %v2226
        %v2255 = vrot.slane %v2227, 2
        %v2256 = vrot.slane %v2228, 2
        %v2257 = vsel %vm1000, %v2255, %v2256
        %v2258 = vrot.slane %v2229, 2
        %v2259 = vrot.slane %v2230, 2
        %v2260 = vsel %vm1000, %v2258, %v2259
        %v2261 = vrot.slane %v2231, 2
        %v2262 = vrot.slane %v2232, 2
        %v2263 = vsel %vm1000, %v2261, %v2262
        %v2264 = vrot.slane %v2233, 2
        %v2265 = vrot.slane %v2234, 2
        %v2266 = vsel %vm1000, %v2264, %v2265
        %v2267 = vrot.slane %v2235, 2
        %v2268 = vrot.slane %v2236, 2
        %v2269 = vsel %vm1000, %v2267, %v2268
        %v2270 = vrot.slane %v2237, 2
        %v2271 = vrot.slane %v2238, 2
        %v2272 = vsel %vm1000, %v2270, %v2271
        %v2273 = vrot.slane %v2239, 2
        %v2274 = vrot.slane %v2240, 2
        %v2275 = vsel %vm1000, %v2273, %v2274
        %v2283 = vadd.f32 %v2198, %v2257
        %v2284 = vadd.f32 %v2199, %v2260
        %v2285 = vadd.f32 %v2200, %v2263
        %v2286 = vadd.f32 %v2201, %v2266
        %v2287 = vadd.f32 %v2202, %v2269
        %v2288 = vadd.f32 %v2203, %v2272
        %v2289 = vadd.f32 %v2204, %v2275
        %v2290 = vlaneseq
        %v2291 = vshrl.u32 %v2290, 7
        %v2292 = vsub.s32 2, %v2291
        %v2293 = vrot.slane %v2014, %v2292
        %v2294 = vmul.f32 %v2207, %v2293
        %v2295 = vmul.f32 %v2208, %v2293
        %v2296 = vmul.f32 %v2209, %v2293
        %v2297 = vmul.f32 %v2210, %v2293
        %v2298 = vmul.f32 %v2211, %v2293
        %v2299 = vmul.f32 %v2212, %v2293
        %v2300 = vmul.f32 %v2213, %v2293
        %v2301 = vmul.f32 %v2214, %v2293
        %v2302 = vmul.f32 %v2215, %v2293
        %v2303 = vmul.f32 %v2216, %v2293
        %v2304 = vmul.f32 %v2217, %v2293
        %v2305 = vmul.f32 %v2218, %v2293
        %v2306 = vmul.f32 %v2219, %v2293
        %v2307 = vmul.f32 %v2220, %v2293
        %v2322 = vrot.slane %v2294, 2
        %v2323 = vrot.slane %v2295, 2
        %v2324 = vsel %vm1000, %v2322, %v2323
        %v2325 = vrot.slane %v2296, 2
        %v2326 = vrot.slane %v2297, 2
        %v2327 = vsel %vm1000, %v2325, %v2326
        %v2328 = vrot.slane %v2298, 2
        %v2329 = vrot.slane %v2299, 2
        %v2330 = vsel %vm1000, %v2328, %v2329
        %v2331 = vrot.slane %v2300, 2
        %v2332 = vrot.slane %v2301, 2
        %v2333 = vsel %vm1000, %v2331, %v2332
        %v2334 = vrot.slane %v2302, 2
        %v2335 = vrot.slane %v2303, 2
        %v2336 = vsel %vm1000, %v2334, %v2335
        %v2337 = vrot.slane %v2304, 2
        %v2338 = vrot.slane %v2305, 2
        %v2339 = vsel %vm1000, %v2337, %v2338
        %v2340 = vrot.slane %v2306, 2
        %v2341 = vrot.slane %v2307, 2
        %v2342 = vsel %vm1000, %v2340, %v2341
        %v2350 = vadd.f32 %v2283, %v2324
        %v2351 = vadd.f32 %v2284, %v2327
        %v2352 = vadd.f32 %v2285, %v2330
        %v2353 = vadd.f32 %v2286, %v2333
        %v2354 = vadd.f32 %v2287, %v2336
        %v2355 = vadd.f32 %v2288, %v2339
        %v2356 = vadd.f32 %v2289, %v2342
        %v2357 = vlaneseq
        %v2358 = vshrl.u32 %v2357, 7
        %v2359 = vsub.s32 2, %v2358
        %v2360 = vrot.slane %v2015, %v2359
        %v2361 = vmul.f32 %v2209, %v2360
        %v2362 = vmul.f32 %v2210, %v2360
        %v2363 = vmul.f32 %v2211, %v2360
        %v2364 = vmul.f32 %v2212, %v2360
        %v2365 = vmul.f32 %v2213, %v2360
        %v2366 = vmul.f32 %v2214, %v2360
        %v2367 = vmul.f32 %v2215, %v2360
        %v2368 = vmul.f32 %v2216, %v2360
        %v2369 = vmul.f32 %v2217, %v2360
        %v2370 = vmul.f32 %v2218, %v2360
        %v2371 = vmul.f32 %v2219, %v2360
        %v2372 = vmul.f32 %v2220, %v2360
        %v2373 = vmul.f32 %v2221, %v2360
        %v2374 = vmul.f32 %v2222, %v2360
        %v2389 = vrot.slane %v2361, 2
        %v2390 = vrot.slane %v2362, 2
        %v2391 = vsel %vm1000, %v2389, %v2390
        %v2392 = vrot.slane %v2363, 2
        %v2393 = vrot.slane %v2364, 2
        %v2394 = vsel %vm1000, %v2392, %v2393
        %v2395 = vrot.slane %v2365, 2
        %v2396 = vrot.slane %v2366, 2
        %v2397 = vsel %vm1000, %v2395, %v2396
        %v2398 = vrot.slane %v2367, 2
        %v2399 = vrot.slane %v2368, 2
        %v2400 = vsel %vm1000, %v2398, %v2399
        %v2401 = vrot.slane %v2369, 2
        %v2402 = vrot.slane %v2370, 2
        %v2403 = vsel %vm1000, %v2401, %v2402
        %v2404 = vrot.slane %v2371, 2
        %v2405 = vrot.slane %v2372, 2
        %v2406 = vsel %vm1000, %v2404, %v2405
        %v2407 = vrot.slane %v2373, 2
        %v2408 = vrot.slane %v2374, 2
        %v2409 = vsel %vm1000, %v2407, %v2408
        %v2417 = vadd.f32 %v2350, %v2391
        %v2418 = vadd.f32 %v2351, %v2394
        %v2419 = vadd.f32 %v2352, %v2397
        %v2420 = vadd.f32 %v2353, %v2400
        %v2421 = vadd.f32 %v2354, %v2403
        %v2422 = vadd.f32 %v2355, %v2406
        %v2423 = vadd.f32 %v2356, %v2409
        %2424 = vst [vmem:[%s329 + $0x18] sm:$0x7f] %v2417
        %2425 = vst [vmem:[%s329 + $0x58] sm:$0x7f] %v2418
        %2426 = vst [vmem:[%s329 + $0x98] sm:$0x7f] %v2419
        %2427 = vst [vmem:[%s329 + $0xd8] sm:$0x7f] %v2420
        %2428 = vst [vmem:[%s329 + $0x118] sm:$0x7f] %v2421
        %2429 = vst [vmem:[%s329 + $0x158] sm:$0x7f] %v2422
        %2430 = vst [vmem:[%s329 + $0x198] sm:$0x7f] %v2423
        %v2431 = vld [vmem:[%s308 + $0x10] sm:$0x7]
        %v2432 = vld [vmem:[%s308 + $0x30] sm:$0x7]
        %v2433 = vld [vmem:[%s308 + $0x50] sm:$0x7]
        %v2434 = vld [vmem:[#allocation2 + $0x20] sm:$0x7f]
        %v2435 = vld [vmem:[#allocation2 + $0xa0] sm:$0x7f]
        %v2436 = vld [vmem:[#allocation2 + $0x120] sm:$0x7f]
        %v2437 = vld [vmem:[#allocation2 + $0x1a0] sm:$0x7f]
        %v2438 = vld [vmem:[#allocation2 + $0x220] sm:$0x7f]
        %v2439 = vld [vmem:[#allocation2 + $0x2a0] sm:$0x7f]
        %v2440 = vld [vmem:[#allocation2 + $0x320] sm:$0x7f]
        %v2441 = vld [vmem:[#allocation2 + $0x3a0] sm:$0x7f]
        %v2442 = vld [vmem:[#allocation2 + $0x420] sm:$0x7f]
        %v2443 = vlaneseq
        %v2444 = vshrl.u32 %v2443, 7
        %v2445 = vsub.s32 0, %v2444
        %v2446 = vrot.slane %v2431, %v2445
        %v2447 = vmul.f32 %v2434, %v2446
        %v2448 = vmul.f32 %v2435, %v2446
        %v2449 = vmul.f32 %v2436, %v2446
        %v2450 = vmul.f32 %v2437, %v2446
        %v2451 = vmul.f32 %v2438, %v2446
        %v2452 = vmul.f32 %v2439, %v2446
        %v2453 = vmul.f32 %v2440, %v2446
        %v2454 = vadd.f32 %v2447, 0.0
        %v2455 = vadd.f32 %v2448, 0.0
        %v2456 = vadd.f32 %v2449, 0.0
        %v2457 = vadd.f32 %v2450, 0.0
        %v2458 = vadd.f32 %v2451, 0.0
        %v2459 = vadd.f32 %v2452, 0.0
        %v2460 = vadd.f32 %v2453, 0.0
        %v2461 = vlaneseq
        %v2462 = vshrl.u32 %v2461, 7
        %v2463 = vsub.s32 0, %v2462
        %v2464 = vrot.slane %v2432, %v2463
        %v2465 = vmul.f32 %v2435, %v2464
        %v2466 = vmul.f32 %v2436, %v2464
        %v2467 = vmul.f32 %v2437, %v2464
        %v2468 = vmul.f32 %v2438, %v2464
        %v2469 = vmul.f32 %v2439, %v2464
        %v2470 = vmul.f32 %v2440, %v2464
        %v2471 = vmul.f32 %v2441, %v2464
        %v2472 = vadd.f32 %v2454, %v2465
        %v2473 = vadd.f32 %v2455, %v2466
        %v2474 = vadd.f32 %v2456, %v2467
        %v2475 = vadd.f32 %v2457, %v2468
        %v2476 = vadd.f32 %v2458, %v2469
        %v2477 = vadd.f32 %v2459, %v2470
        %v2478 = vadd.f32 %v2460, %v2471
        %v2479 = vlaneseq
        %v2480 = vshrl.u32 %v2479, 7
        %v2481 = vsub.s32 0, %v2480
        %v2482 = vrot.slane %v2433, %v2481
        %v2483 = vmul.f32 %v2436, %v2482
        %v2484 = vmul.f32 %v2437, %v2482
        %v2485 = vmul.f32 %v2438, %v2482
        %v2486 = vmul.f32 %v2439, %v2482
        %v2487 = vmul.f32 %v2440, %v2482
        %v2488 = vmul.f32 %v2441, %v2482
        %v2489 = vmul.f32 %v2442, %v2482
        %v2490 = vadd.f32 %v2472, %v2483
        %v2491 = vadd.f32 %v2473, %v2484
        %v2492 = vadd.f32 %v2474, %v2485
        %v2493 = vadd.f32 %v2475, %v2486
        %v2494 = vadd.f32 %v2476, %v2487
        %v2495 = vadd.f32 %v2477, %v2488
        %v2496 = vadd.f32 %v2478, %v2489
        %v2497 = vld [vmem:[#allocation2 + $0x20] sm:$0xfe]
        %v2498 = vld [vmem:[#allocation2 + $0xa0] sm:$0xfe]
        %v2499 = vld [vmem:[#allocation2 + $0x120] sm:$0xfe]
        %v2500 = vld [vmem:[#allocation2 + $0x1a0] sm:$0xfe]
        %v2501 = vld [vmem:[#allocation2 + $0x220] sm:$0xfe]
        %v2502 = vld [vmem:[#allocation2 + $0x2a0] sm:$0xfe]
        %v2503 = vld [vmem:[#allocation2 + $0x320] sm:$0xfe]
        %v2504 = vld [vmem:[#allocation2 + $0x3a0] sm:$0xfe]
        %v2505 = vld [vmem:[#allocation2 + $0x420] sm:$0xfe]
        %v2506 = vlaneseq
        %v2507 = vshrl.u32 %v2506, 7
        %v2508 = vsub.s32 1, %v2507
        %v2509 = vrot.slane %v2431, %v2508
        %v2510 = vmul.f32 %v2497, %v2509
        %v2511 = vmul.f32 %v2498, %v2509
        %v2512 = vmul.f32 %v2499, %v2509
        %v2513 = vmul.f32 %v2500, %v2509
        %v2514 = vmul.f32 %v2501, %v2509
        %v2515 = vmul.f32 %v2502, %v2509
        %v2516 = vmul.f32 %v2503, %v2509
        %v2524 = vrot.slane %v2510, 1
        %v2525 = vrot.slane %v2511, 1
        %v2526 = vrot.slane %v2512, 1
        %v2527 = vrot.slane %v2513, 1
        %v2528 = vrot.slane %v2514, 1
        %v2529 = vrot.slane %v2515, 1
        %v2530 = vrot.slane %v2516, 1
        %v2538 = vadd.f32 %v2490, %v2524
        %v2539 = vadd.f32 %v2491, %v2525
        %v2540 = vadd.f32 %v2492, %v2526
        %v2541 = vadd.f32 %v2493, %v2527
        %v2542 = vadd.f32 %v2494, %v2528
        %v2543 = vadd.f32 %v2495, %v2529
        %v2544 = vadd.f32 %v2496, %v2530
        %v2545 = vlaneseq
        %v2546 = vshrl.u32 %v2545, 7
        %v2547 = vsub.s32 1, %v2546
        %v2548 = vrot.slane %v2432, %v2547
        %v2549 = vmul.f32 %v2498, %v2548
        %v2550 = vmul.f32 %v2499, %v2548
        %v2551 = vmul.f32 %v2500, %v2548
        %v2552 = vmul.f32 %v2501, %v2548
        %v2553 = vmul.f32 %v2502, %v2548
        %v2554 = vmul.f32 %v2503, %v2548
        %v2555 = vmul.f32 %v2504, %v2548
        %v2563 = vrot.slane %v2549, 1
        %v2564 = vrot.slane %v2550, 1
        %v2565 = vrot.slane %v2551, 1
        %v2566 = vrot.slane %v2552, 1
        %v2567 = vrot.slane %v2553, 1
        %v2568 = vrot.slane %v2554, 1
        %v2569 = vrot.slane %v2555, 1
        %v2577 = vadd.f32 %v2538, %v2563
        %v2578 = vadd.f32 %v2539, %v2564
        %v2579 = vadd.f32 %v2540, %v2565
        %v2580 = vadd.f32 %v2541, %v2566
        %v2581 = vadd.f32 %v2542, %v2567
        %v2582 = vadd.f32 %v2543, %v2568
        %v2583 = vadd.f32 %v2544, %v2569
        %v2584 = vlaneseq
        %v2585 = vshrl.u32 %v2584, 7
        %v2586 = vsub.s32 1, %v2585
        %v2587 = vrot.slane %v2433, %v2586
        %v2588 = vmul.f32 %v2499, %v2587
        %v2589 = vmul.f32 %v2500, %v2587
        %v2590 = vmul.f32 %v2501, %v2587
        %v2591 = vmul.f32 %v2502, %v2587
        %v2592 = vmul.f32 %v2503, %v2587
        %v2593 = vmul.f32 %v2504, %v2587
        %v2594 = vmul.f32 %v2505, %v2587
        %v2602 = vrot.slane %v2588, 1
        %v2603 = vrot.slane %v2589, 1
        %v2604 = vrot.slane %v2590, 1
        %v2605 = vrot.slane %v2591, 1
        %v2606 = vrot.slane %v2592, 1
        %v2607 = vrot.slane %v2593, 1
        %v2608 = vrot.slane %v2594, 1
        %v2616 = vadd.f32 %v2577, %v2602
        %v2617 = vadd.f32 %v2578, %v2603
        %v2618 = vadd.f32 %v2579, %v2604
        %v2619 = vadd.f32 %v2580, %v2605
        %v2620 = vadd.f32 %v2581, %v2606
        %v2621 = vadd.f32 %v2582, %v2607
        %v2622 = vadd.f32 %v2583, %v2608
        %v2623 = vld [vmem:[#allocation2 + $0x20] sm:$0xfc]
        %v2624 = vld [vmem:[#allocation2 + $0x60] sm:$0x1]
        %v2625 = vld [vmem:[#allocation2 + $0xa0] sm:$0xfc]
        %v2626 = vld [vmem:[#allocation2 + $0xe0] sm:$0x1]
        %v2627 = vld [vmem:[#allocation2 + $0x120] sm:$0xfc]
        %v2628 = vld [vmem:[#allocation2 + $0x160] sm:$0x1]
        %v2629 = vld [vmem:[#allocation2 + $0x1a0] sm:$0xfc]
        %v2630 = vld [vmem:[#allocation2 + $0x1e0] sm:$0x1]
        %v2631 = vld [vmem:[#allocation2 + $0x220] sm:$0xfc]
        %v2632 = vld [vmem:[#allocation2 + $0x260] sm:$0x1]
        %v2633 = vld [vmem:[#allocation2 + $0x2a0] sm:$0xfc]
        %v2634 = vld [vmem:[#allocation2 + $0x2e0] sm:$0x1]
        %v2635 = vld [vmem:[#allocation2 + $0x320] sm:$0xfc]
        %v2636 = vld [vmem:[#allocation2 + $0x360] sm:$0x1]
        %v2637 = vld [vmem:[#allocation2 + $0x3a0] sm:$0xfc]
        %v2638 = vld [vmem:[#allocation2 + $0x3e0] sm:$0x1]
        %v2639 = vld [vmem:[#allocation2 + $0x420] sm:$0xfc]
        %v2640 = vld [vmem:[#allocation2 + $0x460] sm:$0x1]
        %v2641 = vlaneseq
        %v2642 = vshrl.u32 %v2641, 7
        %v2643 = vsub.s32 2, %v2642
        %v2644 = vrot.slane %v2431, %v2643
        %v2645 = vmul.f32 %v2623, %v2644
        %v2646 = vmul.f32 %v2624, %v2644
        %v2647 = vmul.f32 %v2625, %v2644
        %v2648 = vmul.f32 %v2626, %v2644
        %v2649 = vmul.f32 %v2627, %v2644
        %v2650 = vmul.f32 %v2628, %v2644
        %v2651 = vmul.f32 %v2629, %v2644
        %v2652 = vmul.f32 %v2630, %v2644
        %v2653 = vmul.f32 %v2631, %v2644
        %v2654 = vmul.f32 %v2632, %v2644
        %v2655 = vmul.f32 %v2633, %v2644
        %v2656 = vmul.f32 %v2634, %v2644
        %v2657 = vmul.f32 %v2635, %v2644
        %v2658 = vmul.f32 %v2636, %v2644
        %v2673 = vrot.slane %v2645, 2
        %v2674 = vrot.slane %v2646, 2
        %v2675 = vsel %vm1000, %v2673, %v2674
        %v2676 = vrot.slane %v2647, 2
        %v2677 = vrot.slane %v2648, 2
        %v2678 = vsel %vm1000, %v2676, %v2677
        %v2679 = vrot.slane %v2649, 2
        %v2680 = vrot.slane %v2650, 2
        %v2681 = vsel %vm1000, %v2679, %v2680
        %v2682 = vrot.slane %v2651, 2
        %v2683 = vrot.slane %v2652, 2
        %v2684 = vsel %vm1000, %v2682, %v2683
        %v2685 = vrot.slane %v2653, 2
        %v2686 = vrot.slane %v2654, 2
        %v2687 = vsel %vm1000, %v2685, %v2686
        %v2688 = vrot.slane %v2655, 2
        %v2689 = vrot.slane %v2656, 2
        %v2690 = vsel %vm1000, %v2688, %v2689
        %v2691 = vrot.slane %v2657, 2
        %v2692 = vrot.slane %v2658, 2
        %v2693 = vsel %vm1000, %v2691, %v2692
        %v2701 = vadd.f32 %v2616, %v2675
        %v2702 = vadd.f32 %v2617, %v2678
        %v2703 = vadd.f32 %v2618, %v2681
        %v2704 = vadd.f32 %v2619, %v2684
        %v2705 = vadd.f32 %v2620, %v2687
        %v2706 = vadd.f32 %v2621, %v2690
        %v2707 = vadd.f32 %v2622, %v2693
        %v2708 = vlaneseq
        %v2709 = vshrl.u32 %v2708, 7
        %v2710 = vsub.s32 2, %v2709
        %v2711 = vrot.slane %v2432, %v2710
        %v2712 = vmul.f32 %v2625, %v2711
        %v2713 = vmul.f32 %v2626, %v2711
        %v2714 = vmul.f32 %v2627, %v2711
        %v2715 = vmul.f32 %v2628, %v2711
        %v2716 = vmul.f32 %v2629, %v2711
        %v2717 = vmul.f32 %v2630, %v2711
        %v2718 = vmul.f32 %v2631, %v2711
        %v2719 = vmul.f32 %v2632, %v2711
        %v2720 = vmul.f32 %v2633, %v2711
        %v2721 = vmul.f32 %v2634, %v2711
        %v2722 = vmul.f32 %v2635, %v2711
        %v2723 = vmul.f32 %v2636, %v2711
        %v2724 = vmul.f32 %v2637, %v2711
        %v2725 = vmul.f32 %v2638, %v2711
        %v2740 = vrot.slane %v2712, 2
        %v2741 = vrot.slane %v2713, 2
        %v2742 = vsel %vm1000, %v2740, %v2741
        %v2743 = vrot.slane %v2714, 2
        %v2744 = vrot.slane %v2715, 2
        %v2745 = vsel %vm1000, %v2743, %v2744
        %v2746 = vrot.slane %v2716, 2
        %v2747 = vrot.slane %v2717, 2
        %v2748 = vsel %vm1000, %v2746, %v2747
        %v2749 = vrot.slane %v2718, 2
        %v2750 = vrot.slane %v2719, 2
        %v2751 = vsel %vm1000, %v2749, %v2750
        %v2752 = vrot.slane %v2720, 2
        %v2753 = vrot.slane %v2721, 2
        %v2754 = vsel %vm1000, %v2752, %v2753
        %v2755 = vrot.slane %v2722, 2
        %v2756 = vrot.slane %v2723, 2
        %v2757 = vsel %vm1000, %v2755, %v2756
        %v2758 = vrot.slane %v2724, 2
        %v2759 = vrot.slane %v2725, 2
        %v2760 = vsel %vm1000, %v2758, %v2759
        %v2768 = vadd.f32 %v2701, %v2742
        %v2769 = vadd.f32 %v2702, %v2745
        %v2770 = vadd.f32 %v2703, %v2748
        %v2771 = vadd.f32 %v2704, %v2751
        %v2772 = vadd.f32 %v2705, %v2754
        %v2773 = vadd.f32 %v2706, %v2757
        %v2774 = vadd.f32 %v2707, %v2760
        %v2775 = vlaneseq
        %v2776 = vshrl.u32 %v2775, 7
        %v2777 = vsub.s32 2, %v2776
        %v2778 = vrot.slane %v2433, %v2777
        %v2779 = vmul.f32 %v2627, %v2778
        %v2780 = vmul.f32 %v2628, %v2778
        %v2781 = vmul.f32 %v2629, %v2778
        %v2782 = vmul.f32 %v2630, %v2778
        %v2783 = vmul.f32 %v2631, %v2778
        %v2784 = vmul.f32 %v2632, %v2778
        %v2785 = vmul.f32 %v2633, %v2778
        %v2786 = vmul.f32 %v2634, %v2778
        %v2787 = vmul.f32 %v2635, %v2778
        %v2788 = vmul.f32 %v2636, %v2778
        %v2789 = vmul.f32 %v2637, %v2778
        %v2790 = vmul.f32 %v2638, %v2778
        %v2791 = vmul.f32 %v2639, %v2778
        %v2792 = vmul.f32 %v2640, %v2778
        %v2807 = vrot.slane %v2779, 2
        %v2808 = vrot.slane %v2780, 2
        %v2809 = vsel %vm1000, %v2807, %v2808
        %v2810 = vrot.slane %v2781, 2
        %v2811 = vrot.slane %v2782, 2
        %v2812 = vsel %vm1000, %v2810, %v2811
        %v2813 = vrot.slane %v2783, 2
        %v2814 = vrot.slane %v2784, 2
        %v2815 = vsel %vm1000, %v2813, %v2814
        %v2816 = vrot.slane %v2785, 2
        %v2817 = vrot.slane %v2786, 2
        %v2818 = vsel %vm1000, %v2816, %v2817
        %v2819 = vrot.slane %v2787, 2
        %v2820 = vrot.slane %v2788, 2
        %v2821 = vsel %vm1000, %v2819, %v2820
        %v2822 = vrot.slane %v2789, 2
        %v2823 = vrot.slane %v2790, 2
        %v2824 = vsel %vm1000, %v2822, %v2823
        %v2825 = vrot.slane %v2791, 2
        %v2826 = vrot.slane %v2792, 2
        %v2827 = vsel %vm1000, %v2825, %v2826
        %v2835 = vadd.f32 %v2768, %v2809
        %v2836 = vadd.f32 %v2769, %v2812
        %v2837 = vadd.f32 %v2770, %v2815
        %v2838 = vadd.f32 %v2771, %v2818
        %v2839 = vadd.f32 %v2772, %v2821
        %v2840 = vadd.f32 %v2773, %v2824
        %v2841 = vadd.f32 %v2774, %v2827
        %2842 = vst [vmem:[%s329 + $0x20] sm:$0x7f] %v2835
        %2843 = vst [vmem:[%s329 + $0x60] sm:$0x7f] %v2836
        %2844 = vst [vmem:[%s329 + $0xa0] sm:$0x7f] %v2837
        %2845 = vst [vmem:[%s329 + $0xe0] sm:$0x7f] %v2838
        %2846 = vst [vmem:[%s329 + $0x120] sm:$0x7f] %v2839
        %2847 = vst [vmem:[%s329 + $0x160] sm:$0x7f] %v2840
        %2848 = vst [vmem:[%s329 + $0x1a0] sm:$0x7f] %v2841
        %v2849 = vld [vmem:[%s308 + $0x14] sm:$0x7]
        %v2850 = vld [vmem:[%s308 + $0x34] sm:$0x7]
        %v2851 = vld [vmem:[%s308 + $0x54] sm:$0x7]
        %v2852 = vld [vmem:[#allocation2 + $0x28] sm:$0x7f]
        %v2853 = vld [vmem:[#allocation2 + $0xa8] sm:$0x7f]
        %v2854 = vld [vmem:[#allocation2 + $0x128] sm:$0x7f]
        %v2855 = vld [vmem:[#allocation2 + $0x1a8] sm:$0x7f]
        %v2856 = vld [vmem:[#allocation2 + $0x228] sm:$0x7f]
        %v2857 = vld [vmem:[#allocation2 + $0x2a8] sm:$0x7f]
        %v2858 = vld [vmem:[#allocation2 + $0x328] sm:$0x7f]
        %v2859 = vld [vmem:[#allocation2 + $0x3a8] sm:$0x7f]
        %v2860 = vld [vmem:[#allocation2 + $0x428] sm:$0x7f]
        %v2861 = vlaneseq
        %v2862 = vshrl.u32 %v2861, 7
        %v2863 = vsub.s32 0, %v2862
        %v2864 = vrot.slane %v2849, %v2863
        %v2865 = vmul.f32 %v2852, %v2864
        %v2866 = vmul.f32 %v2853, %v2864
        %v2867 = vmul.f32 %v2854, %v2864
        %v2868 = vmul.f32 %v2855, %v2864
        %v2869 = vmul.f32 %v2856, %v2864
        %v2870 = vmul.f32 %v2857, %v2864
        %v2871 = vmul.f32 %v2858, %v2864
        %v2872 = vadd.f32 %v2865, 0.0
        %v2873 = vadd.f32 %v2866, 0.0
        %v2874 = vadd.f32 %v2867, 0.0
        %v2875 = vadd.f32 %v2868, 0.0
        %v2876 = vadd.f32 %v2869, 0.0
        %v2877 = vadd.f32 %v2870, 0.0
        %v2878 = vadd.f32 %v2871, 0.0
        %v2879 = vlaneseq
        %v2880 = vshrl.u32 %v2879, 7
        %v2881 = vsub.s32 0, %v2880
        %v2882 = vrot.slane %v2850, %v2881
        %v2883 = vmul.f32 %v2853, %v2882
        %v2884 = vmul.f32 %v2854, %v2882
        %v2885 = vmul.f32 %v2855, %v2882
        %v2886 = vmul.f32 %v2856, %v2882
        %v2887 = vmul.f32 %v2857, %v2882
        %v2888 = vmul.f32 %v2858, %v2882
        %v2889 = vmul.f32 %v2859, %v2882
        %v2890 = vadd.f32 %v2872, %v2883
        %v2891 = vadd.f32 %v2873, %v2884
        %v2892 = vadd.f32 %v2874, %v2885
        %v2893 = vadd.f32 %v2875, %v2886
        %v2894 = vadd.f32 %v2876, %v2887
        %v2895 = vadd.f32 %v2877, %v2888
        %v2896 = vadd.f32 %v2878, %v2889
        %v2897 = vlaneseq
        %v2898 = vshrl.u32 %v2897, 7
        %v2899 = vsub.s32 0, %v2898
        %v2900 = vrot.slane %v2851, %v2899
        %v2901 = vmul.f32 %v2854, %v2900
        %v2902 = vmul.f32 %v2855, %v2900
        %v2903 = vmul.f32 %v2856, %v2900
        %v2904 = vmul.f32 %v2857, %v2900
        %v2905 = vmul.f32 %v2858, %v2900
        %v2906 = vmul.f32 %v2859, %v2900
        %v2907 = vmul.f32 %v2860, %v2900
        %v2908 = vadd.f32 %v2890, %v2901
        %v2909 = vadd.f32 %v2891, %v2902
        %v2910 = vadd.f32 %v2892, %v2903
        %v2911 = vadd.f32 %v2893, %v2904
        %v2912 = vadd.f32 %v2894, %v2905
        %v2913 = vadd.f32 %v2895, %v2906
        %v2914 = vadd.f32 %v2896, %v2907
        %v2915 = vld [vmem:[#allocation2 + $0x28] sm:$0xfe]
        %v2916 = vld [vmem:[#allocation2 + $0xa8] sm:$0xfe]
        %v2917 = vld [vmem:[#allocation2 + $0x128] sm:$0xfe]
        %v2918 = vld [vmem:[#allocation2 + $0x1a8] sm:$0xfe]
        %v2919 = vld [vmem:[#allocation2 + $0x228] sm:$0xfe]
        %v2920 = vld [vmem:[#allocation2 + $0x2a8] sm:$0xfe]
        %v2921 = vld [vmem:[#allocation2 + $0x328] sm:$0xfe]
        %v2922 = vld [vmem:[#allocation2 + $0x3a8] sm:$0xfe]
        %v2923 = vld [vmem:[#allocation2 + $0x428] sm:$0xfe]
        %v2924 = vlaneseq
        %v2925 = vshrl.u32 %v2924, 7
        %v2926 = vsub.s32 1, %v2925
        %v2927 = vrot.slane %v2849, %v2926
        %v2928 = vmul.f32 %v2915, %v2927
        %v2929 = vmul.f32 %v2916, %v2927
        %v2930 = vmul.f32 %v2917, %v2927
        %v2931 = vmul.f32 %v2918, %v2927
        %v2932 = vmul.f32 %v2919, %v2927
        %v2933 = vmul.f32 %v2920, %v2927
        %v2934 = vmul.f32 %v2921, %v2927
        %v2942 = vrot.slane %v2928, 1
        %v2943 = vrot.slane %v2929, 1
        %v2944 = vrot.slane %v2930, 1
        %v2945 = vrot.slane %v2931, 1
        %v2946 = vrot.slane %v2932, 1
        %v2947 = vrot.slane %v2933, 1
        %v2948 = vrot.slane %v2934, 1
        %v2956 = vadd.f32 %v2908, %v2942
        %v2957 = vadd.f32 %v2909, %v2943
        %v2958 = vadd.f32 %v2910, %v2944
        %v2959 = vadd.f32 %v2911, %v2945
        %v2960 = vadd.f32 %v2912, %v2946
        %v2961 = vadd.f32 %v2913, %v2947
        %v2962 = vadd.f32 %v2914, %v2948
        %v2963 = vlaneseq
        %v2964 = vshrl.u32 %v2963, 7
        %v2965 = vsub.s32 1, %v2964
        %v2966 = vrot.slane %v2850, %v2965
        %v2967 = vmul.f32 %v2916, %v2966
        %v2968 = vmul.f32 %v2917, %v2966
        %v2969 = vmul.f32 %v2918, %v2966
        %v2970 = vmul.f32 %v2919, %v2966
        %v2971 = vmul.f32 %v2920, %v2966
        %v2972 = vmul.f32 %v2921, %v2966
        %v2973 = vmul.f32 %v2922, %v2966
        %v2981 = vrot.slane %v2967, 1
        %v2982 = vrot.slane %v2968, 1
        %v2983 = vrot.slane %v2969, 1
        %v2984 = vrot.slane %v2970, 1
        %v2985 = vrot.slane %v2971, 1
        %v2986 = vrot.slane %v2972, 1
        %v2987 = vrot.slane %v2973, 1
        %v2995 = vadd.f32 %v2956, %v2981
        %v2996 = vadd.f32 %v2957, %v2982
        %v2997 = vadd.f32 %v2958, %v2983
        %v2998 = vadd.f32 %v2959, %v2984
        %v2999 = vadd.f32 %v2960, %v2985
        %v3000 = vadd.f32 %v2961, %v2986
        %v3001 = vadd.f32 %v2962, %v2987
        %v3002 = vlaneseq
        %v3003 = vshrl.u32 %v3002, 7
        %v3004 = vsub.s32 1, %v3003
        %v3005 = vrot.slane %v2851, %v3004
        %v3006 = vmul.f32 %v2917, %v3005
        %v3007 = vmul.f32 %v2918, %v3005
        %v3008 = vmul.f32 %v2919, %v3005
        %v3009 = vmul.f32 %v2920, %v3005
        %v3010 = vmul.f32 %v2921, %v3005
        %v3011 = vmul.f32 %v2922, %v3005
        %v3012 = vmul.f32 %v2923, %v3005
        %v3020 = vrot.slane %v3006, 1
        %v3021 = vrot.slane %v3007, 1
        %v3022 = vrot.slane %v3008, 1
        %v3023 = vrot.slane %v3009, 1
        %v3024 = vrot.slane %v3010, 1
        %v3025 = vrot.slane %v3011, 1
        %v3026 = vrot.slane %v3012, 1
        %v3034 = vadd.f32 %v2995, %v3020
        %v3035 = vadd.f32 %v2996, %v3021
        %v3036 = vadd.f32 %v2997, %v3022
        %v3037 = vadd.f32 %v2998, %v3023
        %v3038 = vadd.f32 %v2999, %v3024
        %v3039 = vadd.f32 %v3000, %v3025
        %v3040 = vadd.f32 %v3001, %v3026
        %v3041 = vld [vmem:[#allocation2 + $0x28] sm:$0xfc]
        %v3042 = vld [vmem:[#allocation2 + $0x68] sm:$0x1]
        %v3043 = vld [vmem:[#allocation2 + $0xa8] sm:$0xfc]
        %v3044 = vld [vmem:[#allocation2 + $0xe8] sm:$0x1]
        %v3045 = vld [vmem:[#allocation2 + $0x128] sm:$0xfc]
        %v3046 = vld [vmem:[#allocation2 + $0x168] sm:$0x1]
        %v3047 = vld [vmem:[#allocation2 + $0x1a8] sm:$0xfc]
        %v3048 = vld [vmem:[#allocation2 + $0x1e8] sm:$0x1]
        %v3049 = vld [vmem:[#allocation2 + $0x228] sm:$0xfc]
        %v3050 = vld [vmem:[#allocation2 + $0x268] sm:$0x1]
        %v3051 = vld [vmem:[#allocation2 + $0x2a8] sm:$0xfc]
        %v3052 = vld [vmem:[#allocation2 + $0x2e8] sm:$0x1]
        %v3053 = vld [vmem:[#allocation2 + $0x328] sm:$0xfc]
        %v3054 = vld [vmem:[#allocation2 + $0x368] sm:$0x1]
        %v3055 = vld [vmem:[#allocation2 + $0x3a8] sm:$0xfc]
        %v3056 = vld [vmem:[#allocation2 + $0x3e8] sm:$0x1]
        %v3057 = vld [vmem:[#allocation2 + $0x428] sm:$0xfc]
        %v3058 = vld [vmem:[#allocation2 + $0x468] sm:$0x1]
        %v3059 = vlaneseq
        %v3060 = vshrl.u32 %v3059, 7
        %v3061 = vsub.s32 2, %v3060
        %v3062 = vrot.slane %v2849, %v3061
        %v3063 = vmul.f32 %v3041, %v3062
        %v3064 = vmul.f32 %v3042, %v3062
        %v3065 = vmul.f32 %v3043, %v3062
        %v3066 = vmul.f32 %v3044, %v3062
        %v3067 = vmul.f32 %v3045, %v3062
        %v3068 = vmul.f32 %v3046, %v3062
        %v3069 = vmul.f32 %v3047, %v3062
        %v3070 = vmul.f32 %v3048, %v3062
        %v3071 = vmul.f32 %v3049, %v3062
        %v3072 = vmul.f32 %v3050, %v3062
        %v3073 = vmul.f32 %v3051, %v3062
        %v3074 = vmul.f32 %v3052, %v3062
        %v3075 = vmul.f32 %v3053, %v3062
        %v3076 = vmul.f32 %v3054, %v3062
        %v3091 = vrot.slane %v3063, 2
        %v3092 = vrot.slane %v3064, 2
        %v3093 = vsel %vm1000, %v3091, %v3092
        %v3094 = vrot.slane %v3065, 2
        %v3095 = vrot.slane %v3066, 2
        %v3096 = vsel %vm1000, %v3094, %v3095
        %v3097 = vrot.slane %v3067, 2
        %v3098 = vrot.slane %v3068, 2
        %v3099 = vsel %vm1000, %v3097, %v3098
        %v3100 = vrot.slane %v3069, 2
        %v3101 = vrot.slane %v3070, 2
        %v3102 = vsel %vm1000, %v3100, %v3101
        %v3103 = vrot.slane %v3071, 2
        %v3104 = vrot.slane %v3072, 2
        %v3105 = vsel %vm1000, %v3103, %v3104
        %v3106 = vrot.slane %v3073, 2
        %v3107 = vrot.slane %v3074, 2
        %v3108 = vsel %vm1000, %v3106, %v3107
        %v3109 = vrot.slane %v3075, 2
        %v3110 = vrot.slane %v3076, 2
        %v3111 = vsel %vm1000, %v3109, %v3110
        %v3119 = vadd.f32 %v3034, %v3093
        %v3120 = vadd.f32 %v3035, %v3096
        %v3121 = vadd.f32 %v3036, %v3099
        %v3122 = vadd.f32 %v3037, %v3102
        %v3123 = vadd.f32 %v3038, %v3105
        %v3124 = vadd.f32 %v3039, %v3108
        %v3125 = vadd.f32 %v3040, %v3111
        %v3126 = vlaneseq
        %v3127 = vshrl.u32 %v3126, 7
        %v3128 = vsub.s32 2, %v3127
        %v3129 = vrot.slane %v2850, %v3128
        %v3130 = vmul.f32 %v3043, %v3129
        %v3131 = vmul.f32 %v3044, %v3129
        %v3132 = vmul.f32 %v3045, %v3129
        %v3133 = vmul.f32 %v3046, %v3129
        %v3134 = vmul.f32 %v3047, %v3129
        %v3135 = vmul.f32 %v3048, %v3129
        %v3136 = vmul.f32 %v3049, %v3129
        %v3137 = vmul.f32 %v3050, %v3129
        %v3138 = vmul.f32 %v3051, %v3129
        %v3139 = vmul.f32 %v3052, %v3129
        %v3140 = vmul.f32 %v3053, %v3129
        %v3141 = vmul.f32 %v3054, %v3129
        %v3142 = vmul.f32 %v3055, %v3129
        %v3143 = vmul.f32 %v3056, %v3129
        %v3158 = vrot.slane %v3130, 2
        %v3159 = vrot.slane %v3131, 2
        %v3160 = vsel %vm1000, %v3158, %v3159
        %v3161 = vrot.slane %v3132, 2
        %v3162 = vrot.slane %v3133, 2
        %v3163 = vsel %vm1000, %v3161, %v3162
        %v3164 = vrot.slane %v3134, 2
        %v3165 = vrot.slane %v3135, 2
        %v3166 = vsel %vm1000, %v3164, %v3165
        %v3167 = vrot.slane %v3136, 2
        %v3168 = vrot.slane %v3137, 2
        %v3169 = vsel %vm1000, %v3167, %v3168
        %v3170 = vrot.slane %v3138, 2
        %v3171 = vrot.slane %v3139, 2
        %v3172 = vsel %vm1000, %v3170, %v3171
        %v3173 = vrot.slane %v3140, 2
        %v3174 = vrot.slane %v3141, 2
        %v3175 = vsel %vm1000, %v3173, %v3174
        %v3176 = vrot.slane %v3142, 2
        %v3177 = vrot.slane %v3143, 2
        %v3178 = vsel %vm1000, %v3176, %v3177
        %v3186 = vadd.f32 %v3119, %v3160
        %v3187 = vadd.f32 %v3120, %v3163
        %v3188 = vadd.f32 %v3121, %v3166
        %v3189 = vadd.f32 %v3122, %v3169
        %v3190 = vadd.f32 %v3123, %v3172
        %v3191 = vadd.f32 %v3124, %v3175
        %v3192 = vadd.f32 %v3125, %v3178
        %v3193 = vlaneseq
        %v3194 = vshrl.u32 %v3193, 7
        %v3195 = vsub.s32 2, %v3194
        %v3196 = vrot.slane %v2851, %v3195
        %v3197 = vmul.f32 %v3045, %v3196
        %v3198 = vmul.f32 %v3046, %v3196
        %v3199 = vmul.f32 %v3047, %v3196
        %v3200 = vmul.f32 %v3048, %v3196
        %v3201 = vmul.f32 %v3049, %v3196
        %v3202 = vmul.f32 %v3050, %v3196
        %v3203 = vmul.f32 %v3051, %v3196
        %v3204 = vmul.f32 %v3052, %v3196
        %v3205 = vmul.f32 %v3053, %v3196
        %v3206 = vmul.f32 %v3054, %v3196
        %v3207 = vmul.f32 %v3055, %v3196
        %v3208 = vmul.f32 %v3056, %v3196
        %v3209 = vmul.f32 %v3057, %v3196
        %v3210 = vmul.f32 %v3058, %v3196
        %v3225 = vrot.slane %v3197, 2
        %v3226 = vrot.slane %v3198, 2
        %v3227 = vsel %vm1000, %v3225, %v3226
        %v3228 = vrot.slane %v3199, 2
        %v3229 = vrot.slane %v3200, 2
        %v3230 = vsel %vm1000, %v3228, %v3229
        %v3231 = vrot.slane %v3201, 2
        %v3232 = vrot.slane %v3202, 2
        %v3233 = vsel %vm1000, %v3231, %v3232
        %v3234 = vrot.slane %v3203, 2
        %v3235 = vrot.slane %v3204, 2
        %v3236 = vsel %vm1000, %v3234, %v3235
        %v3237 = vrot.slane %v3205, 2
        %v3238 = vrot.slane %v3206, 2
        %v3239 = vsel %vm1000, %v3237, %v3238
        %v3240 = vrot.slane %v3207, 2
        %v3241 = vrot.slane %v3208, 2
        %v3242 = vsel %vm1000, %v3240, %v3241
        %v3243 = vrot.slane %v3209, 2
        %v3244 = vrot.slane %v3210, 2
        %v3245 = vsel %vm1000, %v3243, %v3244
        %v3253 = vadd.f32 %v3186, %v3227
        %v3254 = vadd.f32 %v3187, %v3230
        %v3255 = vadd.f32 %v3188, %v3233
        %v3256 = vadd.f32 %v3189, %v3236
        %v3257 = vadd.f32 %v3190, %v3239
        %v3258 = vadd.f32 %v3191, %v3242
        %v3259 = vadd.f32 %v3192, %v3245
        %3260 = vst [vmem:[%s329 + $0x28] sm:$0x7f] %v3253
        %3261 = vst [vmem:[%s329 + $0x68] sm:$0x7f] %v3254
        %3262 = vst [vmem:[%s329 + $0xa8] sm:$0x7f] %v3255
        %3263 = vst [vmem:[%s329 + $0xe8] sm:$0x7f] %v3256
        %3264 = vst [vmem:[%s329 + $0x128] sm:$0x7f] %v3257
        %3265 = vst [vmem:[%s329 + $0x168] sm:$0x7f] %v3258
        %3266 = vst [vmem:[%s329 + $0x1a8] sm:$0x7f] %v3259
        %v3267 = vld [vmem:[%s308 + $0x18] sm:$0x7]
        %v3268 = vld [vmem:[%s308 + $0x38] sm:$0x7]
        %v3269 = vld [vmem:[%s308 + $0x58] sm:$0x7]
        %v3270 = vld [vmem:[#allocation2 + $0x30] sm:$0x7f]
        %v3271 = vld [vmem:[#allocation2 + $0xb0] sm:$0x7f]
        %v3272 = vld [vmem:[#allocation2 + $0x130] sm:$0x7f]
        %v3273 = vld [vmem:[#allocation2 + $0x1b0] sm:$0x7f]
        %v3274 = vld [vmem:[#allocation2 + $0x230] sm:$0x7f]
        %v3275 = vld [vmem:[#allocation2 + $0x2b0] sm:$0x7f]
        %v3276 = vld [vmem:[#allocation2 + $0x330] sm:$0x7f]
        %v3277 = vld [vmem:[#allocation2 + $0x3b0] sm:$0x7f]
        %v3278 = vld [vmem:[#allocation2 + $0x430] sm:$0x7f]
        %v3279 = vlaneseq
        %v3280 = vshrl.u32 %v3279, 7
        %v3281 = vsub.s32 0, %v3280
        %v3282 = vrot.slane %v3267, %v3281
        %v3283 = vmul.f32 %v3270, %v3282
        %v3284 = vmul.f32 %v3271, %v3282
        %v3285 = vmul.f32 %v3272, %v3282
        %v3286 = vmul.f32 %v3273, %v3282
        %v3287 = vmul.f32 %v3274, %v3282
        %v3288 = vmul.f32 %v3275, %v3282
        %v3289 = vmul.f32 %v3276, %v3282
        %v3290 = vadd.f32 %v3283, 0.0
        %v3291 = vadd.f32 %v3284, 0.0
        %v3292 = vadd.f32 %v3285, 0.0
        %v3293 = vadd.f32 %v3286, 0.0
        %v3294 = vadd.f32 %v3287, 0.0
        %v3295 = vadd.f32 %v3288, 0.0
        %v3296 = vadd.f32 %v3289, 0.0
        %v3297 = vlaneseq
        %v3298 = vshrl.u32 %v3297, 7
        %v3299 = vsub.s32 0, %v3298
        %v3300 = vrot.slane %v3268, %v3299
        %v3301 = vmul.f32 %v3271, %v3300
        %v3302 = vmul.f32 %v3272, %v3300
        %v3303 = vmul.f32 %v3273, %v3300
        %v3304 = vmul.f32 %v3274, %v3300
        %v3305 = vmul.f32 %v3275, %v3300
        %v3306 = vmul.f32 %v3276, %v3300
        %v3307 = vmul.f32 %v3277, %v3300
        %v3308 = vadd.f32 %v3290, %v3301
        %v3309 = vadd.f32 %v3291, %v3302
        %v3310 = vadd.f32 %v3292, %v3303
        %v3311 = vadd.f32 %v3293, %v3304
        %v3312 = vadd.f32 %v3294, %v3305
        %v3313 = vadd.f32 %v3295, %v3306
        %v3314 = vadd.f32 %v3296, %v3307
        %v3315 = vlaneseq
        %v3316 = vshrl.u32 %v3315, 7
        %v3317 = vsub.s32 0, %v3316
        %v3318 = vrot.slane %v3269, %v3317
        %v3319 = vmul.f32 %v3272, %v3318
        %v3320 = vmul.f32 %v3273, %v3318
        %v3321 = vmul.f32 %v3274, %v3318
        %v3322 = vmul.f32 %v3275, %v3318
        %v3323 = vmul.f32 %v3276, %v3318
        %v3324 = vmul.f32 %v3277, %v3318
        %v3325 = vmul.f32 %v3278, %v3318
        %v3326 = vadd.f32 %v3308, %v3319
        %v3327 = vadd.f32 %v3309, %v3320
        %v3328 = vadd.f32 %v3310, %v3321
        %v3329 = vadd.f32 %v3311, %v3322
        %v3330 = vadd.f32 %v3312, %v3323
        %v3331 = vadd.f32 %v3313, %v3324
        %v3332 = vadd.f32 %v3314, %v3325
        %v3333 = vld [vmem:[#allocation2 + $0x30] sm:$0xfe]
        %v3334 = vld [vmem:[#allocation2 + $0xb0] sm:$0xfe]
        %v3335 = vld [vmem:[#allocation2 + $0x130] sm:$0xfe]
        %v3336 = vld [vmem:[#allocation2 + $0x1b0] sm:$0xfe]
        %v3337 = vld [vmem:[#allocation2 + $0x230] sm:$0xfe]
        %v3338 = vld [vmem:[#allocation2 + $0x2b0] sm:$0xfe]
        %v3339 = vld [vmem:[#allocation2 + $0x330] sm:$0xfe]
        %v3340 = vld [vmem:[#allocation2 + $0x3b0] sm:$0xfe]
        %v3341 = vld [vmem:[#allocation2 + $0x430] sm:$0xfe]
        %v3342 = vlaneseq
        %v3343 = vshrl.u32 %v3342, 7
        %v3344 = vsub.s32 1, %v3343
        %v3345 = vrot.slane %v3267, %v3344
        %v3346 = vmul.f32 %v3333, %v3345
        %v3347 = vmul.f32 %v3334, %v3345
        %v3348 = vmul.f32 %v3335, %v3345
        %v3349 = vmul.f32 %v3336, %v3345
        %v3350 = vmul.f32 %v3337, %v3345
        %v3351 = vmul.f32 %v3338, %v3345
        %v3352 = vmul.f32 %v3339, %v3345
        %v3360 = vrot.slane %v3346, 1
        %v3361 = vrot.slane %v3347, 1
        %v3362 = vrot.slane %v3348, 1
        %v3363 = vrot.slane %v3349, 1
        %v3364 = vrot.slane %v3350, 1
        %v3365 = vrot.slane %v3351, 1
        %v3366 = vrot.slane %v3352, 1
        %v3374 = vadd.f32 %v3326, %v3360
        %v3375 = vadd.f32 %v3327, %v3361
        %v3376 = vadd.f32 %v3328, %v3362
        %v3377 = vadd.f32 %v3329, %v3363
        %v3378 = vadd.f32 %v3330, %v3364
        %v3379 = vadd.f32 %v3331, %v3365
        %v3380 = vadd.f32 %v3332, %v3366
        %v3381 = vlaneseq
        %v3382 = vshrl.u32 %v3381, 7
        %v3383 = vsub.s32 1, %v3382
        %v3384 = vrot.slane %v3268, %v3383
        %v3385 = vmul.f32 %v3334, %v3384
        %v3386 = vmul.f32 %v3335, %v3384
        %v3387 = vmul.f32 %v3336, %v3384
        %v3388 = vmul.f32 %v3337, %v3384
        %v3389 = vmul.f32 %v3338, %v3384
        %v3390 = vmul.f32 %v3339, %v3384
        %v3391 = vmul.f32 %v3340, %v3384
        %v3399 = vrot.slane %v3385, 1
        %v3400 = vrot.slane %v3386, 1
        %v3401 = vrot.slane %v3387, 1
        %v3402 = vrot.slane %v3388, 1
        %v3403 = vrot.slane %v3389, 1
        %v3404 = vrot.slane %v3390, 1
        %v3405 = vrot.slane %v3391, 1
        %v3413 = vadd.f32 %v3374, %v3399
        %v3414 = vadd.f32 %v3375, %v3400
        %v3415 = vadd.f32 %v3376, %v3401
        %v3416 = vadd.f32 %v3377, %v3402
        %v3417 = vadd.f32 %v3378, %v3403
        %v3418 = vadd.f32 %v3379, %v3404
        %v3419 = vadd.f32 %v3380, %v3405
        %v3420 = vlaneseq
        %v3421 = vshrl.u32 %v3420, 7
        %v3422 = vsub.s32 1, %v3421
        %v3423 = vrot.slane %v3269, %v3422
        %v3424 = vmul.f32 %v3335, %v3423
        %v3425 = vmul.f32 %v3336, %v3423
        %v3426 = vmul.f32 %v3337, %v3423
        %v3427 = vmul.f32 %v3338, %v3423
        %v3428 = vmul.f32 %v3339, %v3423
        %v3429 = vmul.f32 %v3340, %v3423
        %v3430 = vmul.f32 %v3341, %v3423
        %v3438 = vrot.slane %v3424, 1
        %v3439 = vrot.slane %v3425, 1
        %v3440 = vrot.slane %v3426, 1
        %v3441 = vrot.slane %v3427, 1
        %v3442 = vrot.slane %v3428, 1
        %v3443 = vrot.slane %v3429, 1
        %v3444 = vrot.slane %v3430, 1
        %v3452 = vadd.f32 %v3413, %v3438
        %v3453 = vadd.f32 %v3414, %v3439
        %v3454 = vadd.f32 %v3415, %v3440
        %v3455 = vadd.f32 %v3416, %v3441
        %v3456 = vadd.f32 %v3417, %v3442
        %v3457 = vadd.f32 %v3418, %v3443
        %v3458 = vadd.f32 %v3419, %v3444
        %v3459 = vld [vmem:[#allocation2 + $0x30] sm:$0xfc]
        %v3460 = vld [vmem:[#allocation2 + $0x70] sm:$0x1]
        %v3461 = vld [vmem:[#allocation2 + $0xb0] sm:$0xfc]
        %v3462 = vld [vmem:[#allocation2 + $0xf0] sm:$0x1]
        %v3463 = vld [vmem:[#allocation2 + $0x130] sm:$0xfc]
        %v3464 = vld [vmem:[#allocation2 + $0x170] sm:$0x1]
        %v3465 = vld [vmem:[#allocation2 + $0x1b0] sm:$0xfc]
        %v3466 = vld [vmem:[#allocation2 + $0x1f0] sm:$0x1]
        %v3467 = vld [vmem:[#allocation2 + $0x230] sm:$0xfc]
        %v3468 = vld [vmem:[#allocation2 + $0x270] sm:$0x1]
        %v3469 = vld [vmem:[#allocation2 + $0x2b0] sm:$0xfc]
        %v3470 = vld [vmem:[#allocation2 + $0x2f0] sm:$0x1]
        %v3471 = vld [vmem:[#allocation2 + $0x330] sm:$0xfc]
        %v3472 = vld [vmem:[#allocation2 + $0x370] sm:$0x1]
        %v3473 = vld [vmem:[#allocation2 + $0x3b0] sm:$0xfc]
        %v3474 = vld [vmem:[#allocation2 + $0x3f0] sm:$0x1]
        %v3475 = vld [vmem:[#allocation2 + $0x430] sm:$0xfc]
        %v3476 = vld [vmem:[#allocation2 + $0x470] sm:$0x1]
        %v3477 = vlaneseq
        %v3478 = vshrl.u32 %v3477, 7
        %v3479 = vsub.s32 2, %v3478
        %v3480 = vrot.slane %v3267, %v3479
        %v3481 = vmul.f32 %v3459, %v3480
        %v3482 = vmul.f32 %v3460, %v3480
        %v3483 = vmul.f32 %v3461, %v3480
        %v3484 = vmul.f32 %v3462, %v3480
        %v3485 = vmul.f32 %v3463, %v3480
        %v3486 = vmul.f32 %v3464, %v3480
        %v3487 = vmul.f32 %v3465, %v3480
        %v3488 = vmul.f32 %v3466, %v3480
        %v3489 = vmul.f32 %v3467, %v3480
        %v3490 = vmul.f32 %v3468, %v3480
        %v3491 = vmul.f32 %v3469, %v3480
        %v3492 = vmul.f32 %v3470, %v3480
        %v3493 = vmul.f32 %v3471, %v3480
        %v3494 = vmul.f32 %v3472, %v3480
        %v3509 = vrot.slane %v3481, 2
        %v3510 = vrot.slane %v3482, 2
        %v3511 = vsel %vm1000, %v3509, %v3510
        %v3512 = vrot.slane %v3483, 2
        %v3513 = vrot.slane %v3484, 2
        %v3514 = vsel %vm1000, %v3512, %v3513
        %v3515 = vrot.slane %v3485, 2
        %v3516 = vrot.slane %v3486, 2
        %v3517 = vsel %vm1000, %v3515, %v3516
        %v3518 = vrot.slane %v3487, 2
        %v3519 = vrot.slane %v3488, 2
        %v3520 = vsel %vm1000, %v3518, %v3519
        %v3521 = vrot.slane %v3489, 2
        %v3522 = vrot.slane %v3490, 2
        %v3523 = vsel %vm1000, %v3521, %v3522
        %v3524 = vrot.slane %v3491, 2
        %v3525 = vrot.slane %v3492, 2
        %v3526 = vsel %vm1000, %v3524, %v3525
        %v3527 = vrot.slane %v3493, 2
        %v3528 = vrot.slane %v3494, 2
        %v3529 = vsel %vm1000, %v3527, %v3528
        %v3537 = vadd.f32 %v3452, %v3511
        %v3538 = vadd.f32 %v3453, %v3514
        %v3539 = vadd.f32 %v3454, %v3517
        %v3540 = vadd.f32 %v3455, %v3520
        %v3541 = vadd.f32 %v3456, %v3523
        %v3542 = vadd.f32 %v3457, %v3526
        %v3543 = vadd.f32 %v3458, %v3529
        %v3544 = vlaneseq
        %v3545 = vshrl.u32 %v3544, 7
        %v3546 = vsub.s32 2, %v3545
        %v3547 = vrot.slane %v3268, %v3546
        %v3548 = vmul.f32 %v3461, %v3547
        %v3549 = vmul.f32 %v3462, %v3547
        %v3550 = vmul.f32 %v3463, %v3547
        %v3551 = vmul.f32 %v3464, %v3547
        %v3552 = vmul.f32 %v3465, %v3547
        %v3553 = vmul.f32 %v3466, %v3547
        %v3554 = vmul.f32 %v3467, %v3547
        %v3555 = vmul.f32 %v3468, %v3547
        %v3556 = vmul.f32 %v3469, %v3547
        %v3557 = vmul.f32 %v3470, %v3547
        %v3558 = vmul.f32 %v3471, %v3547
        %v3559 = vmul.f32 %v3472, %v3547
        %v3560 = vmul.f32 %v3473, %v3547
        %v3561 = vmul.f32 %v3474, %v3547
        %v3576 = vrot.slane %v3548, 2
        %v3577 = vrot.slane %v3549, 2
        %v3578 = vsel %vm1000, %v3576, %v3577
        %v3579 = vrot.slane %v3550, 2
        %v3580 = vrot.slane %v3551, 2
        %v3581 = vsel %vm1000, %v3579, %v3580
        %v3582 = vrot.slane %v3552, 2
        %v3583 = vrot.slane %v3553, 2
        %v3584 = vsel %vm1000, %v3582, %v3583
        %v3585 = vrot.slane %v3554, 2
        %v3586 = vrot.slane %v3555, 2
        %v3587 = vsel %vm1000, %v3585, %v3586
        %v3588 = vrot.slane %v3556, 2
        %v3589 = vrot.slane %v3557, 2
        %v3590 = vsel %vm1000, %v3588, %v3589
        %v3591 = vrot.slane %v3558, 2
        %v3592 = vrot.slane %v3559, 2
        %v3593 = vsel %vm1000, %v3591, %v3592
        %v3594 = vrot.slane %v3560, 2
        %v3595 = vrot.slane %v3561, 2
        %v3596 = vsel %vm1000, %v3594, %v3595
        %v3604 = vadd.f32 %v3537, %v3578
        %v3605 = vadd.f32 %v3538, %v3581
        %v3606 = vadd.f32 %v3539, %v3584
        %v3607 = vadd.f32 %v3540, %v3587
        %v3608 = vadd.f32 %v3541, %v3590
        %v3609 = vadd.f32 %v3542, %v3593
        %v3610 = vadd.f32 %v3543, %v3596
        %v3611 = vlaneseq
        %v3612 = vshrl.u32 %v3611, 7
        %v3613 = vsub.s32 2, %v3612
        %v3614 = vrot.slane %v3269, %v3613
        %v3615 = vmul.f32 %v3463, %v3614
        %v3616 = vmul.f32 %v3464, %v3614
        %v3617 = vmul.f32 %v3465, %v3614
        %v3618 = vmul.f32 %v3466, %v3614
        %v3619 = vmul.f32 %v3467, %v3614
        %v3620 = vmul.f32 %v3468, %v3614
        %v3621 = vmul.f32 %v3469, %v3614
        %v3622 = vmul.f32 %v3470, %v3614
        %v3623 = vmul.f32 %v3471, %v3614
        %v3624 = vmul.f32 %v3472, %v3614
        %v3625 = vmul.f32 %v3473, %v3614
        %v3626 = vmul.f32 %v3474, %v3614
        %v3627 = vmul.f32 %v3475, %v3614
        %v3628 = vmul.f32 %v3476, %v3614
        %v3643 = vrot.slane %v3615, 2
        %v3644 = vrot.slane %v3616, 2
        %v3645 = vsel %vm1000, %v3643, %v3644
        %v3646 = vrot.slane %v3617, 2
        %v3647 = vrot.slane %v3618, 2
        %v3648 = vsel %vm1000, %v3646, %v3647
        %v3649 = vrot.slane %v3619, 2
        %v3650 = vrot.slane %v3620, 2
        %v3651 = vsel %vm1000, %v3649, %v3650
        %v3652 = vrot.slane %v3621, 2
        %v3653 = vrot.slane %v3622, 2
        %v3654 = vsel %vm1000, %v3652, %v3653
        %v3655 = vrot.slane %v3623, 2
        %v3656 = vrot.slane %v3624, 2
        %v3657 = vsel %vm1000, %v3655, %v3656
        %v3658 = vrot.slane %v3625, 2
        %v3659 = vrot.slane %v3626, 2
        %v3660 = vsel %vm1000, %v3658, %v3659
        %v3661 = vrot.slane %v3627, 2
        %v3662 = vrot.slane %v3628, 2
        %v3663 = vsel %vm1000, %v3661, %v3662
        %v3671 = vadd.f32 %v3604, %v3645
        %v3672 = vadd.f32 %v3605, %v3648
        %v3673 = vadd.f32 %v3606, %v3651
        %v3674 = vadd.f32 %v3607, %v3654
        %v3675 = vadd.f32 %v3608, %v3657
        %v3676 = vadd.f32 %v3609, %v3660
        %v3677 = vadd.f32 %v3610, %v3663
        %3678 = vst [vmem:[%s329 + $0x30] sm:$0x7f] %v3671
        %3679 = vst [vmem:[%s329 + $0x70] sm:$0x7f] %v3672
        %3680 = vst [vmem:[%s329 + $0xb0] sm:$0x7f] %v3673
        %3681 = vst [vmem:[%s329 + $0xf0] sm:$0x7f] %v3674
        %3682 = vst [vmem:[%s329 + $0x130] sm:$0x7f] %v3675
        %3683 = vst [vmem:[%s329 + $0x170] sm:$0x7f] %v3676
        %3684 = vst [vmem:[%s329 + $0x1b0] sm:$0x7f] %v3677
        %v3685 = vld [vmem:[%s308 + $0x1c] sm:$0x7]
        %v3686 = vld [vmem:[%s308 + $0x3c] sm:$0x7]
        %v3687 = vld [vmem:[%s308 + $0x5c] sm:$0x7]
        %v3688 = vld [vmem:[#allocation2 + $0x38] sm:$0x7f]
        %v3689 = vld [vmem:[#allocation2 + $0xb8] sm:$0x7f]
        %v3690 = vld [vmem:[#allocation2 + $0x138] sm:$0x7f]
        %v3691 = vld [vmem:[#allocation2 + $0x1b8] sm:$0x7f]
        %v3692 = vld [vmem:[#allocation2 + $0x238] sm:$0x7f]
        %v3693 = vld [vmem:[#allocation2 + $0x2b8] sm:$0x7f]
        %v3694 = vld [vmem:[#allocation2 + $0x338] sm:$0x7f]
        %v3695 = vld [vmem:[#allocation2 + $0x3b8] sm:$0x7f]
        %v3696 = vld [vmem:[#allocation2 + $0x438] sm:$0x7f]
        %v3697 = vlaneseq
        %v3698 = vshrl.u32 %v3697, 7
        %v3699 = vsub.s32 0, %v3698
        %v3700 = vrot.slane %v3685, %v3699
        %v3701 = vmul.f32 %v3688, %v3700
        %v3702 = vmul.f32 %v3689, %v3700
        %v3703 = vmul.f32 %v3690, %v3700
        %v3704 = vmul.f32 %v3691, %v3700
        %v3705 = vmul.f32 %v3692, %v3700
        %v3706 = vmul.f32 %v3693, %v3700
        %v3707 = vmul.f32 %v3694, %v3700
        %v3708 = vadd.f32 %v3701, 0.0
        %v3709 = vadd.f32 %v3702, 0.0
        %v3710 = vadd.f32 %v3703, 0.0
        %v3711 = vadd.f32 %v3704, 0.0
        %v3712 = vadd.f32 %v3705, 0.0
        %v3713 = vadd.f32 %v3706, 0.0
        %v3714 = vadd.f32 %v3707, 0.0
        %v3715 = vlaneseq
        %v3716 = vshrl.u32 %v3715, 7
        %v3717 = vsub.s32 0, %v3716
        %v3718 = vrot.slane %v3686, %v3717
        %v3719 = vmul.f32 %v3689, %v3718
        %v3720 = vmul.f32 %v3690, %v3718
        %v3721 = vmul.f32 %v3691, %v3718
        %v3722 = vmul.f32 %v3692, %v3718
        %v3723 = vmul.f32 %v3693, %v3718
        %v3724 = vmul.f32 %v3694, %v3718
        %v3725 = vmul.f32 %v3695, %v3718
        %v3726 = vadd.f32 %v3708, %v3719
        %v3727 = vadd.f32 %v3709, %v3720
        %v3728 = vadd.f32 %v3710, %v3721
        %v3729 = vadd.f32 %v3711, %v3722
        %v3730 = vadd.f32 %v3712, %v3723
        %v3731 = vadd.f32 %v3713, %v3724
        %v3732 = vadd.f32 %v3714, %v3725
        %v3733 = vlaneseq
        %v3734 = vshrl.u32 %v3733, 7
        %v3735 = vsub.s32 0, %v3734
        %v3736 = vrot.slane %v3687, %v3735
        %v3737 = vmul.f32 %v3690, %v3736
        %v3738 = vmul.f32 %v3691, %v3736
        %v3739 = vmul.f32 %v3692, %v3736
        %v3740 = vmul.f32 %v3693, %v3736
        %v3741 = vmul.f32 %v3694, %v3736
        %v3742 = vmul.f32 %v3695, %v3736
        %v3743 = vmul.f32 %v3696, %v3736
        %v3744 = vadd.f32 %v3726, %v3737
        %v3745 = vadd.f32 %v3727, %v3738
        %v3746 = vadd.f32 %v3728, %v3739
        %v3747 = vadd.f32 %v3729, %v3740
        %v3748 = vadd.f32 %v3730, %v3741
        %v3749 = vadd.f32 %v3731, %v3742
        %v3750 = vadd.f32 %v3732, %v3743
        %v3751 = vld [vmem:[#allocation2 + $0x38] sm:$0xfe]
        %v3752 = vld [vmem:[#allocation2 + $0xb8] sm:$0xfe]
        %v3753 = vld [vmem:[#allocation2 + $0x138] sm:$0xfe]
        %v3754 = vld [vmem:[#allocation2 + $0x1b8] sm:$0xfe]
        %v3755 = vld [vmem:[#allocation2 + $0x238] sm:$0xfe]
        %v3756 = vld [vmem:[#allocation2 + $0x2b8] sm:$0xfe]
        %v3757 = vld [vmem:[#allocation2 + $0x338] sm:$0xfe]
        %v3758 = vld [vmem:[#allocation2 + $0x3b8] sm:$0xfe]
        %v3759 = vld [vmem:[#allocation2 + $0x438] sm:$0xfe]
        %v3760 = vlaneseq
        %v3761 = vshrl.u32 %v3760, 7
        %v3762 = vsub.s32 1, %v3761
        %v3763 = vrot.slane %v3685, %v3762
        %v3764 = vmul.f32 %v3751, %v3763
        %v3765 = vmul.f32 %v3752, %v3763
        %v3766 = vmul.f32 %v3753, %v3763
        %v3767 = vmul.f32 %v3754, %v3763
        %v3768 = vmul.f32 %v3755, %v3763
        %v3769 = vmul.f32 %v3756, %v3763
        %v3770 = vmul.f32 %v3757, %v3763
        %v3778 = vrot.slane %v3764, 1
        %v3779 = vrot.slane %v3765, 1
        %v3780 = vrot.slane %v3766, 1
        %v3781 = vrot.slane %v3767, 1
        %v3782 = vrot.slane %v3768, 1
        %v3783 = vrot.slane %v3769, 1
        %v3784 = vrot.slane %v3770, 1
        %v3792 = vadd.f32 %v3744, %v3778
        %v3793 = vadd.f32 %v3745, %v3779
        %v3794 = vadd.f32 %v3746, %v3780
        %v3795 = vadd.f32 %v3747, %v3781
        %v3796 = vadd.f32 %v3748, %v3782
        %v3797 = vadd.f32 %v3749, %v3783
        %v3798 = vadd.f32 %v3750, %v3784
        %v3799 = vlaneseq
        %v3800 = vshrl.u32 %v3799, 7
        %v3801 = vsub.s32 1, %v3800
        %v3802 = vrot.slane %v3686, %v3801
        %v3803 = vmul.f32 %v3752, %v3802
        %v3804 = vmul.f32 %v3753, %v3802
        %v3805 = vmul.f32 %v3754, %v3802
        %v3806 = vmul.f32 %v3755, %v3802
        %v3807 = vmul.f32 %v3756, %v3802
        %v3808 = vmul.f32 %v3757, %v3802
        %v3809 = vmul.f32 %v3758, %v3802
        %v3817 = vrot.slane %v3803, 1
        %v3818 = vrot.slane %v3804, 1
        %v3819 = vrot.slane %v3805, 1
        %v3820 = vrot.slane %v3806, 1
        %v3821 = vrot.slane %v3807, 1
        %v3822 = vrot.slane %v3808, 1
        %v3823 = vrot.slane %v3809, 1
        %v3831 = vadd.f32 %v3792, %v3817
        %v3832 = vadd.f32 %v3793, %v3818
        %v3833 = vadd.f32 %v3794, %v3819
        %v3834 = vadd.f32 %v3795, %v3820
        %v3835 = vadd.f32 %v3796, %v3821
        %v3836 = vadd.f32 %v3797, %v3822
        %v3837 = vadd.f32 %v3798, %v3823
        %v3838 = vlaneseq
        %v3839 = vshrl.u32 %v3838, 7
        %v3840 = vsub.s32 1, %v3839
        %v3841 = vrot.slane %v3687, %v3840
        %v3842 = vmul.f32 %v3753, %v3841
        %v3843 = vmul.f32 %v3754, %v3841
        %v3844 = vmul.f32 %v3755, %v3841
        %v3845 = vmul.f32 %v3756, %v3841
        %v3846 = vmul.f32 %v3757, %v3841
        %v3847 = vmul.f32 %v3758, %v3841
        %v3848 = vmul.f32 %v3759, %v3841
        %v3856 = vrot.slane %v3842, 1
        %v3857 = vrot.slane %v3843, 1
        %v3858 = vrot.slane %v3844, 1
        %v3859 = vrot.slane %v3845, 1
        %v3860 = vrot.slane %v3846, 1
        %v3861 = vrot.slane %v3847, 1
        %v3862 = vrot.slane %v3848, 1
        %v3870 = vadd.f32 %v3831, %v3856
        %v3871 = vadd.f32 %v3832, %v3857
        %v3872 = vadd.f32 %v3833, %v3858
        %v3873 = vadd.f32 %v3834, %v3859
        %v3874 = vadd.f32 %v3835, %v3860
        %v3875 = vadd.f32 %v3836, %v3861
        %v3876 = vadd.f32 %v3837, %v3862
        %v3877 = vld [vmem:[#allocation2 + $0x38] sm:$0xfc]
        %v3878 = vld [vmem:[#allocation2 + $0x78] sm:$0x1]
        %v3879 = vld [vmem:[#allocation2 + $0xb8] sm:$0xfc]
        %v3880 = vld [vmem:[#allocation2 + $0xf8] sm:$0x1]
        %v3881 = vld [vmem:[#allocation2 + $0x138] sm:$0xfc]
        %v3882 = vld [vmem:[#allocation2 + $0x178] sm:$0x1]
        %v3883 = vld [vmem:[#allocation2 + $0x1b8] sm:$0xfc]
        %v3884 = vld [vmem:[#allocation2 + $0x1f8] sm:$0x1]
        %v3885 = vld [vmem:[#allocation2 + $0x238] sm:$0xfc]
        %v3886 = vld [vmem:[#allocation2 + $0x278] sm:$0x1]
        %v3887 = vld [vmem:[#allocation2 + $0x2b8] sm:$0xfc]
        %v3888 = vld [vmem:[#allocation2 + $0x2f8] sm:$0x1]
        %v3889 = vld [vmem:[#allocation2 + $0x338] sm:$0xfc]
        %v3890 = vld [vmem:[#allocation2 + $0x378] sm:$0x1]
        %v3891 = vld [vmem:[#allocation2 + $0x3b8] sm:$0xfc]
        %v3892 = vld [vmem:[#allocation2 + $0x3f8] sm:$0x1]
        %v3893 = vld [vmem:[#allocation2 + $0x438] sm:$0xfc]
        %v3894 = vld [vmem:[#allocation2 + $0x478] sm:$0x1]
        %v3895 = vlaneseq
        %v3896 = vshrl.u32 %v3895, 7
        %v3897 = vsub.s32 2, %v3896
        %v3898 = vrot.slane %v3685, %v3897
        %v3899 = vmul.f32 %v3877, %v3898
        %v3900 = vmul.f32 %v3878, %v3898
        %v3901 = vmul.f32 %v3879, %v3898
        %v3902 = vmul.f32 %v3880, %v3898
        %v3903 = vmul.f32 %v3881, %v3898
        %v3904 = vmul.f32 %v3882, %v3898
        %v3905 = vmul.f32 %v3883, %v3898
        %v3906 = vmul.f32 %v3884, %v3898
        %v3907 = vmul.f32 %v3885, %v3898
        %v3908 = vmul.f32 %v3886, %v3898
        %v3909 = vmul.f32 %v3887, %v3898
        %v3910 = vmul.f32 %v3888, %v3898
        %v3911 = vmul.f32 %v3889, %v3898
        %v3912 = vmul.f32 %v3890, %v3898
        %v3927 = vrot.slane %v3899, 2
        %v3928 = vrot.slane %v3900, 2
        %v3929 = vsel %vm1000, %v3927, %v3928
        %v3930 = vrot.slane %v3901, 2
        %v3931 = vrot.slane %v3902, 2
        %v3932 = vsel %vm1000, %v3930, %v3931
        %v3933 = vrot.slane %v3903, 2
        %v3934 = vrot.slane %v3904, 2
        %v3935 = vsel %vm1000, %v3933, %v3934
        %v3936 = vrot.slane %v3905, 2
        %v3937 = vrot.slane %v3906, 2
        %v3938 = vsel %vm1000, %v3936, %v3937
        %v3939 = vrot.slane %v3907, 2
        %v3940 = vrot.slane %v3908, 2
        %v3941 = vsel %vm1000, %v3939, %v3940
        %v3942 = vrot.slane %v3909, 2
        %v3943 = vrot.slane %v3910, 2
        %v3944 = vsel %vm1000, %v3942, %v3943
        %v3945 = vrot.slane %v3911, 2
        %v3946 = vrot.slane %v3912, 2
        %v3947 = vsel %vm1000, %v3945, %v3946
        %v3955 = vadd.f32 %v3870, %v3929
        %v3956 = vadd.f32 %v3871, %v3932
        %v3957 = vadd.f32 %v3872, %v3935
        %v3958 = vadd.f32 %v3873, %v3938
        %v3959 = vadd.f32 %v3874, %v3941
        %v3960 = vadd.f32 %v3875, %v3944
        %v3961 = vadd.f32 %v3876, %v3947
        %v3962 = vlaneseq
        %v3963 = vshrl.u32 %v3962, 7
        %v3964 = vsub.s32 2, %v3963
        %v3965 = vrot.slane %v3686, %v3964
        %v3966 = vmul.f32 %v3879, %v3965
        %v3967 = vmul.f32 %v3880, %v3965
        %v3968 = vmul.f32 %v3881, %v3965
        %v3969 = vmul.f32 %v3882, %v3965
        %v3970 = vmul.f32 %v3883, %v3965
        %v3971 = vmul.f32 %v3884, %v3965
        %v3972 = vmul.f32 %v3885, %v3965
        %v3973 = vmul.f32 %v3886, %v3965
        %v3974 = vmul.f32 %v3887, %v3965
        %v3975 = vmul.f32 %v3888, %v3965
        %v3976 = vmul.f32 %v3889, %v3965
        %v3977 = vmul.f32 %v3890, %v3965
        %v3978 = vmul.f32 %v3891, %v3965
        %v3979 = vmul.f32 %v3892, %v3965
        %v3994 = vrot.slane %v3966, 2
        %v3995 = vrot.slane %v3967, 2
        %v3996 = vsel %vm1000, %v3994, %v3995
        %v3997 = vrot.slane %v3968, 2
        %v3998 = vrot.slane %v3969, 2
        %v3999 = vsel %vm1000, %v3997, %v3998
        %v4000 = vrot.slane %v3970, 2
        %v4001 = vrot.slane %v3971, 2
        %v4002 = vsel %vm1000, %v4000, %v4001
        %v4003 = vrot.slane %v3972, 2
        %v4004 = vrot.slane %v3973, 2
        %v4005 = vsel %vm1000, %v4003, %v4004
        %v4006 = vrot.slane %v3974, 2
        %v4007 = vrot.slane %v3975, 2
        %v4008 = vsel %vm1000, %v4006, %v4007
        %v4009 = vrot.slane %v3976, 2
        %v4010 = vrot.slane %v3977, 2
        %v4011 = vsel %vm1000, %v4009, %v4010
        %v4012 = vrot.slane %v3978, 2
        %v4013 = vrot.slane %v3979, 2
        %v4014 = vsel %vm1000, %v4012, %v4013
        %v4022 = vadd.f32 %v3955, %v3996
        %v4023 = vadd.f32 %v3956, %v3999
        %v4024 = vadd.f32 %v3957, %v4002
        %v4025 = vadd.f32 %v3958, %v4005
        %v4026 = vadd.f32 %v3959, %v4008
        %v4027 = vadd.f32 %v3960, %v4011
        %v4028 = vadd.f32 %v3961, %v4014
        %v4029 = vlaneseq
        %v4030 = vshrl.u32 %v4029, 7
        %v4031 = vsub.s32 2, %v4030
        %v4032 = vrot.slane %v3687, %v4031
        %v4033 = vmul.f32 %v3881, %v4032
        %v4034 = vmul.f32 %v3882, %v4032
        %v4035 = vmul.f32 %v3883, %v4032
        %v4036 = vmul.f32 %v3884, %v4032
        %v4037 = vmul.f32 %v3885, %v4032
        %v4038 = vmul.f32 %v3886, %v4032
        %v4039 = vmul.f32 %v3887, %v4032
        %v4040 = vmul.f32 %v3888, %v4032
        %v4041 = vmul.f32 %v3889, %v4032
        %v4042 = vmul.f32 %v3890, %v4032
        %v4043 = vmul.f32 %v3891, %v4032
        %v4044 = vmul.f32 %v3892, %v4032
        %v4045 = vmul.f32 %v3893, %v4032
        %v4046 = vmul.f32 %v3894, %v4032
        %v4061 = vrot.slane %v4033, 2
        %v4062 = vrot.slane %v4034, 2
        %v4063 = vsel %vm1000, %v4061, %v4062
        %v4064 = vrot.slane %v4035, 2
        %v4065 = vrot.slane %v4036, 2
        %v4066 = vsel %vm1000, %v4064, %v4065
        %v4067 = vrot.slane %v4037, 2
        %v4068 = vrot.slane %v4038, 2
        %v4069 = vsel %vm1000, %v4067, %v4068
        %v4070 = vrot.slane %v4039, 2
        %v4071 = vrot.slane %v4040, 2
        %v4072 = vsel %vm1000, %v4070, %v4071
        %v4073 = vrot.slane %v4041, 2
        %v4074 = vrot.slane %v4042, 2
        %v4075 = vsel %vm1000, %v4073, %v4074
        %v4076 = vrot.slane %v4043, 2
        %v4077 = vrot.slane %v4044, 2
        %v4078 = vsel %vm1000, %v4076, %v4077
        %v4079 = vrot.slane %v4045, 2
        %v4080 = vrot.slane %v4046, 2
        %v4081 = vsel %vm1000, %v4079, %v4080
        %v4089 = vadd.f32 %v4022, %v4063
        %v4090 = vadd.f32 %v4023, %v4066
        %v4091 = vadd.f32 %v4024, %v4069
        %v4092 = vadd.f32 %v4025, %v4072
        %v4093 = vadd.f32 %v4026, %v4075
        %v4094 = vadd.f32 %v4027, %v4078
        %v4095 = vadd.f32 %v4028, %v4081
        %4096 = vst [vmem:[%s329 + $0x38] sm:$0x7f] %v4089
        %4097 = vst [vmem:[%s329 + $0x78] sm:$0x7f] %v4090
        %4098 = vst [vmem:[%s329 + $0xb8] sm:$0x7f] %v4091
        %4099 = vst [vmem:[%s329 + $0xf8] sm:$0x7f] %v4092
        %4100 = vst [vmem:[%s329 + $0x138] sm:$0x7f] %v4093
        %4101 = vst [vmem:[%s329 + $0x178] sm:$0x7f] %v4094
        %4102 = vst [vmem:[%s329 + $0x1b8] sm:$0x7f] %v4095
        %s4103 = sand.u32 %s73, 1
        %s4104 = sand.u32 %s73, 1
        %s4105 = smul.addr %s4104, 448
        %s4106 = scalar_lea.vmem [#allocation5], %s4105
        // Predicated region
        $region75: #{tpu_custom_call.1} parent=65 // pred_check
          %p4107 = pneg %p83
        $region76: #{tpu_custom_call.1} parent=65 // pred_check_branch
          %4109 = sbr.rel (%p4107) target = $region78
        $region77: #{tpu_custom_call.1} parent=65 // pred_region
          %s4110 = smul.u32 8, %s13
          %s4111 = smul.addr %s4110, 8
          %s4112 = scalar_lea.vmem %s2, %s4111
          // Predicated region
          $region79: #{tpu_custom_call.1} parent=77 // pred_check
            _
          $region80: #{tpu_custom_call.1} parent=77 // pred_check_branch
            %4114 = sbr.rel (0) target = $region82
          $region81: #{tpu_custom_call.1} parent=77 // pred_region
            // Predicated region
            $region83: #{tpu_custom_call.1} parent=81 // pred_check
              _
            $region84: #{tpu_custom_call.1} parent=81 // pred_check_branch
              %4116 = sbr.rel (0) target = $region86
            $region85: #{tpu_custom_call.1} parent=81 // pred_region
              loop: start=0, step=1, limit=1
              $region87: #{tpu_custom_call.1} parent=85 // loop_pre_header
                _
              $region88: #{tpu_custom_call.1} parent=85 // loop_header
                %s4118 = sphi 0, %s4122
                %p4119 = scmp.ge.s32.totalorder %s4118, 1
                %s4123 = sphi %s4106, %s4106
                %s4124 = sphi %s4112, %s4112
              $region89: #{tpu_custom_call.1} parent=85 // loop_header_branch
                %4121 = sbr.rel (%p4119) target = $region93
              $region90: #{tpu_custom_call.1} parent=85 // loop_body
                %v4125 = vld [vmem:[%s4123] sm:$0xff]
                %4126 = vst [vmem:[%s4124] sm:$0xff] %v4125
                %v4127 = vld [vmem:[%s4123 + $0x8] sm:$0xff]
                %4128 = vst [vmem:[%s4124 + $0x8] sm:$0xff] %v4127
                %v4129 = vld [vmem:[%s4123 + $0x10] sm:$0xff]
                %4130 = vst [vmem:[%s4124 + $0x10] sm:$0xff] %v4129
                %v4131 = vld [vmem:[%s4123 + $0x18] sm:$0xff]
                %4132 = vst [vmem:[%s4124 + $0x18] sm:$0xff] %v4131
                %v4133 = vld [vmem:[%s4123 + $0x20] sm:$0xff]
                %4134 = vst [vmem:[%s4124 + $0x20] sm:$0xff] %v4133
                %v4135 = vld [vmem:[%s4123 + $0x28] sm:$0xff]
                %4136 = vst [vmem:[%s4124 + $0x28] sm:$0xff] %v4135
                %v4137 = vld [vmem:[%s4123 + $0x30] sm:$0xff]
                %4138 = vst [vmem:[%s4124 + $0x30] sm:$0xff] %v4137
                %v4139 = vld [vmem:[%s4123 + $0x38] sm:$0xff]
                %4140 = vst [vmem:[%s4124 + $0x38] sm:$0xff] %v4139
                %v4141 = vld [vmem:[%s4123 + $0x40] sm:$0xff]
                %4142 = vst [vmem:[%s4124 + $0x80] sm:$0xff] %v4141
                %v4143 = vld [vmem:[%s4123 + $0x48] sm:$0xff]
                %4144 = vst [vmem:[%s4124 + $0x88] sm:$0xff] %v4143
                %v4145 = vld [vmem:[%s4123 + $0x50] sm:$0xff]
                %4146 = vst [vmem:[%s4124 + $0x90] sm:$0xff] %v4145
                %v4147 = vld [vmem:[%s4123 + $0x58] sm:$0xff]
                %4148 = vst [vmem:[%s4124 + $0x98] sm:$0xff] %v4147
                %v4149 = vld [vmem:[%s4123 + $0x60] sm:$0xff]
                %4150 = vst [vmem:[%s4124 + $0xa0] sm:$0xff] %v4149
                %v4151 = vld [vmem:[%s4123 + $0x68] sm:$0xff]
                %4152 = vst [vmem:[%s4124 + $0xa8] sm:$0xff] %v4151
                %v4153 = vld [vmem:[%s4123 + $0x70] sm:$0xff]
                %4154 = vst [vmem:[%s4124 + $0xb0] sm:$0xff] %v4153
                %v4155 = vld [vmem:[%s4123 + $0x78] sm:$0xff]
                %4156 = vst [vmem:[%s4124 + $0xb8] sm:$0xff] %v4155
                %v4157 = vld [vmem:[%s4123 + $0x80] sm:$0xff]
                %4158 = vst [vmem:[%s4124 + $0x100] sm:$0xff] %v4157
                %v4159 = vld [vmem:[%s4123 + $0x88] sm:$0xff]
                %4160 = vst [vmem:[%s4124 + $0x108] sm:$0xff] %v4159
                %v4161 = vld [vmem:[%s4123 + $0x90] sm:$0xff]
                %4162 = vst [vmem:[%s4124 + $0x110] sm:$0xff] %v4161
                %v4163 = vld [vmem:[%s4123 + $0x98] sm:$0xff]
                %4164 = vst [vmem:[%s4124 + $0x118] sm:$0xff] %v4163
                %v4165 = vld [vmem:[%s4123 + $0xa0] sm:$0xff]
                %4166 = vst [vmem:[%s4124 + $0x120] sm:$0xff] %v4165
                %v4167 = vld [vmem:[%s4123 + $0xa8] sm:$0xff]
                %4168 = vst [vmem:[%s4124 + $0x128] sm:$0xff] %v4167
                %v4169 = vld [vmem:[%s4123 + $0xb0] sm:$0xff]
                %4170 = vst [vmem:[%s4124 + $0x130] sm:$0xff] %v4169
                %v4171 = vld [vmem:[%s4123 + $0xb8] sm:$0xff]
                %4172 = vst [vmem:[%s4124 + $0x138] sm:$0xff] %v4171
                %v4173 = vld [vmem:[%s4123 + $0xc0] sm:$0xff]
                %4174 = vst [vmem:[%s4124 + $0x180] sm:$0xff] %v4173
                %v4175 = vld [vmem:[%s4123 + $0xc8] sm:$0xff]
                %4176 = vst [vmem:[%s4124 + $0x188] sm:$0xff] %v4175
                %v4177 = vld [vmem:[%s4123 + $0xd0] sm:$0xff]
                %4178 = vst [vmem:[%s4124 + $0x190] sm:$0xff] %v4177
                %v4179 = vld [vmem:[%s4123 + $0xd8] sm:$0xff]
                %4180 = vst [vmem:[%s4124 + $0x198] sm:$0xff] %v4179
                %v4181 = vld [vmem:[%s4123 + $0xe0] sm:$0xff]
                %4182 = vst [vmem:[%s4124 + $0x1a0] sm:$0xff] %v4181
                %v4183 = vld [vmem:[%s4123 + $0xe8] sm:$0xff]
                %4184 = vst [vmem:[%s4124 + $0x1a8] sm:$0xff] %v4183
                %v4185 = vld [vmem:[%s4123 + $0xf0] sm:$0xff]
                %4186 = vst [vmem:[%s4124 + $0x1b0] sm:$0xff] %v4185
                %v4187 = vld [vmem:[%s4123 + $0xf8] sm:$0xff]
                %4188 = vst [vmem:[%s4124 + $0x1b8] sm:$0xff] %v4187
                %v4189 = vld [vmem:[%s4123 + $0x100] sm:$0xff]
                %4190 = vst [vmem:[%s4124 + $0x200] sm:$0xff] %v4189
                %v4191 = vld [vmem:[%s4123 + $0x108] sm:$0xff]
                %4192 = vst [vmem:[%s4124 + $0x208] sm:$0xff] %v4191
                %v4193 = vld [vmem:[%s4123 + $0x110] sm:$0xff]
                %4194 = vst [vmem:[%s4124 + $0x210] sm:$0xff] %v4193
                %v4195 = vld [vmem:[%s4123 + $0x118] sm:$0xff]
                %4196 = vst [vmem:[%s4124 + $0x218] sm:$0xff] %v4195
                %v4197 = vld [vmem:[%s4123 + $0x120] sm:$0xff]
                %4198 = vst [vmem:[%s4124 + $0x220] sm:$0xff] %v4197
                %v4199 = vld [vmem:[%s4123 + $0x128] sm:$0xff]
                %4200 = vst [vmem:[%s4124 + $0x228] sm:$0xff] %v4199
                %v4201 = vld [vmem:[%s4123 + $0x130] sm:$0xff]
                %4202 = vst [vmem:[%s4124 + $0x230] sm:$0xff] %v4201
                %v4203 = vld [vmem:[%s4123 + $0x138] sm:$0xff]
                %4204 = vst [vmem:[%s4124 + $0x238] sm:$0xff] %v4203
                %v4205 = vld [vmem:[%s4123 + $0x140] sm:$0xff]
                %4206 = vst [vmem:[%s4124 + $0x280] sm:$0xff] %v4205
                %v4207 = vld [vmem:[%s4123 + $0x148] sm:$0xff]
                %4208 = vst [vmem:[%s4124 + $0x288] sm:$0xff] %v4207
                %v4209 = vld [vmem:[%s4123 + $0x150] sm:$0xff]
                %4210 = vst [vmem:[%s4124 + $0x290] sm:$0xff] %v4209
                %v4211 = vld [vmem:[%s4123 + $0x158] sm:$0xff]
                %4212 = vst [vmem:[%s4124 + $0x298] sm:$0xff] %v4211
                %v4213 = vld [vmem:[%s4123 + $0x160] sm:$0xff]
                %4214 = vst [vmem:[%s4124 + $0x2a0] sm:$0xff] %v4213
                %v4215 = vld [vmem:[%s4123 + $0x168] sm:$0xff]
                %4216 = vst [vmem:[%s4124 + $0x2a8] sm:$0xff] %v4215
                %v4217 = vld [vmem:[%s4123 + $0x170] sm:$0xff]
                %4218 = vst [vmem:[%s4124 + $0x2b0] sm:$0xff] %v4217
                %v4219 = vld [vmem:[%s4123 + $0x178] sm:$0xff]
                %4220 = vst [vmem:[%s4124 + $0x2b8] sm:$0xff] %v4219
                %v4221 = vld [vmem:[%s4123 + $0x180] sm:$0xff]
                %4222 = vst [vmem:[%s4124 + $0x300] sm:$0xff] %v4221
                %v4223 = vld [vmem:[%s4123 + $0x188] sm:$0xff]
                %4224 = vst [vmem:[%s4124 + $0x308] sm:$0xff] %v4223
                %v4225 = vld [vmem:[%s4123 + $0x190] sm:$0xff]
                %4226 = vst [vmem:[%s4124 + $0x310] sm:$0xff] %v4225
                %v4227 = vld [vmem:[%s4123 + $0x198] sm:$0xff]
                %4228 = vst [vmem:[%s4124 + $0x318] sm:$0xff] %v4227
                %v4229 = vld [vmem:[%s4123 + $0x1a0] sm:$0xff]
                %4230 = vst [vmem:[%s4124 + $0x320] sm:$0xff] %v4229
                %v4231 = vld [vmem:[%s4123 + $0x1a8] sm:$0xff]
                %4232 = vst [vmem:[%s4124 + $0x328] sm:$0xff] %v4231
                %v4233 = vld [vmem:[%s4123 + $0x1b0] sm:$0xff]
                %4234 = vst [vmem:[%s4124 + $0x330] sm:$0xff] %v4233
                %v4235 = vld [vmem:[%s4123 + $0x1b8] sm:$0xff]
                %4236 = vst [vmem:[%s4124 + $0x338] sm:$0xff] %v4235
              $region91: #{tpu_custom_call.1} parent=85 // loop_footer
                %s4122 = sadd.s32 1, %s4118
              $region92: #{tpu_custom_call.1} parent=85 // loop_footer_branch
                %4117 = sbr.rel target = $region88
              $region93: #{tpu_custom_call.1} parent=85 // loop_exit
                _
            $region86: #{tpu_custom_call.1} parent=81 // pred_fallthru
              _
            // Predicated region
            $region94: #{tpu_custom_call.1} parent=81 // pred_check
              _
            $region95: #{tpu_custom_call.1} parent=81 // pred_check_branch
              %4238 = sbr.rel target = $region97
            $region96: #{tpu_custom_call.1} parent=81 // pred_region
              _
            $region97: #{tpu_custom_call.1} parent=81 // pred_fallthru
              _
          $region82: #{tpu_custom_call.1} parent=77 // pred_fallthru
            _
          %4239 = vnop
        $region78: #{tpu_custom_call.1} parent=65 // pred_fallthru
          _
      $region66: #{tpu_custom_call.1} parent=5 // pred_fallthru
        _
      %p4240 = scmp.le.s32.totalorder 2, %s8
      // Predicated region
      $region98: #{tpu_custom_call.1} parent=5 // pred_check
        %p4241 = pneg %p4240
      $region99: #{tpu_custom_call.1} parent=5 // pred_check_branch
        %4243 = sbr.rel (%p4241) target = $region101
      $region100: #{tpu_custom_call.1} parent=5 // pred_region
        %s4244 = ssub.s32 %s8, 2
        // Predicated region
        $region102: #{tpu_custom_call.1} parent=100 // pred_check
          %p4245 = pneg %p89
        $region103: #{tpu_custom_call.1} parent=100 // pred_check_branch
          %4247 = sbr.rel (%p4245) target = $region105
        $region104: #{tpu_custom_call.1} parent=100 // pred_region
          %s4248 = sand.u32 %s74, 1
          %s4249 = sand.u32 %s74, 1
          %s4250 = smul.addr %s4249, 448
          %s4251 = scalar_lea.vmem [#allocation5], %s4250
        $region105: #{tpu_custom_call.1} parent=100 // pred_fallthru
          _
      $region101: #{tpu_custom_call.1} parent=5 // pred_fallthru
        _
    $region6: #{tpu_custom_call.1} parent=1 // loop_footer
      %s12 = sadd.s32 1, %s8
    $region7: #{tpu_custom_call.1} parent=1 // loop_footer_branch
      %7 = sbr.rel target = $region3
    $region8: #{tpu_custom_call.1} parent=1 // loop_exit
      _

</llo_original>
